<compile_context>
chip_gen: v7x
topology: tpu7x:2x2x1
jax: 0.10.0
libtpu: 0.0.40
codegen_flags: <defaults>
</compile_context>

<pallas_src>
import functools
import math

import jax
import jax.numpy as jnp
from jax import lax
from jax.experimental import pallas as pl
from jax.experimental.pallas import tpu as pltpu


# ------------------------------ tiling helpers ------------------------------

TM_CAP = 1024      # rows per tile (covers B*T / B*S in one tile in practice)
TK_CAP = 2048      # contraction tile; K=E always fits -> single-k fast path
TN_CAP = 512       # output-column tile for wide-N matmuls (logits / FFN1)
VMEM_LIMIT = 48 * 1024 * 1024   # > v5e/v6e scoped defaults, < v7x 64 MiB phys


def _round_up(x, m):
    return (x + m - 1) // m * m


def _plan(dim, cap):
    """(tile, padded_dim): block == full dim when it fits (always legal),
    otherwise tile == cap and the dim is padded to a multiple of it."""
    if dim <= cap:
        return dim, dim
    return cap, _round_up(dim, cap)


def _pick_tb(B):
    """Batch elements per attention grid step: amortize per-step overhead while
    keeping >=2 grid steps whenever B >= 2 (so both v7x TensorCores get work)."""
    if B <= 2:
        return 1
    best = 1
    for tb in (2, 4, 8):
        if B % tb == 0 and B // tb >= 2:
            best = tb
    return best


# ------------------------------ fused linear kernel --------------------------

def _gelu_exact(x):
    # erf via Abramowitz & Stegun 7.1.26 (|err| <= 1.5e-7); the divide goes to
    # the EUP via pl.reciprocal(approx=True), exp also EUP -> VALU-light.
    a1, a2, a3, a4, a5 = 0.254829592, -0.284496736, 1.421413741, -1.453152027, 1.061405429
    p = 0.3275911
    u = x * (1.0 / math.sqrt(2.0))
    au = jnp.abs(u)
    t = pl.reciprocal(1.0 + p * au, approx=True)
    poly = ((((a5 * t + a4) * t + a3) * t + a2) * t + a1) * t
    erf = 1.0 - poly * jnp.exp(-au * au)
    erf = jnp.where(u >= 0.0, erf, -erf)
    return 0.5 * x * (1.0 + erf)


def _linear_kernel(*refs, nk, act, ln, eps):
    """y = x @ W^T + b  [; GELU]  [; LayerNorm(y + residual)], f32 math.
    nk == 1: no k grid axis, no accumulator scratch (single-shot dot).
    nk  > 1: k-innermost reduction with f32 VMEM accumulator."""
    if nk > 1:
        *refs, acc_ref = refs
    if ln:
        x_ref, wt_ref, b_ref, r_ref, g_ref, be_ref, o_ref = refs
    else:
        x_ref, wt_ref, b_ref, o_ref = refs
        r_ref = g_ref = be_ref = None

    def epilogue(acc):
        y = acc + b_ref[...]
        if act == "gelu":
            y = _gelu_exact(y)
        if ln:
            y = y + r_ref[...].astype(jnp.float32)
            mean = jnp.mean(y, axis=-1, keepdims=True)
            var = jnp.mean(jnp.square(y - mean), axis=-1, keepdims=True)
            y = (y - mean) * lax.rsqrt(var + eps) * g_ref[...] + be_ref[...]
        o_ref[...] = y.astype(o_ref.dtype)

    part = jnp.dot(x_ref[...], wt_ref[...], preferred_element_type=jnp.float32)

    if nk == 1:
        epilogue(part)
    else:
        @pl.when(pl.program_id(2) == 0)
        def _():
            acc_ref[...] = jnp.zeros_like(acc_ref)

        acc_ref[...] += part

        @pl.when(pl.program_id(2) == pl.num_programs(2) - 1)
        def _():
            epilogue(acc_ref[...])


def linear(x, wt, b, n_out, *, act=None, residual=None, gamma=None, beta=None,
           eps=1e-5, out_dtype=None):
    """x: (M, K); wt: (Kp, Np) pre-transposed + pre-padded; b: (1, Np) f32.
    Optional fused residual+LayerNorm epilogue (requires Np == n_out)."""
    M, K = x.shape
    Kp, Np = wt.shape
    ln = residual is not None
    out_dtype = out_dtype or x.dtype

    tm, Mp = _plan(M, TM_CAP)
    tk = Kp if Kp <= TK_CAP else TK_CAP
    nk = Kp // tk
    if ln:
        assert Np == n_out, "LayerNorm fusion needs an unpadded output dim"
        tn = Np                       # full row per tile for the LN epilogue
    else:
        tn = Np if Np <= TN_CAP else TN_CAP

    # only activations are padded per call (weights were padded once, offline)
    if Mp != M or Kp != K:
        x = jnp.pad(x, ((0, Mp - M), (0, Kp - K)))
    if ln and Mp != M:
        residual = jnp.pad(residual, ((0, Mp - M), (0, 0)))

    inputs = [x, wt, b]
    if ln:
        inputs += [residual,
                   gamma.reshape(1, Np).astype(jnp.float32),
                   beta.reshape(1, Np).astype(jnp.float32)]

    if nk == 1:
        grid = (Mp // tm, Np // tn)
        in_specs = [pl.BlockSpec((tm, Kp), lambda i, j: (i, 0)),
                    pl.BlockSpec((Kp, tn), lambda i, j: (0, j)),
                    pl.BlockSpec((1, tn), lambda i, j: (0, j))]
        if ln:
            in_specs += [pl.BlockSpec((tm, tn), lambda i, j: (i, j)),
                         pl.BlockSpec((1, tn), lambda i, j: (0, j)),
                         pl.BlockSpec((1, tn), lambda i, j: (0, j))]
        out_spec = pl.BlockSpec((tm, tn), lambda i, j: (i, j))
        dims = ("parallel", "parallel")
        scratch = []
    else:
        grid = (Mp // tm, Np // tn, nk)
        in_specs = [pl.BlockSpec((tm, tk), lambda i, j, k: (i, k)),
                    pl.BlockSpec((tk, tn), lambda i, j, k: (k, j)),
                    pl.BlockSpec((1, tn), lambda i, j, k: (0, j))]
        if ln:
            in_specs += [pl.BlockSpec((tm, tn), lambda i, j, k: (i, j)),
                         pl.BlockSpec((1, tn), lambda i, j, k: (0, j)),
                         pl.BlockSpec((1, tn), lambda i, j, k: (0, j))]
        out_spec = pl.BlockSpec((tm, tn), lambda i, j, k: (i, j))
        dims = ("parallel", "parallel", "arbitrary")
        scratch = [pltpu.VMEM((tm, tn), jnp.float32)]

    out = pl.pallas_call(
        functools.partial(_linear_kernel, nk=nk, act=act, ln=ln, eps=eps),
        out_shape=jax.ShapeDtypeStruct((Mp, Np), out_dtype),
        grid=grid,
        in_specs=in_specs,
        out_specs=out_spec,
        scratch_shapes=scratch,
        compiler_params=pltpu.CompilerParams(
            dimension_semantics=dims, vmem_limit_bytes=VMEM_LIMIT),
    )(*inputs)

    if Mp != M or Np != n_out:
        out = out[:M, :n_out]
    return out


# ------------------------------ embedding add+LN -----------------------------

def _add_ln_kernel(x_ref, r_ref, g_ref, b_ref, o_ref, *, eps):
    x = x_ref[...].astype(jnp.float32) + r_ref[...].astype(jnp.float32)
    mean = jnp.mean(x, axis=-1, keepdims=True)
    var = jnp.mean(jnp.square(x - mean), axis=-1, keepdims=True)
    o_ref[...] = ((x - mean) * lax.rsqrt(var + eps) * g_ref[...]
                  + b_ref[...]).astype(o_ref.dtype)


def pallas_add_layernorm(x2d, r2d, gamma, beta, eps, out_dtype=None):
    M, H = x2d.shape
    out_dtype = out_dtype or x2d.dtype
    tm, Mp = _plan(M, 1024)
    if Mp != M:
        x2d = jnp.pad(x2d, ((0, Mp - M), (0, 0)))
        r2d = jnp.pad(r2d, ((0, Mp - M), (0, 0)))
    out = pl.pallas_call(
        functools.partial(_add_ln_kernel, eps=eps),
        out_shape=jax.ShapeDtypeStruct((Mp, H), out_dtype),
        grid=(Mp // tm,),
        in_specs=[pl.BlockSpec((tm, H), lambda i: (i, 0)),
                  pl.BlockSpec((tm, H), lambda i: (i, 0)),
                  pl.BlockSpec((1, H), lambda i: (0, 0)),
                  pl.BlockSpec((1, H), lambda i: (0, 0))],
        out_specs=pl.BlockSpec((tm, H), lambda i: (i, 0)),
        compiler_params=pltpu.CompilerParams(
            dimension_semantics=("parallel",), vmem_limit_bytes=VMEM_LIMIT),
    )(x2d, r2d,
      gamma.reshape(1, H).astype(jnp.float32),
      beta.reshape(1, H).astype(jnp.float32))
    return out[:M] if Mp != M else out


# --------------------------------- attention ---------------------------------

def _mha_kernel(len_ref, *refs, nH, dh, causal, fused_qkv):
    """tb batch elements x ALL heads per grid step.  Heads stay packed in the
    lane dim (static lane slices) -> no head split/merge transposes anywhere.
    Softmax scale was folded into the Q projection weights."""
    E = nH * dh
    if fused_qkv:                       # self-attention: one (tb, T, 3E) block
        qkv_ref, o_ref = refs
        qkv = qkv_ref[...]
        q_all, kv_all, kv_off = qkv, qkv, E
    else:                               # cross-attention: (tb,T,E) + (tb,S,2E)
        q_ref, kv_ref, o_ref = refs
        q_all = q_ref[...]
        kv_all = kv_ref[...]
        kv_off = 0
    Tq = q_all.shape[1]
    Tk = kv_all.shape[1]

    allowed = None
    if causal:
        qi = lax.broadcasted_iota(jnp.int32, (Tq, Tk), 0)
        ki = lax.broadcasted_iota(jnp.int32, (Tq, Tk), 1)
        length = len_ref[...]                                   # (tb, 1, 1)
        allowed = (ki <= qi)[None, :, :] & (ki[None, :, :] < length)

    outs = []
    for h in range(nH):                 # static unroll over heads
        qh = q_all[:, :, h * dh:(h + 1) * dh]
        kh = kv_all[:, :, kv_off + h * dh: kv_off + (h + 1) * dh]
        vh = kv_all[:, :, kv_off + E + h * dh: kv_off + E + (h + 1) * dh]
        s = jnp.einsum("bqd,bkd->bqk", qh, kh,
                       preferred_element_type=jnp.float32)
        if causal:
            # large finite negative (not -inf) so masked rows can never NaN
            s = jnp.where(allowed, s, jnp.float32(-1e30))
        m = jnp.max(s, axis=-1, keepdims=True)
        p = jnp.exp(s - m)
        denom = jnp.sum(p, axis=-1, keepdims=True)
        oh = jnp.einsum("bqk,bkd->bqd", p.astype(vh.dtype), vh,
                        preferred_element_type=jnp.float32)
        outs.append(oh * pl.reciprocal(denom, approx=True))
    o_ref[...] = jnp.concatenate(outs, axis=-1).astype(o_ref.dtype)


def pallas_mha(len_b11, q_or_qkv, kv, *, nH, dh, causal):
    """q_or_qkv: (B, Tq, 3E) packed QKV (kv=None, self-attn) or (B, Tq, E)
    queries with kv=(B, Tk, 2E) packed KV (cross-attn) -> (B, Tq, E)."""
    E = nH * dh
    fused = kv is None
    B, Tq, qw = q_or_qkv.shape
    Tk = Tq if fused else kv.shape[1]
    tb = _pick_tb(B)

    in_arrays = [len_b11, q_or_qkv]
    in_specs = [pl.BlockSpec((tb, 1, 1), lambda b: (b, 0, 0)),
                pl.BlockSpec((tb, Tq, qw), lambda b: (b, 0, 0))]
    if not fused:
        in_arrays.append(kv)
        in_specs.append(pl.BlockSpec((tb, Tk, kv.shape[2]), lambda b: (b, 0, 0)))

    return pl.pallas_call(
        functools.partial(_mha_kernel, nH=nH, dh=dh, causal=causal,
                          fused_qkv=fused),
        out_shape=jax.ShapeDtypeStruct((B, Tq, E), q_or_qkv.dtype),
        grid=(B // tb,),
        in_specs=in_specs,
        out_specs=pl.BlockSpec((tb, Tq, E), lambda b: (b, 0, 0)),
        compiler_params=pltpu.CompilerParams(
            dimension_semantics=("parallel",), vmem_limit_bytes=VMEM_LIMIT),
    )(*in_arrays)


# --------------------------- model building blocks ---------------------------

def decoder_layer(x, memory, lp, len_b11, nh, dh, ff_dim):
    """Post-norm nn.TransformerDecoderLayer with exact-erf GELU (eval mode).
    Residual-add + LayerNorm are fused into the epilogues of the out-proj /
    FFN2 matmuls."""
    B, T, E = x.shape
    S = memory.shape[1]
    x2 = x.reshape(B * T, E)

    # self-attention (fused QKV) -> out-proj + residual + LN1
    qkv = linear(x2, lp["sa_wqkv_t"], lp["sa_bqkv"], 3 * E).reshape(B, T, 3 * E)
    sa = pallas_mha(len_b11, qkv, None, nH=nh, dh=dh, causal=True)
    x2 = linear(sa.reshape(B * T, E), lp["sa_wo_t"], lp["sa_bo"], E,
                residual=x2, gamma=lp["n1_g"], beta=lp["n1_b"], eps=1e-5)

    # cross-attention (fused KV) -> out-proj + residual + LN2
    q = linear(x2, lp["ca_wq_t"], lp["ca_bq"], E).reshape(B, T, E)
    kv = linear(memory.reshape(B * S, E), lp["ca_wkv_t"], lp["ca_bkv"],
                2 * E).reshape(B, S, 2 * E)
    ca = pallas_mha(len_b11, q, kv, nH=nh, dh=dh, causal=False)
    x2 = linear(ca.reshape(B * T, E), lp["ca_wo_t"], lp["ca_bo"], E,
                residual=x2, gamma=lp["n2_g"], beta=lp["n2_b"], eps=1e-5)

    # FFN: (linear + GELU) -> (linear + residual + LN3)
    h = linear(x2, lp["ff1_wt"], lp["ff1_b"], ff_dim, act="gelu")
    x2 = linear(h, lp["ff2_wt"], lp["ff2_b"], E,
                residual=x2, gamma=lp["n3_g"], beta=lp["n3_b"], eps=1e-5)
    return x2.reshape(B, T, E)


def textual_head_forward(params, cfg, visual_features, caption_tokens, caption_lengths):
    """Equivalent of TransformerDecoderTextualHead.forward (non-sampling path)."""
    B, C, Hh, Ww = visual_features.shape
    S = Hh * Ww
    E = cfg["hidden_size"]
    T = caption_tokens.shape[1]
    nh = cfg["attention_heads"]
    dh = E // nh
    dt = params["word_emb"].dtype            # bf16 activations

    # (1) visual projection: NCHW -> (B, S, C) -> (B, S, E)
    vis = visual_features.reshape(B, C, S).transpose(0, 2, 1).astype(dt)
    memory = linear(vis.reshape(B * S, C), params["vis_wt"], params["vis_b"],
                    E).reshape(B, S, E)

    # (2) word + positional embedding, LayerNorm(eps=1e-8), pad tokens zeroed
    we = params["word_emb"][caption_tokens]                    # gather (glue)
    pe = jnp.broadcast_to(params["pos_emb"][:T][None, :, :], (B, T, E))
    emb = pallas_add_layernorm(we.reshape(B * T, E), pe.reshape(B * T, E),
                               params["emb_ln_g"], params["emb_ln_b"],
                               1e-8).reshape(B, T, E)
    token_mask = (caption_tokens != cfg["padding_idx"]).astype(dt)[..., None]
    emb = emb * token_mask      # dropout: identity (eval); pad-mask glue

    # (3)+(4) causal transformer decoder; masks built inside the attention kernel
    len_b11 = caption_lengths.astype(jnp.int32).reshape(B, 1, 1)
    x = emb
    for lp in params["layers"]:
        x = decoder_layer(x, memory, lp, len_b11, nh, dh, cfg["feedforward_size"])

    # (5) output projection; weight tied with word embedding, f32 logits
    logits = linear(x.reshape(B * T, E), params["out_wt"], params["out_b"],
                    cfg["vocab_size"], out_dtype=jnp.float32)
    return logits.reshape(B, T, cfg["vocab_size"]), None


# -------------------------------- parameters --------------------------------

def init_params(key, cfg):
    """Torch-layout f32 parameters (nn.Linear weights are (out, in))."""
    E = cfg["hidden_size"]; C = cfg["visual_feature_size"]
    V = cfg["vocab_size"]; F = cfg["feedforward_size"]
    L = cfg["num_layers"]; M = cfg["max_caption_length"]
    std = 0.02
    keys = iter(jax.random.split(key, 4 + 6 * L))
    nrm = lambda shape: std * jax.random.normal(next(keys), shape, jnp.float32)

    word_emb = nrm((V, E)).at[cfg["padding_idx"]].set(0.0)
    params = {
        "vis_w": nrm((E, C)), "vis_b": jnp.zeros((E,), jnp.float32),
        "word_emb": word_emb,
        "pos_emb": nrm((M, E)),
        "emb_ln_g": jnp.ones((E,), jnp.float32),
        "emb_ln_b": jnp.zeros((E,), jnp.float32),
        "layers": [],
        "out_b": jnp.zeros((V,), jnp.float32),   # output weight tied to word_emb
    }
    for _ in range(L):
        params["layers"].append({
            "sa_wi": nrm((3 * E, E)), "sa_bi": jnp.zeros((3 * E,), jnp.float32),
            "sa_wo": nrm((E, E)),     "sa_bo": jnp.zeros((E,), jnp.float32),
            "ca_wi": nrm((3 * E, E)), "ca_bi": jnp.zeros((3 * E,), jnp.float32),
            "ca_wo": nrm((E, E)),     "ca_bo": jnp.zeros((E,), jnp.float32),
            "ff1_w": nrm((F, E)),     "ff1_b": jnp.zeros((F,), jnp.float32),
            "ff2_w": nrm((E, F)),     "ff2_b": jnp.zeros((E,), jnp.float32),
            "n1_g": jnp.ones((E,), jnp.float32), "n1_b": jnp.zeros((E,), jnp.float32),
            "n2_g": jnp.ones((E,), jnp.float32), "n2_b": jnp.zeros((E,), jnp.float32),
            "n3_g": jnp.ones((E,), jnp.float32), "n3_b": jnp.zeros((E,), jnp.float32),
        })
    return params


def _prep_linear(w, b, *, ln_out=False):
    """One-time: transpose to W^T, pre-pad to tile multiples, cast weight to
    bf16 and bias to (1, Np) f32.  ln_out=True keeps N unpadded (LN fusion)."""
    wt = jnp.transpose(w)                       # (K, N)
    K, N = wt.shape
    Kp = K if K <= TK_CAP else _round_up(K, TK_CAP)
    Np = N if (ln_out or N <= TN_CAP) else _round_up(N, TN_CAP)
    if (Kp, Np) != (K, N):
        wt = jnp.pad(wt, ((0, Kp - K), (0, Np - N)))
    bp = jnp.pad(b, (0, Np - N)).reshape(1, Np).astype(jnp.float32)
    return wt.astype(jnp.bfloat16), bp


def prepare_params(p, cfg):
    """One-time conversion: pre-transpose + pre-pad weights, fuse QKV / KV
    stacks, fold the 1/sqrt(dh) softmax scale into the Q projections, cast
    matmul weights & embedding tables to bf16, biases/LN params to f32."""
    E = cfg["hidden_size"]
    dh = E // cfg["attention_heads"]
    scale = 1.0 / math.sqrt(dh)

    out = {
        "word_emb": p["word_emb"].astype(jnp.bfloat16),
        "pos_emb": p["pos_emb"].astype(jnp.bfloat16),
        "emb_ln_g": p["emb_ln_g"], "emb_ln_b": p["emb_ln_b"],
        "layers": [],
    }
    out["vis_wt"], out["vis_b"] = _prep_linear(p["vis_w"], p["vis_b"])
    # tied output weights: Linear weight == embedding table (V, E)
    out["out_wt"], out["out_b"] = _prep_linear(p["word_emb"], p["out_b"])

    for lp in p["layers"]:
        # fold softmax scale into the Q rows of the in-projections
        sa_wi = jnp.concatenate([lp["sa_wi"][:E] * scale, lp["sa_wi"][E:]], axis=0)
        sa_bi = jnp.concatenate([lp["sa_bi"][:E] * scale, lp["sa_bi"][E:]], axis=0)
        wq, wk, wv = lp["ca_wi"][:E] * scale, lp["ca_wi"][E:2 * E], lp["ca_wi"][2 * E:]
        bq, bk, bv = lp["ca_bi"][:E] * scale, lp["ca_bi"][E:2 * E], lp["ca_bi"][2 * E:]

        d = {}
        d["sa_wqkv_t"], d["sa_bqkv"] = _prep_linear(sa_wi, sa_bi)
        d["sa_wo_t"], d["sa_bo"] = _prep_linear(lp["sa_wo"], lp["sa_bo"], ln_out=True)
        d["ca_wq_t"], d["ca_bq"] = _prep_linear(wq, bq)
        d["ca_wkv_t"], d["ca_bkv"] = _prep_linear(
            jnp.concatenate([wk, wv], axis=0), jnp.concatenate([bk, bv]))
        d["ca_wo_t"], d["ca_bo"] = _prep_linear(lp["ca_wo"], lp["ca_bo"], ln_out=True)
        d["ff1_wt"], d["ff1_b"] = _prep_linear(lp["ff1_w"], lp["ff1_b"])
        d["ff2_wt"], d["ff2_b"] = _prep_linear(lp["ff2_w"], lp["ff2_b"], ln_out=True)
        for k in ("n1_g", "n1_b", "n2_g", "n2_b", "n3_g", "n3_b"):
            d[k] = lp[k]
        out["layers"].append(d)
    return out


# ----------------------------------- main ------------------------------------

if __name__ == "__main__":
    cfg = dict(visual_feature_size=16, vocab_size=48, hidden_size=32,
               num_layers=2, attention_heads=4, feedforward_size=64,
               max_caption_length=16, padding_idx=0)

    key = jax.random.PRNGKey(0)
    k_params, k_vis, k_tok = jax.random.split(key, 3)
    params = prepare_params(init_params(k_params, cfg), cfg)

    B, Hh, Ww, T = 2, 4, 4, 8
    visual_features = jax.random.normal(
        k_vis, (B, cfg["visual_feature_size"], Hh, Ww), jnp.float32)
    caption_lengths = jnp.array([5, 8], jnp.int32)
    raw_tokens = jax.random.randint(k_tok, (B, T), 1, cfg["vocab_size"])
    pos = jnp.arange(T)[None, :]
    caption_tokens = jnp.where(pos < caption_lengths[:, None],
                               raw_tokens, cfg["padding_idx"]).astype(jnp.int32)

    fwd = jax.jit(lambda p, v, t, l: textual_head_forward(p, cfg, v, t, l))
    logits, _cache = fwd(params, visual_features, caption_tokens, caption_lengths)
    logits = jax.block_until_ready(logits)

    assert logits.shape == (B, T, cfg["vocab_size"]), logits.shape
    assert bool(jnp.all(jnp.isfinite(logits)))
    print("KERNEL_OK")
</pallas_src>

<mosaic_0001>
module attributes {stable_mosaic.version = 11 : i64} {
  func.func @_add_ln_kernel(%arg0: i32, %arg1: memref<16x32xbf16, #tpu.memory_space<vmem>>, %arg2: memref<16x32xbf16, #tpu.memory_space<vmem>>, %arg3: memref<1x32xf32, #tpu.memory_space<vmem>>, %arg4: memref<1x32xf32, #tpu.memory_space<vmem>>, %arg5: memref<16x32xbf16, #tpu.memory_space<vmem>>) attributes {dimension_semantics = [#tpu.dimension_semantics<parallel>], iteration_bounds = array<i64: 1>, scalar_prefetch = 0 : i64, scratch_operands = 0 : i64, tpu.core_type = #tpu.core_type<tc>, window_params = [{transform_indices = @transform_0, window_bounds = array<i64: 16, 32>}, {transform_indices = @transform_1, window_bounds = array<i64: 16, 32>}, {pipeline_mode = #tpu.pipeline_mode<synchronous>, transform_indices = @transform_2, window_bounds = array<i64: 1, 32>}, {pipeline_mode = #tpu.pipeline_mode<synchronous>, transform_indices = @transform_3, window_bounds = array<i64: 1, 32>}, {transform_indices = @transform_4, window_bounds = array<i64: 16, 32>}]} {
    %c0 = arith.constant 0 : index
    %c0_0 = arith.constant 0 : index
    %0 = vector.load %arg1[%c0, %c0_0] : memref<16x32xbf16, #tpu.memory_space<vmem>>, vector<16x32xbf16>
    %1 = arith.extf %0 : vector<16x32xbf16> to vector<16x32xf32>
    %c0_1 = arith.constant 0 : index
    %c0_2 = arith.constant 0 : index
    %2 = vector.load %arg2[%c0_1, %c0_2] : memref<16x32xbf16, #tpu.memory_space<vmem>>, vector<16x32xbf16>
    %3 = arith.extf %2 : vector<16x32xbf16> to vector<16x32xf32>
    %4 = arith.addf %1, %3 : vector<16x32xf32>
    %cst = arith.constant dense<0.000000e+00> : vector<16xf32>
    %5 = vector.multi_reduction <add>, %4, %cst [1] : vector<16x32xf32> to vector<16xf32>
    %6 = vector.shape_cast %5 : vector<16xf32> to vector<16x1xf32>
    %cst_3 = arith.constant 3.200000e+01 : f32
    %7 = vector.broadcast %cst_3 : f32 to vector<16x1xf32>
    %8 = arith.divf %6, %7 : vector<16x1xf32>
    %9 = vector.broadcast %8 : vector<16x1xf32> to vector<16x32xf32>
    %10 = arith.subf %4, %9 : vector<16x32xf32>
    %11 = arith.mulf %10, %10 : vector<16x32xf32>
    %cst_4 = arith.constant dense<0.000000e+00> : vector<16xf32>
    %12 = vector.multi_reduction <add>, %11, %cst_4 [1] : vector<16x32xf32> to vector<16xf32>
    %13 = vector.shape_cast %12 : vector<16xf32> to vector<16x1xf32>
    %cst_5 = arith.constant 3.200000e+01 : f32
    %14 = vector.broadcast %cst_5 : f32 to vector<16x1xf32>
    %15 = arith.divf %13, %14 : vector<16x1xf32>
    %16 = vector.broadcast %8 : vector<16x1xf32> to vector<16x32xf32>
    %17 = arith.subf %4, %16 : vector<16x32xf32>
    %cst_6 = arith.constant 9.99999993E-9 : f32
    %18 = vector.broadcast %cst_6 : f32 to vector<16x1xf32>
    %19 = arith.addf %15, %18 : vector<16x1xf32>
    %20 = math.rsqrt %19 : vector<16x1xf32>
    %21 = vector.broadcast %20 : vector<16x1xf32> to vector<16x32xf32>
    %22 = arith.mulf %17, %21 : vector<16x32xf32>
    %c0_7 = arith.constant 0 : index
    %c0_8 = arith.constant 0 : index
    %23 = vector.load %arg3[%c0_7, %c0_8] : memref<1x32xf32, #tpu.memory_space<vmem>>, vector<1x32xf32>
    %24 = vector.broadcast %23 : vector<1x32xf32> to vector<16x32xf32>
    %25 = arith.mulf %22, %24 : vector<16x32xf32>
    %c0_9 = arith.constant 0 : index
    %c0_10 = arith.constant 0 : index
    %26 = vector.load %arg4[%c0_9, %c0_10] : memref<1x32xf32, #tpu.memory_space<vmem>>, vector<1x32xf32>
    %27 = vector.broadcast %26 : vector<1x32xf32> to vector<16x32xf32>
    %28 = arith.addf %25, %27 : vector<16x32xf32>
    %29 = arith.truncf %28 : vector<16x32xf32> to vector<16x32xbf16>
    %c0_11 = arith.constant 0 : index
    %c0_12 = arith.constant 0 : index
    %30 = vector.load %arg5[%c0_11, %c0_12] : memref<16x32xbf16, #tpu.memory_space<vmem>>, vector<16x32xbf16>
    tpu.vector_store %arg5[%c0_11, %c0_12], %29 {strides = array<i32>} : memref<16x32xbf16, #tpu.memory_space<vmem>>, vector<16x32xbf16>,
    return
  }
  func.func @transform_0(%arg0: i32) -> (i32, i32) {
    %c0_i32 = arith.constant 0 : i32
    %c0_i32_0 = arith.constant 0 : i32
    return %arg0, %c0_i32 : i32, i32
  }
  func.func @transform_1(%arg0: i32) -> (i32, i32) {
    %c0_i32 = arith.constant 0 : i32
    %c0_i32_0 = arith.constant 0 : i32
    return %arg0, %c0_i32 : i32, i32
  }
  func.func @transform_2(%arg0: i32) -> (i32, i32) {
    %c0_i32 = arith.constant 0 : i32
    %c0_i32_0 = arith.constant 0 : i32
    %c0_i32_1 = arith.constant 0 : i32
    return %c0_i32, %c0_i32_0 : i32, i32
  }
  func.func @transform_3(%arg0: i32) -> (i32, i32) {
    %c0_i32 = arith.constant 0 : i32
    %c0_i32_0 = arith.constant 0 : i32
    %c0_i32_1 = arith.constant 0 : i32
    return %c0_i32, %c0_i32_0 : i32, i32
  }
  func.func @transform_4(%arg0: i32) -> (i32, i32) {
    %c0_i32 = arith.constant 0 : i32
    %c0_i32_0 = arith.constant 0 : i32
    return %arg0, %c0_i32 : i32, i32
  }
}

module attributes {stable_mosaic.version = 11 : i64} {
  func.func @_linear_kernel(%arg0: i32, %arg1: i32, %arg2: memref<16x32xbf16, #tpu.memory_space<vmem>>, %arg3: memref<32x96xbf16, #tpu.memory_space<vmem>>, %arg4: memref<1x96xf32, #tpu.memory_space<vmem>>, %arg5: memref<16x96xbf16, #tpu.memory_space<vmem>>) attributes {dimension_semantics = [#tpu.dimension_semantics<parallel>, #tpu.dimension_semantics<parallel>], iteration_bounds = array<i64: 1, 1>, scalar_prefetch = 0 : i64, scratch_operands = 0 : i64, tpu.core_type = #tpu.core_type<tc>, window_params = [{transform_indices = @transform_0, window_bounds = array<i64: 16, 32>}, {transform_indices = @transform_1, window_bounds = array<i64: 32, 96>}, {transform_indices = @transform_2, window_bounds = array<i64: 1, 96>}, {transform_indices = @transform_3, window_bounds = array<i64: 16, 96>}]} {
    %c0 = arith.constant 0 : index
    %c0_0 = arith.constant 0 : index
    %0 = vector.load %arg2[%c0, %c0_0] : memref<16x32xbf16, #tpu.memory_space<vmem>>, vector<16x32xbf16>
    %c0_1 = arith.constant 0 : index
    %c0_2 = arith.constant 0 : index
    %1 = vector.load %arg3[%c0_1, %c0_2] : memref<32x96xbf16, #tpu.memory_space<vmem>>, vector<32x96xbf16>
    %cst = arith.constant dense<0.000000e+00> : vector<16x96xf32>
    %2 = tpu.matmul %0, %1, %cst {dimension_numbers = #tpu.dot_dimension_numbers<[1], [0], [0], [1], [0, 0, 1, 1], [], []>} : vector<16x32xbf16>, vector<32x96xbf16>, vector<16x96xf32> -> vector<16x96xf32>
    %c0_3 = arith.constant 0 : index
    %c0_4 = arith.constant 0 : index
    %3 = vector.load %arg4[%c0_3, %c0_4] : memref<1x96xf32, #tpu.memory_space<vmem>>, vector<1x96xf32>
    %4 = vector.broadcast %3 : vector<1x96xf32> to vector<16x96xf32>
    %5 = arith.addf %2, %4 : vector<16x96xf32>
    %6 = arith.truncf %5 : vector<16x96xf32> to vector<16x96xbf16>
    %c0_5 = arith.constant 0 : index
    %c0_6 = arith.constant 0 : index
    %7 = vector.load %arg5[%c0_5, %c0_6] : memref<16x96xbf16, #tpu.memory_space<vmem>>, vector<16x96xbf16>
    tpu.vector_store %arg5[%c0_5, %c0_6], %6 {strides = array<i32>} : memref<16x96xbf16, #tpu.memory_space<vmem>>, vector<16x96xbf16>,
    return
  }
  func.func @transform_0(%arg0: i32, %arg1: i32) -> (i32, i32) {
    %c0_i32 = arith.constant 0 : i32
    %c0_i32_0 = arith.constant 0 : i32
    return %arg0, %c0_i32 : i32, i32
  }
  func.func @transform_1(%arg0: i32, %arg1: i32) -> (i32, i32) {
    %c0_i32 = arith.constant 0 : i32
    %c0_i32_0 = arith.constant 0 : i32
    return %c0_i32, %arg1 : i32, i32
  }
  func.func @transform_2(%arg0: i32, %arg1: i32) -> (i32, i32) {
    %c0_i32 = arith.constant 0 : i32
    %c0_i32_0 = arith.constant 0 : i32
    return %c0_i32, %arg1 : i32, i32
  }
  func.func @transform_3(%arg0: i32, %arg1: i32) -> (i32, i32) {
    %c0_i32 = arith.constant 0 : i32
    return %arg0, %arg1 : i32, i32
  }
}

module attributes {stable_mosaic.version = 11 : i64} {
  func.func @_linear_kernel(%arg0: i32, %arg1: i32, %arg2: memref<16x32xbf16, #tpu.memory_space<vmem>>, %arg3: memref<32x32xbf16, #tpu.memory_space<vmem>>, %arg4: memref<1x32xf32, #tpu.memory_space<vmem>>, %arg5: memref<16x32xbf16, #tpu.memory_space<vmem>>, %arg6: memref<1x32xf32, #tpu.memory_space<vmem>>, %arg7: memref<1x32xf32, #tpu.memory_space<vmem>>, %arg8: memref<16x32xbf16, #tpu.memory_space<vmem>>) attributes {dimension_semantics = [#tpu.dimension_semantics<parallel>, #tpu.dimension_semantics<parallel>], iteration_bounds = array<i64: 1, 1>, scalar_prefetch = 0 : i64, scratch_operands = 0 : i64, tpu.core_type = #tpu.core_type<tc>, window_params = [{transform_indices = @transform_0, window_bounds = array<i64: 16, 32>}, {transform_indices = @transform_1, window_bounds = array<i64: 32, 32>}, {transform_indices = @transform_2, window_bounds = array<i64: 1, 32>}, {transform_indices = @transform_3, window_bounds = array<i64: 16, 32>}, {transform_indices = @transform_4, window_bounds = array<i64: 1, 32>}, {transform_indices = @transform_5, window_bounds = array<i64: 1, 32>}, {transform_indices = @transform_6, window_bounds = array<i64: 16, 32>}]} {
    %c0 = arith.constant 0 : index
    %c0_0 = arith.constant 0 : index
    %0 = vector.load %arg2[%c0, %c0_0] : memref<16x32xbf16, #tpu.memory_space<vmem>>, vector<16x32xbf16>
    %c0_1 = arith.constant 0 : index
    %c0_2 = arith.constant 0 : index
    %1 = vector.load %arg3[%c0_1, %c0_2] : memref<32x32xbf16, #tpu.memory_space<vmem>>, vector<32x32xbf16>
    %cst = arith.constant dense<0.000000e+00> : vector<16x32xf32>
    %2 = tpu.matmul %0, %1, %cst {dimension_numbers = #tpu.dot_dimension_numbers<[1], [0], [0], [1], [0, 0, 1, 1], [], []>} : vector<16x32xbf16>, vector<32x32xbf16>, vector<16x32xf32> -> vector<16x32xf32>
    %c0_3 = arith.constant 0 : index
    %c0_4 = arith.constant 0 : index
    %3 = vector.load %arg4[%c0_3, %c0_4] : memref<1x32xf32, #tpu.memory_space<vmem>>, vector<1x32xf32>
    %4 = vector.broadcast %3 : vector<1x32xf32> to vector<16x32xf32>
    %5 = arith.addf %2, %4 : vector<16x32xf32>
    %c0_5 = arith.constant 0 : index
    %c0_6 = arith.constant 0 : index
    %6 = vector.load %arg5[%c0_5, %c0_6] : memref<16x32xbf16, #tpu.memory_space<vmem>>, vector<16x32xbf16>
    %7 = arith.extf %6 : vector<16x32xbf16> to vector<16x32xf32>
    %8 = arith.addf %5, %7 : vector<16x32xf32>
    %cst_7 = arith.constant dense<0.000000e+00> : vector<16xf32>
    %9 = vector.multi_reduction <add>, %8, %cst_7 [1] : vector<16x32xf32> to vector<16xf32>
    %10 = vector.shape_cast %9 : vector<16xf32> to vector<16x1xf32>
    %cst_8 = arith.constant 3.200000e+01 : f32
    %11 = vector.broadcast %cst_8 : f32 to vector<16x1xf32>
    %12 = arith.divf %10, %11 : vector<16x1xf32>
    %13 = vector.broadcast %12 : vector<16x1xf32> to vector<16x32xf32>
    %14 = arith.subf %8, %13 : vector<16x32xf32>
    %15 = arith.mulf %14, %14 : vector<16x32xf32>
    %cst_9 = arith.constant dense<0.000000e+00> : vector<16xf32>
    %16 = vector.multi_reduction <add>, %15, %cst_9 [1] : vector<16x32xf32> to vector<16xf32>
    %17 = vector.shape_cast %16 : vector<16xf32> to vector<16x1xf32>
    %cst_10 = arith.constant 3.200000e+01 : f32
    %18 = vector.broadcast %cst_10 : f32 to vector<16x1xf32>
    %19 = arith.divf %17, %18 : vector<16x1xf32>
    %20 = vector.broadcast %12 : vector<16x1xf32> to vector<16x32xf32>
    %21 = arith.subf %8, %20 : vector<16x32xf32>
    %cst_11 = arith.constant 9.99999974E-6 : f32
    %22 = vector.broadcast %cst_11 : f32 to vector<16x1xf32>
    %23 = arith.addf %19, %22 : vector<16x1xf32>
    %24 = math.rsqrt %23 : vector<16x1xf32>
    %25 = vector.broadcast %24 : vector<16x1xf32> to vector<16x32xf32>
    %26 = arith.mulf %21, %25 : vector<16x32xf32>
    %c0_12 = arith.constant 0 : index
    %c0_13 = arith.constant 0 : index
    %27 = vector.load %arg6[%c0_12, %c0_13] : memref<1x32xf32, #tpu.memory_space<vmem>>, vector<1x32xf32>
    %28 = vector.broadcast %27 : vector<1x32xf32> to vector<16x32xf32>
    %29 = arith.mulf %26, %28 : vector<16x32xf32>
    %c0_14 = arith.constant 0 : index
    %c0_15 = arith.constant 0 : index
    %30 = vector.load %arg7[%c0_14, %c0_15] : memref<1x32xf32, #tpu.memory_space<vmem>>, vector<1x32xf32>
    %31 = vector.broadcast %30 : vector<1x32xf32> to vector<16x32xf32>
    %32 = arith.addf %29, %31 : vector<16x32xf32>
    %33 = arith.truncf %32 : vector<16x32xf32> to vector<16x32xbf16>
    %c0_16 = arith.constant 0 : index
    %c0_17 = arith.constant 0 : index
    %34 = vector.load %arg8[%c0_16, %c0_17] : memref<16x32xbf16, #tpu.memory_space<vmem>>, vector<16x32xbf16>
    tpu.vector_store %arg8[%c0_16, %c0_17], %33 {strides = array<i32>} : memref<16x32xbf16, #tpu.memory_space<vmem>>, vector<16x32xbf16>,
    return
  }
  func.func @transform_0(%arg0: i32, %arg1: i32) -> (i32, i32) {
    %c0_i32 = arith.constant 0 : i32
    %c0_i32_0 = arith.constant 0 : i32
    return %arg0, %c0_i32 : i32, i32
  }
  func.func @transform_1(%arg0: i32, %arg1: i32) -> (i32, i32) {
    %c0_i32 = arith.constant 0 : i32
    %c0_i32_0 = arith.constant 0 : i32
    return %c0_i32, %arg1 : i32, i32
  }
  func.func @transform_2(%arg0: i32, %arg1: i32) -> (i32, i32) {
    %c0_i32 = arith.constant 0 : i32
    %c0_i32_0 = arith.constant 0 : i32
    return %c0_i32, %arg1 : i32, i32
  }
  func.func @transform_3(%arg0: i32, %arg1: i32) -> (i32, i32) {
    %c0_i32 = arith.constant 0 : i32
    return %arg0, %arg1 : i32, i32
  }
  func.func @transform_4(%arg0: i32, %arg1: i32) -> (i32, i32) {
    %c0_i32 = arith.constant 0 : i32
    %c0_i32_0 = arith.constant 0 : i32
    return %c0_i32, %arg1 : i32, i32
  }
  func.func @transform_5(%arg0: i32, %arg1: i32) -> (i32, i32) {
    %c0_i32 = arith.constant 0 : i32
    %c0_i32_0 = arith.constant 0 : i32
    return %c0_i32, %arg1 : i32, i32
  }
  func.func @transform_6(%arg0: i32, %arg1: i32) -> (i32, i32) {
    %c0_i32 = arith.constant 0 : i32
    return %arg0, %arg1 : i32, i32
  }
}

module attributes {stable_mosaic.version = 11 : i64} {
  func.func @_mha_kernel(%arg0: i32, %arg1: memref<1x1x1xi32, #tpu.memory_space<vmem>>, %arg2: memref<1x8x96xbf16, #tpu.memory_space<vmem>>, %arg3: memref<1x8x32xbf16, #tpu.memory_space<vmem>>) attributes {dimension_semantics = [#tpu.dimension_semantics<parallel>], iteration_bounds = array<i64: 2>, scalar_prefetch = 0 : i64, scratch_operands = 0 : i64, tpu.core_type = #tpu.core_type<tc>, window_params = [{transform_indices = @transform_0, window_bounds = array<i64: 1, 1, 1>}, {transform_indices = @transform_1, window_bounds = array<i64: 1, 8, 96>}, {transform_indices = @transform_2, window_bounds = array<i64: 1, 8, 32>}]} {
    %c0 = arith.constant 0 : index
    %c0_0 = arith.constant 0 : index
    %c0_1 = arith.constant 0 : index
    %0 = vector.load %arg2[%c0, %c0_0, %c0_1] : memref<1x8x96xbf16, #tpu.memory_space<vmem>>, vector<1x8x96xbf16>
    %1 = tpu.iota {dimensions = array<i32: 0>} : vector<8x8xi32>
    %2 = tpu.iota {dimensions = array<i32: 1>} : vector<8x8xi32>
    %c0_2 = arith.constant 0 : index
    %c0_3 = arith.constant 0 : index
    %c0_4 = arith.constant 0 : index
    %3 = vector.load %arg1[%c0_2, %c0_3, %c0_4] : memref<1x1x1xi32, #tpu.memory_space<vmem>>, vector<1x1x1xi32>
    %4 = arith.cmpi sle, %2, %1 : vector<8x8xi32>
    %5 = vector.shape_cast %4 : vector<8x8xi1> to vector<1x8x8xi1>
    %6 = vector.shape_cast %2 : vector<8x8xi32> to vector<1x8x8xi32>
    %7 = vector.broadcast %3 : vector<1x1x1xi32> to vector<1x8x8xi32>
    %8 = arith.cmpi slt, %6, %7 : vector<1x8x8xi32>
    %9 = arith.andi %5, %8 : vector<1x8x8xi1>
    %10 = vector.extract_strided_slice %0 {offsets = [0, 0, 0], sizes = [1, 8, 8], strides = [1, 1, 1]} : vector<1x8x96xbf16> to vector<1x8x8xbf16>
    %11 = vector.extract_strided_slice %0 {offsets = [0, 0, 32], sizes = [1, 8, 8], strides = [1, 1, 1]} : vector<1x8x96xbf16> to vector<1x8x8xbf16>
    %12 = vector.extract_strided_slice %0 {offsets = [0, 0, 64], sizes = [1, 8, 8], strides = [1, 1, 1]} : vector<1x8x96xbf16> to vector<1x8x8xbf16>
    "tpu.trace_start"() <{level = 10 : i32, message = "bqd,bkd->bqk"}> : () -> ()
    %cst = arith.constant dense<0.000000e+00> : vector<1x8x8xf32>
    %13 = tpu.matmul %10, %11, %cst {dimension_numbers = #tpu.dot_dimension_numbers<[2], [2], [1], [1], [0, 0, 0, 1, 1, 1], [0], [0]>} : vector<1x8x8xbf16>, vector<1x8x8xbf16>, vector<1x8x8xf32> -> vector<1x8x8xf32>
    %cst_5 = arith.constant -1.000000e+30 : f32
    "tpu.trace_stop"() : () -> ()
    %14 = vector.broadcast %cst_5 : f32 to vector<1x8x8xf32>
    %15 = arith.select %9, %13, %14 : vector<1x8x8xi1>, vector<1x8x8xf32>
    %cst_6 = arith.constant dense<0xFF800000> : vector<1x8xf32>
    %16 = vector.multi_reduction <maximumf>, %15, %cst_6 [2] : vector<1x8x8xf32> to vector<1x8xf32>
    %17 = vector.shape_cast %16 : vector<1x8xf32> to vector<1x8x1xf32>
    %18 = vector.broadcast %17 : vector<1x8x1xf32> to vector<1x8x8xf32>
    %19 = arith.subf %15, %18 : vector<1x8x8xf32>
    %20 = math.exp %19 : vector<1x8x8xf32>
    %cst_7 = arith.constant dense<0.000000e+00> : vector<1x8xf32>
    %21 = vector.multi_reduction <add>, %20, %cst_7 [2] : vector<1x8x8xf32> to vector<1x8xf32>
    %22 = vector.shape_cast %21 : vector<1x8xf32> to vector<1x8x1xf32>
    %23 = arith.truncf %20 : vector<1x8x8xf32> to vector<1x8x8xbf16>
    "tpu.trace_start"() <{level = 10 : i32, message = "bqk,bkd->bqd"}> : () -> ()
    %cst_8 = arith.constant dense<0.000000e+00> : vector<1x8x8xf32>
    %24 = tpu.matmul %23, %12, %cst_8 {dimension_numbers = #tpu.dot_dimension_numbers<[2], [1], [1], [2], [0, 0, 0, 1, 1, 2], [0], [0]>} : vector<1x8x8xbf16>, vector<1x8x8xbf16>, vector<1x8x8xf32> -> vector<1x8x8xf32>
    "tpu.trace_stop"() : () -> ()
    %25 = tpu.reciprocal %22 {approx = true} : vector<1x8x1xf32> -> vector<1x8x1xf32>
    %26 = vector.broadcast %25 : vector<1x8x1xf32> to vector<1x8x8xf32>
    %27 = arith.mulf %24, %26 : vector<1x8x8xf32>
    %28 = vector.extract_strided_slice %0 {offsets = [0, 0, 8], sizes = [1, 8, 8], strides = [1, 1, 1]} : vector<1x8x96xbf16> to vector<1x8x8xbf16>
    %29 = vector.extract_strided_slice %0 {offsets = [0, 0, 40], sizes = [1, 8, 8], strides = [1, 1, 1]} : vector<1x8x96xbf16> to vector<1x8x8xbf16>
    %30 = vector.extract_strided_slice %0 {offsets = [0, 0, 72], sizes = [1, 8, 8], strides = [1, 1, 1]} : vector<1x8x96xbf16> to vector<1x8x8xbf16>
    "tpu.trace_start"() <{level = 10 : i32, message = "bqd,bkd->bqk"}> : () -> ()
    %cst_9 = arith.constant dense<0.000000e+00> : vector<1x8x8xf32>
    %31 = tpu.matmul %28, %29, %cst_9 {dimension_numbers = #tpu.dot_dimension_numbers<[2], [2], [1], [1], [0, 0, 0, 1, 1, 1], [0], [0]>} : vector<1x8x8xbf16>, vector<1x8x8xbf16>, vector<1x8x8xf32> -> vector<1x8x8xf32>
    %cst_10 = arith.constant -1.000000e+30 : f32
    "tpu.trace_stop"() : () -> ()
    %32 = vector.broadcast %cst_10 : f32 to vector<1x8x8xf32>
    %33 = arith.select %9, %31, %32 : vector<1x8x8xi1>, vector<1x8x8xf32>
    %cst_11 = arith.constant dense<0xFF800000> : vector<1x8xf32>
    %34 = vector.multi_reduction <maximumf>, %33, %cst_11 [2] : vector<1x8x8xf32> to vector<1x8xf32>
    %35 = vector.shape_cast %34 : vector<1x8xf32> to vector<1x8x1xf32>
    %36 = vector.broadcast %35 : vector<1x8x1xf32> to vector<1x8x8xf32>
    %37 = arith.subf %33, %36 : vector<1x8x8xf32>
    %38 = math.exp %37 : vector<1x8x8xf32>
    %cst_12 = arith.constant dense<0.000000e+00> : vector<1x8xf32>
    %39 = vector.multi_reduction <add>, %38, %cst_12 [2] : vector<1x8x8xf32> to vector<1x8xf32>
    %40 = vector.shape_cast %39 : vector<1x8xf32> to vector<1x8x1xf32>
    %41 = arith.truncf %38 : vector<1x8x8xf32> to vector<1x8x8xbf16>
    "tpu.trace_start"() <{level = 10 : i32, message = "bqk,bkd->bqd"}> : () -> ()
    %cst_13 = arith.constant dense<0.000000e+00> : vector<1x8x8xf32>
    %42 = tpu.matmul %41, %30, %cst_13 {dimension_numbers = #tpu.dot_dimension_numbers<[2], [1], [1], [2], [0, 0, 0, 1, 1, 2], [0], [0]>} : vector<1x8x8xbf16>, vector<1x8x8xbf16>, vector<1x8x8xf32> -> vector<1x8x8xf32>
    "tpu.trace_stop"() : () -> ()
    %43 = tpu.reciprocal %40 {approx = true} : vector<1x8x1xf32> -> vector<1x8x1xf32>
    %44 = vector.broadcast %43 : vector<1x8x1xf32> to vector<1x8x8xf32>
    %45 = arith.mulf %42, %44 : vector<1x8x8xf32>
    %46 = vector.extract_strided_slice %0 {offsets = [0, 0, 16], sizes = [1, 8, 8], strides = [1, 1, 1]} : vector<1x8x96xbf16> to vector<1x8x8xbf16>
    %47 = vector.extract_strided_slice %0 {offsets = [0, 0, 48], sizes = [1, 8, 8], strides = [1, 1, 1]} : vector<1x8x96xbf16> to vector<1x8x8xbf16>
    %48 = vector.extract_strided_slice %0 {offsets = [0, 0, 80], sizes = [1, 8, 8], strides = [1, 1, 1]} : vector<1x8x96xbf16> to vector<1x8x8xbf16>
    "tpu.trace_start"() <{level = 10 : i32, message = "bqd,bkd->bqk"}> : () -> ()
    %cst_14 = arith.constant dense<0.000000e+00> : vector<1x8x8xf32>
    %49 = tpu.matmul %46, %47, %cst_14 {dimension_numbers = #tpu.dot_dimension_numbers<[2], [2], [1], [1], [0, 0, 0, 1, 1, 1], [0], [0]>} : vector<1x8x8xbf16>, vector<1x8x8xbf16>, vector<1x8x8xf32> -> vector<1x8x8xf32>
    %cst_15 = arith.constant -1.000000e+30 : f32
    "tpu.trace_stop"() : () -> ()
    %50 = vector.broadcast %cst_15 : f32 to vector<1x8x8xf32>
    %51 = arith.select %9, %49, %50 : vector<1x8x8xi1>, vector<1x8x8xf32>
    %cst_16 = arith.constant dense<0xFF800000> : vector<1x8xf32>
    %52 = vector.multi_reduction <maximumf>, %51, %cst_16 [2] : vector<1x8x8xf32> to vector<1x8xf32>
    %53 = vector.shape_cast %52 : vector<1x8xf32> to vector<1x8x1xf32>
    %54 = vector.broadcast %53 : vector<1x8x1xf32> to vector<1x8x8xf32>
    %55 = arith.subf %51, %54 : vector<1x8x8xf32>
    %56 = math.exp %55 : vector<1x8x8xf32>
    %cst_17 = arith.constant dense<0.000000e+00> : vector<1x8xf32>
    %57 = vector.multi_reduction <add>, %56, %cst_17 [2] : vector<1x8x8xf32> to vector<1x8xf32>
    %58 = vector.shape_cast %57 : vector<1x8xf32> to vector<1x8x1xf32>
    %59 = arith.truncf %56 : vector<1x8x8xf32> to vector<1x8x8xbf16>
    "tpu.trace_start"() <{level = 10 : i32, message = "bqk,bkd->bqd"}> : () -> ()
    %cst_18 = arith.constant dense<0.000000e+00> : vector<1x8x8xf32>
    %60 = tpu.matmul %59, %48, %cst_18 {dimension_numbers = #tpu.dot_dimension_numbers<[2], [1], [1], [2], [0, 0, 0, 1, 1, 2], [0], [0]>} : vector<1x8x8xbf16>, vector<1x8x8xbf16>, vector<1x8x8xf32> -> vector<1x8x8xf32>
    "tpu.trace_stop"() : () -> ()
    %61 = tpu.reciprocal %58 {approx = true} : vector<1x8x1xf32> -> vector<1x8x1xf32>
    %62 = vector.broadcast %61 : vector<1x8x1xf32> to vector<1x8x8xf32>
    %63 = arith.mulf %60, %62 : vector<1x8x8xf32>
    %64 = vector.extract_strided_slice %0 {offsets = [0, 0, 24], sizes = [1, 8, 8], strides = [1, 1, 1]} : vector<1x8x96xbf16> to vector<1x8x8xbf16>
    %65 = vector.extract_strided_slice %0 {offsets = [0, 0, 56], sizes = [1, 8, 8], strides = [1, 1, 1]} : vector<1x8x96xbf16> to vector<1x8x8xbf16>
    %66 = vector.extract_strided_slice %0 {offsets = [0, 0, 88], sizes = [1, 8, 8], strides = [1, 1, 1]} : vector<1x8x96xbf16> to vector<1x8x8xbf16>
    "tpu.trace_start"() <{level = 10 : i32, message = "bqd,bkd->bqk"}> : () -> ()
    %cst_19 = arith.constant dense<0.000000e+00> : vector<1x8x8xf32>
    %67 = tpu.matmul %64, %65, %cst_19 {dimension_numbers = #tpu.dot_dimension_numbers<[2], [2], [1], [1], [0, 0, 0, 1, 1, 1], [0], [0]>} : vector<1x8x8xbf16>, vector<1x8x8xbf16>, vector<1x8x8xf32> -> vector<1x8x8xf32>
    %cst_20 = arith.constant -1.000000e+30 : f32
    "tpu.trace_stop"() : () -> ()
    %68 = vector.broadcast %cst_20 : f32 to vector<1x8x8xf32>
    %69 = arith.select %9, %67, %68 : vector<1x8x8xi1>, vector<1x8x8xf32>
    %cst_21 = arith.constant dense<0xFF800000> : vector<1x8xf32>
    %70 = vector.multi_reduction <maximumf>, %69, %cst_21 [2] : vector<1x8x8xf32> to vector<1x8xf32>
    %71 = vector.shape_cast %70 : vector<1x8xf32> to vector<1x8x1xf32>
    %72 = vector.broadcast %71 : vector<1x8x1xf32> to vector<1x8x8xf32>
    %73 = arith.subf %69, %72 : vector<1x8x8xf32>
    %74 = math.exp %73 : vector<1x8x8xf32>
    %cst_22 = arith.constant dense<0.000000e+00> : vector<1x8xf32>
    %75 = vector.multi_reduction <add>, %74, %cst_22 [2] : vector<1x8x8xf32> to vector<1x8xf32>
    %76 = vector.shape_cast %75 : vector<1x8xf32> to vector<1x8x1xf32>
    %77 = arith.truncf %74 : vector<1x8x8xf32> to vector<1x8x8xbf16>
    "tpu.trace_start"() <{level = 10 : i32, message = "bqk,bkd->bqd"}> : () -> ()
    %cst_23 = arith.constant dense<0.000000e+00> : vector<1x8x8xf32>
    %78 = tpu.matmul %77, %66, %cst_23 {dimension_numbers = #tpu.dot_dimension_numbers<[2], [1], [1], [2], [0, 0, 0, 1, 1, 2], [0], [0]>} : vector<1x8x8xbf16>, vector<1x8x8xbf16>, vector<1x8x8xf32> -> vector<1x8x8xf32>
    "tpu.trace_stop"() : () -> ()
    %79 = tpu.reciprocal %76 {approx = true} : vector<1x8x1xf32> -> vector<1x8x1xf32>
    %80 = vector.broadcast %79 : vector<1x8x1xf32> to vector<1x8x8xf32>
    %81 = arith.mulf %78, %80 : vector<1x8x8xf32>
    %82 = tpu.concatenate %27, %45, %63, %81 in 2 : vector<1x8x8xf32>, vector<1x8x8xf32>, vector<1x8x8xf32>, vector<1x8x8xf32> -> vector<1x8x32xf32>
    %83 = arith.truncf %82 : vector<1x8x32xf32> to vector<1x8x32xbf16>
    %c0_24 = arith.constant 0 : index
    %c0_25 = arith.constant 0 : index
    %c0_26 = arith.constant 0 : index
    %84 = vector.load %arg3[%c0_24, %c0_25, %c0_26] : memref<1x8x32xbf16, #tpu.memory_space<vmem>>, vector<1x8x32xbf16>
    tpu.vector_store %arg3[%c0_24, %c0_25, %c0_26], %83 {strides = array<i32>} : memref<1x8x32xbf16, #tpu.memory_space<vmem>>, vector<1x8x32xbf16>,
    return
  }
  func.func @transform_0(%arg0: i32) -> (i32, i32, i32) {
    %c0_i32 = arith.constant 0 : i32
    %c0_i32_0 = arith.constant 0 : i32
    %c0_i32_1 = arith.constant 0 : i32
    return %arg0, %c0_i32, %c0_i32_0 : i32, i32, i32
  }
  func.func @transform_1(%arg0: i32) -> (i32, i32, i32) {
    %c0_i32 = arith.constant 0 : i32
    %c0_i32_0 = arith.constant 0 : i32
    %c0_i32_1 = arith.constant 0 : i32
    return %arg0, %c0_i32, %c0_i32_0 : i32, i32, i32
  }
  func.func @transform_2(%arg0: i32) -> (i32, i32, i32) {
    %c0_i32 = arith.constant 0 : i32
    %c0_i32_0 = arith.constant 0 : i32
    %c0_i32_1 = arith.constant 0 : i32
    return %arg0, %c0_i32, %c0_i32_0 : i32, i32, i32
  }
}

module attributes {stable_mosaic.version = 11 : i64} {
  func.func @_linear_kernel(%arg0: i32, %arg1: i32, %arg2: memref<16x32xbf16, #tpu.memory_space<vmem>>, %arg3: memref<32x32xbf16, #tpu.memory_space<vmem>>, %arg4: memref<1x32xf32, #tpu.memory_space<vmem>>, %arg5: memref<16x32xbf16, #tpu.memory_space<vmem>>) attributes {dimension_semantics = [#tpu.dimension_semantics<parallel>, #tpu.dimension_semantics<parallel>], iteration_bounds = array<i64: 1, 1>, scalar_prefetch = 0 : i64, scratch_operands = 0 : i64, tpu.core_type = #tpu.core_type<tc>, window_params = [{transform_indices = @transform_0, window_bounds = array<i64: 16, 32>}, {transform_indices = @transform_1, window_bounds = array<i64: 32, 32>}, {transform_indices = @transform_2, window_bounds = array<i64: 1, 32>}, {transform_indices = @transform_3, window_bounds = array<i64: 16, 32>}]} {
    %c0 = arith.constant 0 : index
    %c0_0 = arith.constant 0 : index
    %0 = vector.load %arg2[%c0, %c0_0] : memref<16x32xbf16, #tpu.memory_space<vmem>>, vector<16x32xbf16>
    %c0_1 = arith.constant 0 : index
    %c0_2 = arith.constant 0 : index
    %1 = vector.load %arg3[%c0_1, %c0_2] : memref<32x32xbf16, #tpu.memory_space<vmem>>, vector<32x32xbf16>
    %cst = arith.constant dense<0.000000e+00> : vector<16x32xf32>
    %2 = tpu.matmul %0, %1, %cst {dimension_numbers = #tpu.dot_dimension_numbers<[1], [0], [0], [1], [0, 0, 1, 1], [], []>} : vector<16x32xbf16>, vector<32x32xbf16>, vector<16x32xf32> -> vector<16x32xf32>
    %c0_3 = arith.constant 0 : index
    %c0_4 = arith.constant 0 : index
    %3 = vector.load %arg4[%c0_3, %c0_4] : memref<1x32xf32, #tpu.memory_space<vmem>>, vector<1x32xf32>
    %4 = vector.broadcast %3 : vector<1x32xf32> to vector<16x32xf32>
    %5 = arith.addf %2, %4 : vector<16x32xf32>
    %6 = arith.truncf %5 : vector<16x32xf32> to vector<16x32xbf16>
    %c0_5 = arith.constant 0 : index
    %c0_6 = arith.constant 0 : index
    %7 = vector.load %arg5[%c0_5, %c0_6] : memref<16x32xbf16, #tpu.memory_space<vmem>>, vector<16x32xbf16>
    tpu.vector_store %arg5[%c0_5, %c0_6], %6 {strides = array<i32>} : memref<16x32xbf16, #tpu.memory_space<vmem>>, vector<16x32xbf16>,
    return
  }
  func.func @transform_0(%arg0: i32, %arg1: i32) -> (i32, i32) {
    %c0_i32 = arith.constant 0 : i32
    %c0_i32_0 = arith.constant 0 : i32
    return %arg0, %c0_i32 : i32, i32
  }
  func.func @transform_1(%arg0: i32, %arg1: i32) -> (i32, i32) {
    %c0_i32 = arith.constant 0 : i32
    %c0_i32_0 = arith.constant 0 : i32
    return %c0_i32, %arg1 : i32, i32
  }
  func.func @transform_2(%arg0: i32, %arg1: i32) -> (i32, i32) {
    %c0_i32 = arith.constant 0 : i32
    %c0_i32_0 = arith.constant 0 : i32
    return %c0_i32, %arg1 : i32, i32
  }
  func.func @transform_3(%arg0: i32, %arg1: i32) -> (i32, i32) {
    %c0_i32 = arith.constant 0 : i32
    return %arg0, %arg1 : i32, i32
  }
}

module attributes {stable_mosaic.version = 11 : i64} {
  func.func @_linear_kernel(%arg0: i32, %arg1: i32, %arg2: memref<32x16xbf16, #tpu.memory_space<vmem>>, %arg3: memref<16x32xbf16, #tpu.memory_space<vmem>>, %arg4: memref<1x32xf32, #tpu.memory_space<vmem>>, %arg5: memref<32x32xbf16, #tpu.memory_space<vmem>>) attributes {dimension_semantics = [#tpu.dimension_semantics<parallel>, #tpu.dimension_semantics<parallel>], iteration_bounds = array<i64: 1, 1>, scalar_prefetch = 0 : i64, scratch_operands = 0 : i64, tpu.core_type = #tpu.core_type<tc>, window_params = [{transform_indices = @transform_0, window_bounds = array<i64: 32, 16>}, {transform_indices = @transform_1, window_bounds = array<i64: 16, 32>}, {transform_indices = @transform_2, window_bounds = array<i64: 1, 32>}, {transform_indices = @transform_3, window_bounds = array<i64: 32, 32>}]} {
    %c0 = arith.constant 0 : index
    %c0_0 = arith.constant 0 : index
    %0 = vector.load %arg2[%c0, %c0_0] : memref<32x16xbf16, #tpu.memory_space<vmem>>, vector<32x16xbf16>
    %c0_1 = arith.constant 0 : index
    %c0_2 = arith.constant 0 : index
    %1 = vector.load %arg3[%c0_1, %c0_2] : memref<16x32xbf16, #tpu.memory_space<vmem>>, vector<16x32xbf16>
    %cst = arith.constant dense<0.000000e+00> : vector<32x32xf32>
    %2 = tpu.matmul %0, %1, %cst {dimension_numbers = #tpu.dot_dimension_numbers<[1], [0], [0], [1], [0, 0, 1, 1], [], []>} : vector<32x16xbf16>, vector<16x32xbf16>, vector<32x32xf32> -> vector<32x32xf32>
    %c0_3 = arith.constant 0 : index
    %c0_4 = arith.constant 0 : index
    %3 = vector.load %arg4[%c0_3, %c0_4] : memref<1x32xf32, #tpu.memory_space<vmem>>, vector<1x32xf32>
    %4 = vector.broadcast %3 : vector<1x32xf32> to vector<32x32xf32>
    %5 = arith.addf %2, %4 : vector<32x32xf32>
    %6 = arith.truncf %5 : vector<32x32xf32> to vector<32x32xbf16>
    %c0_5 = arith.constant 0 : index
    %c0_6 = arith.constant 0 : index
    %7 = vector.load %arg5[%c0_5, %c0_6] : memref<32x32xbf16, #tpu.memory_space<vmem>>, vector<32x32xbf16>
    tpu.vector_store %arg5[%c0_5, %c0_6], %6 {strides = array<i32>} : memref<32x32xbf16, #tpu.memory_space<vmem>>, vector<32x32xbf16>,
    return
  }
  func.func @transform_0(%arg0: i32, %arg1: i32) -> (i32, i32) {
    %c0_i32 = arith.constant 0 : i32
    %c0_i32_0 = arith.constant 0 : i32
    return %arg0, %c0_i32 : i32, i32
  }
  func.func @transform_1(%arg0: i32, %arg1: i32) -> (i32, i32) {
    %c0_i32 = arith.constant 0 : i32
    %c0_i32_0 = arith.constant 0 : i32
    return %c0_i32, %arg1 : i32, i32
  }
  func.func @transform_2(%arg0: i32, %arg1: i32) -> (i32, i32) {
    %c0_i32 = arith.constant 0 : i32
    %c0_i32_0 = arith.constant 0 : i32
    return %c0_i32, %arg1 : i32, i32
  }
  func.func @transform_3(%arg0: i32, %arg1: i32) -> (i32, i32) {
    %c0_i32 = arith.constant 0 : i32
    return %arg0, %arg1 : i32, i32
  }
}

module attributes {stable_mosaic.version = 11 : i64} {
  func.func @_linear_kernel(%arg0: i32, %arg1: i32, %arg2: memref<32x32xbf16, #tpu.memory_space<vmem>>, %arg3: memref<32x64xbf16, #tpu.memory_space<vmem>>, %arg4: memref<1x64xf32, #tpu.memory_space<vmem>>, %arg5: memref<32x64xbf16, #tpu.memory_space<vmem>>) attributes {dimension_semantics = [#tpu.dimension_semantics<parallel>, #tpu.dimension_semantics<parallel>], iteration_bounds = array<i64: 1, 1>, scalar_prefetch = 0 : i64, scratch_operands = 0 : i64, tpu.core_type = #tpu.core_type<tc>, window_params = [{transform_indices = @transform_0, window_bounds = array<i64: 32, 32>}, {transform_indices = @transform_1, window_bounds = array<i64: 32, 64>}, {transform_indices = @transform_2, window_bounds = array<i64: 1, 64>}, {transform_indices = @transform_3, window_bounds = array<i64: 32, 64>}]} {
    %c0 = arith.constant 0 : index
    %c0_0 = arith.constant 0 : index
    %0 = vector.load %arg2[%c0, %c0_0] : memref<32x32xbf16, #tpu.memory_space<vmem>>, vector<32x32xbf16>
    %c0_1 = arith.constant 0 : index
    %c0_2 = arith.constant 0 : index
    %1 = vector.load %arg3[%c0_1, %c0_2] : memref<32x64xbf16, #tpu.memory_space<vmem>>, vector<32x64xbf16>
    %cst = arith.constant dense<0.000000e+00> : vector<32x64xf32>
    %2 = tpu.matmul %0, %1, %cst {dimension_numbers = #tpu.dot_dimension_numbers<[1], [0], [0], [1], [0, 0, 1, 1], [], []>} : vector<32x32xbf16>, vector<32x64xbf16>, vector<32x64xf32> -> vector<32x64xf32>
    %c0_3 = arith.constant 0 : index
    %c0_4 = arith.constant 0 : index
    %3 = vector.load %arg4[%c0_3, %c0_4] : memref<1x64xf32, #tpu.memory_space<vmem>>, vector<1x64xf32>
    %4 = vector.broadcast %3 : vector<1x64xf32> to vector<32x64xf32>
    %5 = arith.addf %2, %4 : vector<32x64xf32>
    %6 = arith.truncf %5 : vector<32x64xf32> to vector<32x64xbf16>
    %c0_5 = arith.constant 0 : index
    %c0_6 = arith.constant 0 : index
    %7 = vector.load %arg5[%c0_5, %c0_6] : memref<32x64xbf16, #tpu.memory_space<vmem>>, vector<32x64xbf16>
    tpu.vector_store %arg5[%c0_5, %c0_6], %6 {strides = array<i32>} : memref<32x64xbf16, #tpu.memory_space<vmem>>, vector<32x64xbf16>,
    return
  }
  func.func @transform_0(%arg0: i32, %arg1: i32) -> (i32, i32) {
    %c0_i32 = arith.constant 0 : i32
    %c0_i32_0 = arith.constant 0 : i32
    return %arg0, %c0_i32 : i32, i32
  }
  func.func @transform_1(%arg0: i32, %arg1: i32) -> (i32, i32) {
    %c0_i32 = arith.constant 0 : i32
    %c0_i32_0 = arith.constant 0 : i32
    return %c0_i32, %arg1 : i32, i32
  }
  func.func @transform_2(%arg0: i32, %arg1: i32) -> (i32, i32) {
    %c0_i32 = arith.constant 0 : i32
    %c0_i32_0 = arith.constant 0 : i32
    return %c0_i32, %arg1 : i32, i32
  }
  func.func @transform_3(%arg0: i32, %arg1: i32) -> (i32, i32) {
    %c0_i32 = arith.constant 0 : i32
    return %arg0, %arg1 : i32, i32
  }
}

module attributes {stable_mosaic.version = 11 : i64} {
  func.func @_mha_kernel(%arg0: i32, %arg1: memref<1x1x1xi32, #tpu.memory_space<vmem>>, %arg2: memref<1x8x32xbf16, #tpu.memory_space<vmem>>, %arg3: memref<1x16x64xbf16, #tpu.memory_space<vmem>>, %arg4: memref<1x8x32xbf16, #tpu.memory_space<vmem>>) attributes {dimension_semantics = [#tpu.dimension_semantics<parallel>], iteration_bounds = array<i64: 2>, scalar_prefetch = 0 : i64, scratch_operands = 0 : i64, tpu.core_type = #tpu.core_type<tc>, window_params = [{transform_indices = @transform_0, window_bounds = array<i64: 1, 1, 1>}, {transform_indices = @transform_1, window_bounds = array<i64: 1, 8, 32>}, {transform_indices = @transform_2, window_bounds = array<i64: 1, 16, 64>}, {transform_indices = @transform_3, window_bounds = array<i64: 1, 8, 32>}]} {
    %c0 = arith.constant 0 : index
    %c0_0 = arith.constant 0 : index
    %c0_1 = arith.constant 0 : index
    %0 = vector.load %arg2[%c0, %c0_0, %c0_1] : memref<1x8x32xbf16, #tpu.memory_space<vmem>>, vector<1x8x32xbf16>
    %c0_2 = arith.constant 0 : index
    %c0_3 = arith.constant 0 : index
    %c0_4 = arith.constant 0 : index
    %1 = vector.load %arg3[%c0_2, %c0_3, %c0_4] : memref<1x16x64xbf16, #tpu.memory_space<vmem>>, vector<1x16x64xbf16>
    %2 = vector.extract_strided_slice %0 {offsets = [0, 0, 0], sizes = [1, 8, 8], strides = [1, 1, 1]} : vector<1x8x32xbf16> to vector<1x8x8xbf16>
    %3 = vector.extract_strided_slice %1 {offsets = [0, 0, 0], sizes = [1, 16, 8], strides = [1, 1, 1]} : vector<1x16x64xbf16> to vector<1x16x8xbf16>
    %4 = vector.extract_strided_slice %1 {offsets = [0, 0, 32], sizes = [1, 16, 8], strides = [1, 1, 1]} : vector<1x16x64xbf16> to vector<1x16x8xbf16>
    "tpu.trace_start"() <{level = 10 : i32, message = "bqd,bkd->bqk"}> : () -> ()
    %cst = arith.constant dense<0.000000e+00> : vector<1x8x16xf32>
    %5 = tpu.matmul %2, %3, %cst {dimension_numbers = #tpu.dot_dimension_numbers<[2], [2], [1], [1], [0, 0, 0, 1, 1, 1], [0], [0]>} : vector<1x8x8xbf16>, vector<1x16x8xbf16>, vector<1x8x16xf32> -> vector<1x8x16xf32>
    "tpu.trace_stop"() : () -> ()
    %cst_5 = arith.constant dense<0xFF800000> : vector<1x8xf32>
    %6 = vector.multi_reduction <maximumf>, %5, %cst_5 [2] : vector<1x8x16xf32> to vector<1x8xf32>
    %7 = vector.shape_cast %6 : vector<1x8xf32> to vector<1x8x1xf32>
    %8 = vector.broadcast %7 : vector<1x8x1xf32> to vector<1x8x16xf32>
    %9 = arith.subf %5, %8 : vector<1x8x16xf32>
    %10 = math.exp %9 : vector<1x8x16xf32>
    %cst_6 = arith.constant dense<0.000000e+00> : vector<1x8xf32>
    %11 = vector.multi_reduction <add>, %10, %cst_6 [2] : vector<1x8x16xf32> to vector<1x8xf32>
    %12 = vector.shape_cast %11 : vector<1x8xf32> to vector<1x8x1xf32>
    %13 = arith.truncf %10 : vector<1x8x16xf32> to vector<1x8x16xbf16>
    "tpu.trace_start"() <{level = 10 : i32, message = "bqk,bkd->bqd"}> : () -> ()
    %cst_7 = arith.constant dense<0.000000e+00> : vector<1x8x8xf32>
    %14 = tpu.matmul %13, %4, %cst_7 {dimension_numbers = #tpu.dot_dimension_numbers<[2], [1], [1], [2], [0, 0, 0, 1, 1, 2], [0], [0]>} : vector<1x8x16xbf16>, vector<1x16x8xbf16>, vector<1x8x8xf32> -> vector<1x8x8xf32>
    "tpu.trace_stop"() : () -> ()
    %15 = tpu.reciprocal %12 {approx = true} : vector<1x8x1xf32> -> vector<1x8x1xf32>
    %16 = vector.broadcast %15 : vector<1x8x1xf32> to vector<1x8x8xf32>
    %17 = arith.mulf %14, %16 : vector<1x8x8xf32>
    %18 = vector.extract_strided_slice %0 {offsets = [0, 0, 8], sizes = [1, 8, 8], strides = [1, 1, 1]} : vector<1x8x32xbf16> to vector<1x8x8xbf16>
    %19 = vector.extract_strided_slice %1 {offsets = [0, 0, 8], sizes = [1, 16, 8], strides = [1, 1, 1]} : vector<1x16x64xbf16> to vector<1x16x8xbf16>
    %20 = vector.extract_strided_slice %1 {offsets = [0, 0, 40], sizes = [1, 16, 8], strides = [1, 1, 1]} : vector<1x16x64xbf16> to vector<1x16x8xbf16>
    "tpu.trace_start"() <{level = 10 : i32, message = "bqd,bkd->bqk"}> : () -> ()
    %cst_8 = arith.constant dense<0.000000e+00> : vector<1x8x16xf32>
    %21 = tpu.matmul %18, %19, %cst_8 {dimension_numbers = #tpu.dot_dimension_numbers<[2], [2], [1], [1], [0, 0, 0, 1, 1, 1], [0], [0]>} : vector<1x8x8xbf16>, vector<1x16x8xbf16>, vector<1x8x16xf32> -> vector<1x8x16xf32>
    "tpu.trace_stop"() : () -> ()
    %cst_9 = arith.constant dense<0xFF800000> : vector<1x8xf32>
    %22 = vector.multi_reduction <maximumf>, %21, %cst_9 [2] : vector<1x8x16xf32> to vector<1x8xf32>
    %23 = vector.shape_cast %22 : vector<1x8xf32> to vector<1x8x1xf32>
    %24 = vector.broadcast %23 : vector<1x8x1xf32> to vector<1x8x16xf32>
    %25 = arith.subf %21, %24 : vector<1x8x16xf32>
    %26 = math.exp %25 : vector<1x8x16xf32>
    %cst_10 = arith.constant dense<0.000000e+00> : vector<1x8xf32>
    %27 = vector.multi_reduction <add>, %26, %cst_10 [2] : vector<1x8x16xf32> to vector<1x8xf32>
    %28 = vector.shape_cast %27 : vector<1x8xf32> to vector<1x8x1xf32>
    %29 = arith.truncf %26 : vector<1x8x16xf32> to vector<1x8x16xbf16>
    "tpu.trace_start"() <{level = 10 : i32, message = "bqk,bkd->bqd"}> : () -> ()
    %cst_11 = arith.constant dense<0.000000e+00> : vector<1x8x8xf32>
    %30 = tpu.matmul %29, %20, %cst_11 {dimension_numbers = #tpu.dot_dimension_numbers<[2], [1], [1], [2], [0, 0, 0, 1, 1, 2], [0], [0]>} : vector<1x8x16xbf16>, vector<1x16x8xbf16>, vector<1x8x8xf32> -> vector<1x8x8xf32>
    "tpu.trace_stop"() : () -> ()
    %31 = tpu.reciprocal %28 {approx = true} : vector<1x8x1xf32> -> vector<1x8x1xf32>
    %32 = vector.broadcast %31 : vector<1x8x1xf32> to vector<1x8x8xf32>
    %33 = arith.mulf %30, %32 : vector<1x8x8xf32>
    %34 = vector.extract_strided_slice %0 {offsets = [0, 0, 16], sizes = [1, 8, 8], strides = [1, 1, 1]} : vector<1x8x32xbf16> to vector<1x8x8xbf16>
    %35 = vector.extract_strided_slice %1 {offsets = [0, 0, 16], sizes = [1, 16, 8], strides = [1, 1, 1]} : vector<1x16x64xbf16> to vector<1x16x8xbf16>
    %36 = vector.extract_strided_slice %1 {offsets = [0, 0, 48], sizes = [1, 16, 8], strides = [1, 1, 1]} : vector<1x16x64xbf16> to vector<1x16x8xbf16>
    "tpu.trace_start"() <{level = 10 : i32, message = "bqd,bkd->bqk"}> : () -> ()
    %cst_12 = arith.constant dense<0.000000e+00> : vector<1x8x16xf32>
    %37 = tpu.matmul %34, %35, %cst_12 {dimension_numbers = #tpu.dot_dimension_numbers<[2], [2], [1], [1], [0, 0, 0, 1, 1, 1], [0], [0]>} : vector<1x8x8xbf16>, vector<1x16x8xbf16>, vector<1x8x16xf32> -> vector<1x8x16xf32>
    "tpu.trace_stop"() : () -> ()
    %cst_13 = arith.constant dense<0xFF800000> : vector<1x8xf32>
    %38 = vector.multi_reduction <maximumf>, %37, %cst_13 [2] : vector<1x8x16xf32> to vector<1x8xf32>
    %39 = vector.shape_cast %38 : vector<1x8xf32> to vector<1x8x1xf32>
    %40 = vector.broadcast %39 : vector<1x8x1xf32> to vector<1x8x16xf32>
    %41 = arith.subf %37, %40 : vector<1x8x16xf32>
    %42 = math.exp %41 : vector<1x8x16xf32>
    %cst_14 = arith.constant dense<0.000000e+00> : vector<1x8xf32>
    %43 = vector.multi_reduction <add>, %42, %cst_14 [2] : vector<1x8x16xf32> to vector<1x8xf32>
    %44 = vector.shape_cast %43 : vector<1x8xf32> to vector<1x8x1xf32>
    %45 = arith.truncf %42 : vector<1x8x16xf32> to vector<1x8x16xbf16>
    "tpu.trace_start"() <{level = 10 : i32, message = "bqk,bkd->bqd"}> : () -> ()
    %cst_15 = arith.constant dense<0.000000e+00> : vector<1x8x8xf32>
    %46 = tpu.matmul %45, %36, %cst_15 {dimension_numbers = #tpu.dot_dimension_numbers<[2], [1], [1], [2], [0, 0, 0, 1, 1, 2], [0], [0]>} : vector<1x8x16xbf16>, vector<1x16x8xbf16>, vector<1x8x8xf32> -> vector<1x8x8xf32>
    "tpu.trace_stop"() : () -> ()
    %47 = tpu.reciprocal %44 {approx = true} : vector<1x8x1xf32> -> vector<1x8x1xf32>
    %48 = vector.broadcast %47 : vector<1x8x1xf32> to vector<1x8x8xf32>
    %49 = arith.mulf %46, %48 : vector<1x8x8xf32>
    %50 = vector.extract_strided_slice %0 {offsets = [0, 0, 24], sizes = [1, 8, 8], strides = [1, 1, 1]} : vector<1x8x32xbf16> to vector<1x8x8xbf16>
    %51 = vector.extract_strided_slice %1 {offsets = [0, 0, 24], sizes = [1, 16, 8], strides = [1, 1, 1]} : vector<1x16x64xbf16> to vector<1x16x8xbf16>
    %52 = vector.extract_strided_slice %1 {offsets = [0, 0, 56], sizes = [1, 16, 8], strides = [1, 1, 1]} : vector<1x16x64xbf16> to vector<1x16x8xbf16>
    "tpu.trace_start"() <{level = 10 : i32, message = "bqd,bkd->bqk"}> : () -> ()
    %cst_16 = arith.constant dense<0.000000e+00> : vector<1x8x16xf32>
    %53 = tpu.matmul %50, %51, %cst_16 {dimension_numbers = #tpu.dot_dimension_numbers<[2], [2], [1], [1], [0, 0, 0, 1, 1, 1], [0], [0]>} : vector<1x8x8xbf16>, vector<1x16x8xbf16>, vector<1x8x16xf32> -> vector<1x8x16xf32>
    "tpu.trace_stop"() : () -> ()
    %cst_17 = arith.constant dense<0xFF800000> : vector<1x8xf32>
    %54 = vector.multi_reduction <maximumf>, %53, %cst_17 [2] : vector<1x8x16xf32> to vector<1x8xf32>
    %55 = vector.shape_cast %54 : vector<1x8xf32> to vector<1x8x1xf32>
    %56 = vector.broadcast %55 : vector<1x8x1xf32> to vector<1x8x16xf32>
    %57 = arith.subf %53, %56 : vector<1x8x16xf32>
    %58 = math.exp %57 : vector<1x8x16xf32>
    %cst_18 = arith.constant dense<0.000000e+00> : vector<1x8xf32>
    %59 = vector.multi_reduction <add>, %58, %cst_18 [2] : vector<1x8x16xf32> to vector<1x8xf32>
    %60 = vector.shape_cast %59 : vector<1x8xf32> to vector<1x8x1xf32>
    %61 = arith.truncf %58 : vector<1x8x16xf32> to vector<1x8x16xbf16>
    "tpu.trace_start"() <{level = 10 : i32, message = "bqk,bkd->bqd"}> : () -> ()
    %cst_19 = arith.constant dense<0.000000e+00> : vector<1x8x8xf32>
    %62 = tpu.matmul %61, %52, %cst_19 {dimension_numbers = #tpu.dot_dimension_numbers<[2], [1], [1], [2], [0, 0, 0, 1, 1, 2], [0], [0]>} : vector<1x8x16xbf16>, vector<1x16x8xbf16>, vector<1x8x8xf32> -> vector<1x8x8xf32>
    "tpu.trace_stop"() : () -> ()
    %63 = tpu.reciprocal %60 {approx = true} : vector<1x8x1xf32> -> vector<1x8x1xf32>
    %64 = vector.broadcast %63 : vector<1x8x1xf32> to vector<1x8x8xf32>
    %65 = arith.mulf %62, %64 : vector<1x8x8xf32>
    %66 = tpu.concatenate %17, %33, %49, %65 in 2 : vector<1x8x8xf32>, vector<1x8x8xf32>, vector<1x8x8xf32>, vector<1x8x8xf32> -> vector<1x8x32xf32>
    %67 = arith.truncf %66 : vector<1x8x32xf32> to vector<1x8x32xbf16>
    %c0_20 = arith.constant 0 : index
    %c0_21 = arith.constant 0 : index
    %c0_22 = arith.constant 0 : index
    %68 = vector.load %arg4[%c0_20, %c0_21, %c0_22] : memref<1x8x32xbf16, #tpu.memory_space<vmem>>, vector<1x8x32xbf16>
    tpu.vector_store %arg4[%c0_20, %c0_21, %c0_22], %67 {strides = array<i32>} : memref<1x8x32xbf16, #tpu.memory_space<vmem>>, vector<1x8x32xbf16>,
    return
  }
  func.func @transform_0(%arg0: i32) -> (i32, i32, i32) {
    %c0_i32 = arith.constant 0 : i32
    %c0_i32_0 = arith.constant 0 : i32
    %c0_i32_1 = arith.constant 0 : i32
    return %arg0, %c0_i32, %c0_i32_0 : i32, i32, i32
  }
  func.func @transform_1(%arg0: i32) -> (i32, i32, i32) {
    %c0_i32 = arith.constant 0 : i32
    %c0_i32_0 = arith.constant 0 : i32
    %c0_i32_1 = arith.constant 0 : i32
    return %arg0, %c0_i32, %c0_i32_0 : i32, i32, i32
  }
  func.func @transform_2(%arg0: i32) -> (i32, i32, i32) {
    %c0_i32 = arith.constant 0 : i32
    %c0_i32_0 = arith.constant 0 : i32
    %c0_i32_1 = arith.constant 0 : i32
    return %arg0, %c0_i32, %c0_i32_0 : i32, i32, i32
  }
  func.func @transform_3(%arg0: i32) -> (i32, i32, i32) {
    %c0_i32 = arith.constant 0 : i32
    %c0_i32_0 = arith.constant 0 : i32
    %c0_i32_1 = arith.constant 0 : i32
    return %arg0, %c0_i32, %c0_i32_0 : i32, i32, i32
  }
}

module attributes {stable_mosaic.version = 11 : i64} {
  func.func @_linear_kernel(%arg0: i32, %arg1: i32, %arg2: memref<16x64xbf16, #tpu.memory_space<vmem>>, %arg3: memref<64x32xbf16, #tpu.memory_space<vmem>>, %arg4: memref<1x32xf32, #tpu.memory_space<vmem>>, %arg5: memref<16x32xbf16, #tpu.memory_space<vmem>>, %arg6: memref<1x32xf32, #tpu.memory_space<vmem>>, %arg7: memref<1x32xf32, #tpu.memory_space<vmem>>, %arg8: memref<16x32xbf16, #tpu.memory_space<vmem>>) attributes {dimension_semantics = [#tpu.dimension_semantics<parallel>, #tpu.dimension_semantics<parallel>], iteration_bounds = array<i64: 1, 1>, scalar_prefetch = 0 : i64, scratch_operands = 0 : i64, tpu.core_type = #tpu.core_type<tc>, window_params = [{transform_indices = @transform_0, window_bounds = array<i64: 16, 64>}, {transform_indices = @transform_1, window_bounds = array<i64: 64, 32>}, {transform_indices = @transform_2, window_bounds = array<i64: 1, 32>}, {transform_indices = @transform_3, window_bounds = array<i64: 16, 32>}, {transform_indices = @transform_4, window_bounds = array<i64: 1, 32>}, {transform_indices = @transform_5, window_bounds = array<i64: 1, 32>}, {transform_indices = @transform_6, window_bounds = array<i64: 16, 32>}]} {
    %c0 = arith.constant 0 : index
    %c0_0 = arith.constant 0 : index
    %0 = vector.load %arg2[%c0, %c0_0] : memref<16x64xbf16, #tpu.memory_space<vmem>>, vector<16x64xbf16>
    %c0_1 = arith.constant 0 : index
    %c0_2 = arith.constant 0 : index
    %1 = vector.load %arg3[%c0_1, %c0_2] : memref<64x32xbf16, #tpu.memory_space<vmem>>, vector<64x32xbf16>
    %cst = arith.constant dense<0.000000e+00> : vector<16x32xf32>
    %2 = tpu.matmul %0, %1, %cst {dimension_numbers = #tpu.dot_dimension_numbers<[1], [0], [0], [1], [0, 0, 1, 1], [], []>} : vector<16x64xbf16>, vector<64x32xbf16>, vector<16x32xf32> -> vector<16x32xf32>
    %c0_3 = arith.constant 0 : index
    %c0_4 = arith.constant 0 : index
    %3 = vector.load %arg4[%c0_3, %c0_4] : memref<1x32xf32, #tpu.memory_space<vmem>>, vector<1x32xf32>
    %4 = vector.broadcast %3 : vector<1x32xf32> to vector<16x32xf32>
    %5 = arith.addf %2, %4 : vector<16x32xf32>
    %c0_5 = arith.constant 0 : index
    %c0_6 = arith.constant 0 : index
    %6 = vector.load %arg5[%c0_5, %c0_6] : memref<16x32xbf16, #tpu.memory_space<vmem>>, vector<16x32xbf16>
    %7 = arith.extf %6 : vector<16x32xbf16> to vector<16x32xf32>
    %8 = arith.addf %5, %7 : vector<16x32xf32>
    %cst_7 = arith.constant dense<0.000000e+00> : vector<16xf32>
    %9 = vector.multi_reduction <add>, %8, %cst_7 [1] : vector<16x32xf32> to vector<16xf32>
    %10 = vector.shape_cast %9 : vector<16xf32> to vector<16x1xf32>
    %cst_8 = arith.constant 3.200000e+01 : f32
    %11 = vector.broadcast %cst_8 : f32 to vector<16x1xf32>
    %12 = arith.divf %10, %11 : vector<16x1xf32>
    %13 = vector.broadcast %12 : vector<16x1xf32> to vector<16x32xf32>
    %14 = arith.subf %8, %13 : vector<16x32xf32>
    %15 = arith.mulf %14, %14 : vector<16x32xf32>
    %cst_9 = arith.constant dense<0.000000e+00> : vector<16xf32>
    %16 = vector.multi_reduction <add>, %15, %cst_9 [1] : vector<16x32xf32> to vector<16xf32>
    %17 = vector.shape_cast %16 : vector<16xf32> to vector<16x1xf32>
    %cst_10 = arith.constant 3.200000e+01 : f32
    %18 = vector.broadcast %cst_10 : f32 to vector<16x1xf32>
    %19 = arith.divf %17, %18 : vector<16x1xf32>
    %20 = vector.broadcast %12 : vector<16x1xf32> to vector<16x32xf32>
    %21 = arith.subf %8, %20 : vector<16x32xf32>
    %cst_11 = arith.constant 9.99999974E-6 : f32
    %22 = vector.broadcast %cst_11 : f32 to vector<16x1xf32>
    %23 = arith.addf %19, %22 : vector<16x1xf32>
    %24 = math.rsqrt %23 : vector<16x1xf32>
    %25 = vector.broadcast %24 : vector<16x1xf32> to vector<16x32xf32>
    %26 = arith.mulf %21, %25 : vector<16x32xf32>
    %c0_12 = arith.constant 0 : index
    %c0_13 = arith.constant 0 : index
    %27 = vector.load %arg6[%c0_12, %c0_13] : memref<1x32xf32, #tpu.memory_space<vmem>>, vector<1x32xf32>
    %28 = vector.broadcast %27 : vector<1x32xf32> to vector<16x32xf32>
    %29 = arith.mulf %26, %28 : vector<16x32xf32>
    %c0_14 = arith.constant 0 : index
    %c0_15 = arith.constant 0 : index
    %30 = vector.load %arg7[%c0_14, %c0_15] : memref<1x32xf32, #tpu.memory_space<vmem>>, vector<1x32xf32>
    %31 = vector.broadcast %30 : vector<1x32xf32> to vector<16x32xf32>
    %32 = arith.addf %29, %31 : vector<16x32xf32>
    %33 = arith.truncf %32 : vector<16x32xf32> to vector<16x32xbf16>
    %c0_16 = arith.constant 0 : index
    %c0_17 = arith.constant 0 : index
    %34 = vector.load %arg8[%c0_16, %c0_17] : memref<16x32xbf16, #tpu.memory_space<vmem>>, vector<16x32xbf16>
    tpu.vector_store %arg8[%c0_16, %c0_17], %33 {strides = array<i32>} : memref<16x32xbf16, #tpu.memory_space<vmem>>, vector<16x32xbf16>,
    return
  }
  func.func @transform_0(%arg0: i32, %arg1: i32) -> (i32, i32) {
    %c0_i32 = arith.constant 0 : i32
    %c0_i32_0 = arith.constant 0 : i32
    return %arg0, %c0_i32 : i32, i32
  }
  func.func @transform_1(%arg0: i32, %arg1: i32) -> (i32, i32) {
    %c0_i32 = arith.constant 0 : i32
    %c0_i32_0 = arith.constant 0 : i32
    return %c0_i32, %arg1 : i32, i32
  }
  func.func @transform_2(%arg0: i32, %arg1: i32) -> (i32, i32) {
    %c0_i32 = arith.constant 0 : i32
    %c0_i32_0 = arith.constant 0 : i32
    return %c0_i32, %arg1 : i32, i32
  }
  func.func @transform_3(%arg0: i32, %arg1: i32) -> (i32, i32) {
    %c0_i32 = arith.constant 0 : i32
    return %arg0, %arg1 : i32, i32
  }
  func.func @transform_4(%arg0: i32, %arg1: i32) -> (i32, i32) {
    %c0_i32 = arith.constant 0 : i32
    %c0_i32_0 = arith.constant 0 : i32
    return %c0_i32, %arg1 : i32, i32
  }
  func.func @transform_5(%arg0: i32, %arg1: i32) -> (i32, i32) {
    %c0_i32 = arith.constant 0 : i32
    %c0_i32_0 = arith.constant 0 : i32
    return %c0_i32, %arg1 : i32, i32
  }
  func.func @transform_6(%arg0: i32, %arg1: i32) -> (i32, i32) {
    %c0_i32 = arith.constant 0 : i32
    return %arg0, %arg1 : i32, i32
  }
}

module attributes {stable_mosaic.version = 11 : i64} {
  func.func @_linear_kernel(%arg0: i32, %arg1: i32, %arg2: memref<16x32xbf16, #tpu.memory_space<vmem>>, %arg3: memref<32x48xbf16, #tpu.memory_space<vmem>>, %arg4: memref<1x48xf32, #tpu.memory_space<vmem>>, %arg5: memref<16x48xf32, #tpu.memory_space<vmem>>) attributes {dimension_semantics = [#tpu.dimension_semantics<parallel>, #tpu.dimension_semantics<parallel>], iteration_bounds = array<i64: 1, 1>, scalar_prefetch = 0 : i64, scratch_operands = 0 : i64, tpu.core_type = #tpu.core_type<tc>, window_params = [{transform_indices = @transform_0, window_bounds = array<i64: 16, 32>}, {transform_indices = @transform_1, window_bounds = array<i64: 32, 48>}, {transform_indices = @transform_2, window_bounds = array<i64: 1, 48>}, {transform_indices = @transform_3, window_bounds = array<i64: 16, 48>}]} {
    %c0 = arith.constant 0 : index
    %c0_0 = arith.constant 0 : index
    %0 = vector.load %arg2[%c0, %c0_0] : memref<16x32xbf16, #tpu.memory_space<vmem>>, vector<16x32xbf16>
    %c0_1 = arith.constant 0 : index
    %c0_2 = arith.constant 0 : index
    %1 = vector.load %arg3[%c0_1, %c0_2] : memref<32x48xbf16, #tpu.memory_space<vmem>>, vector<32x48xbf16>
    %cst = arith.constant dense<0.000000e+00> : vector<16x48xf32>
    %2 = tpu.matmul %0, %1, %cst {dimension_numbers = #tpu.dot_dimension_numbers<[1], [0], [0], [1], [0, 0, 1, 1], [], []>} : vector<16x32xbf16>, vector<32x48xbf16>, vector<16x48xf32> -> vector<16x48xf32>
    %c0_3 = arith.constant 0 : index
    %c0_4 = arith.constant 0 : index
    %3 = vector.load %arg4[%c0_3, %c0_4] : memref<1x48xf32, #tpu.memory_space<vmem>>, vector<1x48xf32>
    %4 = vector.broadcast %3 : vector<1x48xf32> to vector<16x48xf32>
    %5 = arith.addf %2, %4 : vector<16x48xf32>
    %c0_5 = arith.constant 0 : index
    %c0_6 = arith.constant 0 : index
    %6 = vector.load %arg5[%c0_5, %c0_6] : memref<16x48xf32, #tpu.memory_space<vmem>>, vector<16x48xf32>
    tpu.vector_store %arg5[%c0_5, %c0_6], %5 {strides = array<i32>} : memref<16x48xf32, #tpu.memory_space<vmem>>, vector<16x48xf32>,
    return
  }
  func.func @transform_0(%arg0: i32, %arg1: i32) -> (i32, i32) {
    %c0_i32 = arith.constant 0 : i32
    %c0_i32_0 = arith.constant 0 : i32
    return %arg0, %c0_i32 : i32, i32
  }
  func.func @transform_1(%arg0: i32, %arg1: i32) -> (i32, i32) {
    %c0_i32 = arith.constant 0 : i32
    %c0_i32_0 = arith.constant 0 : i32
    return %c0_i32, %arg1 : i32, i32
  }
  func.func @transform_2(%arg0: i32, %arg1: i32) -> (i32, i32) {
    %c0_i32 = arith.constant 0 : i32
    %c0_i32_0 = arith.constant 0 : i32
    return %c0_i32, %arg1 : i32, i32
  }
  func.func @transform_3(%arg0: i32, %arg1: i32) -> (i32, i32) {
    %c0_i32 = arith.constant 0 : i32
    return %arg0, %arg1 : i32, i32
  }
}

module attributes {stable_mosaic.version = 11 : i64} {
  func.func @_linear_kernel(%arg0: i32, %arg1: i32, %arg2: memref<16x32xbf16, #tpu.memory_space<vmem>>, %arg3: memref<32x64xbf16, #tpu.memory_space<vmem>>, %arg4: memref<1x64xf32, #tpu.memory_space<vmem>>, %arg5: memref<16x64xbf16, #tpu.memory_space<vmem>>) attributes {dimension_semantics = [#tpu.dimension_semantics<parallel>, #tpu.dimension_semantics<parallel>], iteration_bounds = array<i64: 1, 1>, scalar_prefetch = 0 : i64, scratch_operands = 0 : i64, tpu.core_type = #tpu.core_type<tc>, window_params = [{transform_indices = @transform_0, window_bounds = array<i64: 16, 32>}, {transform_indices = @transform_1, window_bounds = array<i64: 32, 64>}, {transform_indices = @transform_2, window_bounds = array<i64: 1, 64>}, {transform_indices = @transform_3, window_bounds = array<i64: 16, 64>}]} {
    %c0 = arith.constant 0 : index
    %c0_0 = arith.constant 0 : index
    %0 = vector.load %arg2[%c0, %c0_0] : memref<16x32xbf16, #tpu.memory_space<vmem>>, vector<16x32xbf16>
    %c0_1 = arith.constant 0 : index
    %c0_2 = arith.constant 0 : index
    %1 = vector.load %arg3[%c0_1, %c0_2] : memref<32x64xbf16, #tpu.memory_space<vmem>>, vector<32x64xbf16>
    %cst = arith.constant dense<0.000000e+00> : vector<16x64xf32>
    %2 = tpu.matmul %0, %1, %cst {dimension_numbers = #tpu.dot_dimension_numbers<[1], [0], [0], [1], [0, 0, 1, 1], [], []>} : vector<16x32xbf16>, vector<32x64xbf16>, vector<16x64xf32> -> vector<16x64xf32>
    %c0_3 = arith.constant 0 : index
    %c0_4 = arith.constant 0 : index
    %3 = vector.load %arg4[%c0_3, %c0_4] : memref<1x64xf32, #tpu.memory_space<vmem>>, vector<1x64xf32>
    %4 = vector.broadcast %3 : vector<1x64xf32> to vector<16x64xf32>
    %5 = arith.addf %2, %4 : vector<16x64xf32>
    %cst_5 = arith.constant 0.707106769 : f32
    %6 = vector.broadcast %cst_5 : f32 to vector<16x64xf32>
    %7 = arith.mulf %5, %6 : vector<16x64xf32>
    %8 = math.absf %7 : vector<16x64xf32>
    %cst_6 = arith.constant 0.327591091 : f32
    %9 = vector.broadcast %cst_6 : f32 to vector<16x64xf32>
    %10 = arith.mulf %9, %8 : vector<16x64xf32>
    %cst_7 = arith.constant 1.000000e+00 : f32
    %11 = vector.broadcast %cst_7 : f32 to vector<16x64xf32>
    %12 = arith.addf %11, %10 : vector<16x64xf32>
    %13 = tpu.reciprocal %12 {approx = true} : vector<16x64xf32> -> vector<16x64xf32>
    %cst_8 = arith.constant 1.06140542 : f32
    %14 = vector.broadcast %cst_8 : f32 to vector<16x64xf32>
    %15 = arith.mulf %14, %13 : vector<16x64xf32>
    %cst_9 = arith.constant -1.45315206 : f32
    %16 = vector.broadcast %cst_9 : f32 to vector<16x64xf32>
    %17 = arith.addf %15, %16 : vector<16x64xf32>
    %18 = arith.mulf %17, %13 : vector<16x64xf32>
    %cst_10 = arith.constant 1.42141378 : f32
    %19 = vector.broadcast %cst_10 : f32 to vector<16x64xf32>
    %20 = arith.addf %18, %19 : vector<16x64xf32>
    %21 = arith.mulf %20, %13 : vector<16x64xf32>
    %cst_11 = arith.constant -0.284496725 : f32
    %22 = vector.broadcast %cst_11 : f32 to vector<16x64xf32>
    %23 = arith.addf %21, %22 : vector<16x64xf32>
    %24 = arith.mulf %23, %13 : vector<16x64xf32>
    %cst_12 = arith.constant 0.254829586 : f32
    %25 = vector.broadcast %cst_12 : f32 to vector<16x64xf32>
    %26 = arith.addf %24, %25 : vector<16x64xf32>
    %27 = arith.mulf %26, %13 : vector<16x64xf32>
    %cst_13 = arith.constant 0.000000e+00 : f32
    %28 = vector.broadcast %cst_13 : f32 to vector<16x64xf32>
    %29 = arith.subf %28, %8 : vector<16x64xf32>
    %30 = arith.mulf %29, %8 : vector<16x64xf32>
    %31 = math.exp %30 : vector<16x64xf32>
    %32 = arith.mulf %27, %31 : vector<16x64xf32>
    %cst_14 = arith.constant 1.000000e+00 : f32
    %33 = vector.broadcast %cst_14 : f32 to vector<16x64xf32>
    %34 = arith.subf %33, %32 : vector<16x64xf32>
    %cst_15 = arith.constant 0.000000e+00 : f32
    %35 = vector.broadcast %cst_15 : f32 to vector<16x64xf32>
    %36 = arith.cmpf oge, %7, %35 : vector<16x64xf32>
    %cst_16 = arith.constant 0.000000e+00 : f32
    %37 = vector.broadcast %cst_16 : f32 to vector<16x64xf32>
    %38 = arith.subf %37, %34 : vector<16x64xf32>
    %39 = arith.select %36, %34, %38 : vector<16x64xi1>, vector<16x64xf32>
    %cst_17 = arith.constant 5.000000e-01 : f32
    %40 = vector.broadcast %cst_17 : f32 to vector<16x64xf32>
    %41 = arith.mulf %40, %5 : vector<16x64xf32>
    %cst_18 = arith.constant 1.000000e+00 : f32
    %42 = vector.broadcast %cst_18 : f32 to vector<16x64xf32>
    %43 = arith.addf %42, %39 : vector<16x64xf32>
    %44 = arith.mulf %41, %43 : vector<16x64xf32>
    %45 = arith.truncf %44 : vector<16x64xf32> to vector<16x64xbf16>
    %c0_19 = arith.constant 0 : index
    %c0_20 = arith.constant 0 : index
    %46 = vector.load %arg5[%c0_19, %c0_20] : memref<16x64xbf16, #tpu.memory_space<vmem>>, vector<16x64xbf16>
    tpu.vector_store %arg5[%c0_19, %c0_20], %45 {strides = array<i32>} : memref<16x64xbf16, #tpu.memory_space<vmem>>, vector<16x64xbf16>,
    return
  }
  func.func @transform_0(%arg0: i32, %arg1: i32) -> (i32, i32) {
    %c0_i32 = arith.constant 0 : i32
    %c0_i32_0 = arith.constant 0 : i32
    return %arg0, %c0_i32 : i32, i32
  }
  func.func @transform_1(%arg0: i32, %arg1: i32) -> (i32, i32) {
    %c0_i32 = arith.constant 0 : i32
    %c0_i32_0 = arith.constant 0 : i32
    return %c0_i32, %arg1 : i32, i32
  }
  func.func @transform_2(%arg0: i32, %arg1: i32) -> (i32, i32) {
    %c0_i32 = arith.constant 0 : i32
    %c0_i32_0 = arith.constant 0 : i32
    return %c0_i32, %arg1 : i32, i32
  }
  func.func @transform_3(%arg0: i32, %arg1: i32) -> (i32, i32) {
    %c0_i32 = arith.constant 0 : i32
    return %arg0, %arg1 : i32, i32
  }
}

</mosaic_0001>

<llo_original>
// kernel: _lambda_.25
$region0: #{_lambda_.25}
  #allocation0 [shape = 'u32[]', space=smem, size = 0x4, offset = 0x4, fixed_abs, tag = 'smem constant byte address 0x4 - core index']
  #allocation1 [shape = 'u32[144,128]{1,0:T(1,128)}', space=vmem, size = 0x12000, scoped, tag = 'internal scratch']
  %s0 = inlined_call_operand.vmem [shape: bf16[16,32], index: 0, kind: input, shape index: {}]
  %s1 = inlined_call_operand.vmem [shape: bf16[32,32], index: 1, kind: input, shape index: {}]
  %s2 = inlined_call_operand.vmem [shape: f32[1,32], index: 2, kind: input, shape index: {}]
  %s3 = inlined_call_operand.vmem [shape: bf16[16,32], index: 3, kind: input, shape index: {}]
  %s4 = inlined_call_operand.vmem [shape: f32[1,32], index: 4, kind: input, shape index: {}]
  %s5 = inlined_call_operand.vmem [shape: f32[1,32], index: 5, kind: input, shape index: {}]
  %s6 = inlined_call_operand.vmem [shape: bf16[16,32], index: 6, kind: output, shape index: {}]
  %s7 = sld [smem:[#allocation0]]
  $region34: #{_lambda_.25} parent=0
    _
  %s9 = ssub.s32 1, %s7
  %s10 = scalar_select 0, %s9, %s7
  // Predicated region
  $region2: #{_lambda_.25} parent=0 // pred_check
    _
  $region3: #{_lambda_.25} parent=0 // pred_check_branch
    %12 = sbr.rel (0) target = $region5
  $region4: #{_lambda_.25} parent=0 // pred_region
    _
  $region5: #{_lambda_.25} parent=0 // pred_fallthru
    _
  // Predicated region
  $region6: #{_lambda_.25} parent=0 // pred_check
    _
  $region7: #{_lambda_.25} parent=0 // pred_check_branch
    %14 = sbr.rel (0) target = $region9
  $region8: #{_lambda_.25} parent=0 // pred_region
    _
  $region9: #{_lambda_.25} parent=0 // pred_fallthru
    _
  // Predicated region
  $region10: #{_lambda_.25} parent=0 // pred_check
    _
  $region11: #{_lambda_.25} parent=0 // pred_check_branch
    %16 = sbr.rel (0) target = $region13
  $region12: #{_lambda_.25} parent=0 // pred_region
    _
  $region13: #{_lambda_.25} parent=0 // pred_fallthru
    _
  // Predicated region
  $region14: #{_lambda_.25} parent=0 // pred_check
    _
  $region15: #{_lambda_.25} parent=0 // pred_check_branch
    %18 = sbr.rel (0) target = $region17
  $region16: #{_lambda_.25} parent=0 // pred_region
    _
  $region17: #{_lambda_.25} parent=0 // pred_fallthru
    _
  // Predicated region
  $region18: #{_lambda_.25} parent=0 // pred_check
    _
  $region19: #{_lambda_.25} parent=0 // pred_check_branch
    %20 = sbr.rel (0) target = $region21
  $region20: #{_lambda_.25} parent=0 // pred_region
    _
  $region21: #{_lambda_.25} parent=0 // pred_fallthru
    _
  // Predicated region
  $region22: #{_lambda_.25} parent=0 // pred_check
    _
  $region23: #{_lambda_.25} parent=0 // pred_check_branch
    %22 = sbr.rel (0) target = $region25
  $region24: #{_lambda_.25} parent=0 // pred_region
    _
  $region25: #{_lambda_.25} parent=0 // pred_fallthru
    _
  %v24 = vld [vmem:[%s0] sm:$0xf]
  %v25 = vld [vmem:[%s0 + $0x4] sm:$0xf]
  %v26 = vld [vmem:[%s1] sm:$0xf]
  %v27 = vld [vmem:[%s1 + $0x4] sm:$0xf]
  %v28 = vld [vmem:[%s1 + $0x8] sm:$0xf]
  %v29 = vld [vmem:[%s1 + $0xc] sm:$0xf]
  %v30 = vld [vmem:[%s2] sm:$0x1]
  %v32 = vlaneseq
  %v33 = vshrl.u32 %v32, 7
  %v34 = vsub.s32 0, %v33
  %v35 = vrot.slane %v30, %v34
  %v39 = vunpack.c.l.b16 %v24
  %v40 = vunpack.c.l.b16 %v25
  %v41 = vpack.c.b16 %v40, %v39
  %v46 = vunpack.c.l.b16 %v26
  %v47 = vunpack.c.l.b16 %v27
  %v48 = vunpack.c.l.b16 %v28
  %v49 = vunpack.c.l.b16 %v29
  %v50 = vpack.c.b16 %v47, %v46
  %v51 = vpack.c.b16 %v49, %v48
  %vm54 = vcmask 261120
  %v56 = vsel %vm54, %v41, 0
  %58 = vmatprep.subr.bf16.mxu0 0
  %59 = vmatpush1.bf16.msra.mxu0 %v50
  %60 = vmatprep.subr.bf16.mxu0 0
  %61 = vmatpush1.bf16.msra.mxu0 %v51
  %62 = vmatprep.subr.bf16.mxu0 0
  %63 = vmatpush1.bf16.msra.mxu0 0
  %64 = vmatprep.subr.bf16.mxu0 0
  %65 = vmatpush1.bf16.msra.mxu0 0
  %66 = vmatprep.subr.bf16.mxu0 0
  %67 = vmatpush1.bf16.msra.mxu0 0
  %68 = vmatprep.subr.bf16.mxu0 0
  %69 = vmatpush1.bf16.msra.mxu0 0
  %70 = vmatprep.subr.bf16.mxu0 0
  %71 = vmatpush1.bf16.msra.mxu0 0
  %72 = vmatprep.subr.bf16.mxu0 0
  %73 = vmatpush1.bf16.msra.mxu0 0
  %74 = vmatprep.subr.bf16.mxu0 0
  %75 = vmatpush1.bf16.msra.mxu0 0
  %76 = vmatprep.subr.bf16.mxu0 0
  %77 = vmatpush1.bf16.msra.mxu0 0
  %78 = vmatprep.subr.bf16.mxu0 0
  %79 = vmatpush1.bf16.msra.mxu0 0
  %80 = vmatprep.subr.bf16.mxu0 0
  %81 = vmatpush1.bf16.msra.mxu0 0
  %82 = vmatprep.subr.bf16.mxu0 0
  %83 = vmatpush1.bf16.msra.mxu0 0
  %84 = vmatprep.subr.bf16.mxu0 0
  %85 = vmatpush1.bf16.msra.mxu0 0
  %86 = vmatprep.subr.bf16.mxu0 0
  %87 = vmatpush1.bf16.msra.mxu0 0
  %88 = vmatprep.subr.bf16.mxu0 0
  %89 = vmatpush1.bf16.msra.mxu0 0
  %90 = vmatprep.mubr.bf16.mxu0 0
  %91 = vmatmul.mubr.bf16.gmra.mrb[0].mxu0 %v56
  %v92 = vpop.f32.mrb[0].mxu0
  %v93 = vadd.f32 %v35, %v92
  %v94 = vpop.f32.mrb[0].mxu0
  %v95 = vpop.f32.mrb[0].mxu0
  %v96 = vadd.f32 %v35, %v95
  %v97 = vpop.f32.mrb[0].mxu0
  %98 = vdwg.mxu0
  %v99 = vld [vmem:[%s3] sm:$0xf]
  %v100 = vld [vmem:[%s3 + $0x4] sm:$0xf]
  %v101 = vunpack.c.l.bf16 %v99
  %v102 = vunpack.c.l.bf16 %v100
  %v103 = vadd.f32 %v93, %v101
  %v104 = vadd.f32 %v96, %v102
  %v105 = vsel %vm54, %v103, 0.0
  %106 = vadd.xlane.f32.xlu0 %v105
  %v107 = vpop.xlane.xlu0 %106
  %v108 = vsel %vm54, %v104, 0.0
  %109 = vadd.xlane.f32.xlu0 %v108
  %v110 = vpop.xlane.xlu0 %109
  %v111 = vrcp.pop 32.0
  %v112 = vmul.f32 %v107, %v111
  %v113 = vmul.f32 %v110, %v111
  %v114 = vsub.f32 %v103, %v112
  %v115 = vsub.f32 %v104, %v113
  %v116 = vmul.f32 %v114, %v114
  %v117 = vmul.f32 %v115, %v115
  %v118 = vsel %vm54, %v116, 0.0
  %119 = vadd.xlane.f32.xlu0 %v118
  %v120 = vpop.xlane.xlu0 %119
  %v121 = vsel %vm54, %v117, 0.0
  %122 = vadd.xlane.f32.xlu0 %v121
  %v123 = vpop.xlane.xlu0 %122
  %v124 = vmul.f32 %v120, %v111
  %v125 = vmul.f32 %v123, %v111
  %v126 = vadd.f32 %v124, 1e-05
  %v127 = vadd.f32 %v125, 1e-05
  %v128 = vrsqrt.pop %v126
  %v129 = vrsqrt.pop %v127
  %v130 = vmul.f32 %v114, %v128
  %v131 = vmul.f32 %v115, %v129
  %v132 = vld [vmem:[%s4] sm:$0x1]
  %v134 = vlaneseq
  %v135 = vshrl.u32 %v134, 7
  %v136 = vsub.s32 0, %v135
  %v137 = vrot.slane %v132, %v136
  %v139 = vmul.f32 %v130, %v137
  %v140 = vmul.f32 %v131, %v137
  %v141 = vld [vmem:[%s5] sm:$0x1]
  %v143 = vlaneseq
  %v144 = vshrl.u32 %v143, 7
  %v145 = vsub.s32 0, %v144
  %v146 = vrot.slane %v141, %v145
  %v148 = vadd.f32 %v139, %v146
  %v149 = vadd.f32 %v140, %v146
  %v150 = vpack.c.bf16 %v149, %v148
  %v152 = vunpack.c.l.b16 %v150
  %v153 = vunpack.c.h.b16 %v150
  %v154 = vpack.c.b16 %v152, %v152
  %v155 = vpack.c.b16 %v153, %v153
  %vm158 = vcmask 257024
  %159 = vst.msk [vmem:[%s6] sm:$0xf] %vm158, %v154
  %160 = vst.msk [vmem:[%s6 + $0x4] sm:$0xf] %vm158, %v155
  // Predicated region
  $region26: #{_lambda_.25} parent=0 // pred_check
    _
  $region27: #{_lambda_.25} parent=0 // pred_check_branch
    %162 = sbr.rel (0) target = $region29
  $region28: #{_lambda_.25} parent=0 // pred_region
    _
  $region29: #{_lambda_.25} parent=0 // pred_fallthru
    _
  // Predicated region
  $region30: #{_lambda_.25} parent=0 // pred_check
    _
  $region31: #{_lambda_.25} parent=0 // pred_check_branch
    %164 = sbr.rel (0) target = $region33
  $region32: #{_lambda_.25} parent=0 // pred_region
    _
  $region33: #{_lambda_.25} parent=0 // pred_fallthru
    _

// kernel: _lambda_.23
$region0: #{_lambda_.23}
  #allocation0 [shape = 'u32[]', space=smem, size = 0x4, offset = 0x4, fixed_abs, tag = 'smem constant byte address 0x4 - core index']
  #allocation1 [shape = 'u32[144,128]{1,0:T(1,128)}', space=vmem, size = 0x12000, scoped, tag = 'internal scratch']
  %s0 = inlined_call_operand.vmem [shape: bf16[16,32], index: 0, kind: input, shape index: {}]
  %s1 = inlined_call_operand.vmem [shape: bf16[32,96], index: 1, kind: input, shape index: {}]
  %s2 = inlined_call_operand.vmem [shape: f32[1,96], index: 2, kind: input, shape index: {}]
  %s3 = inlined_call_operand.vmem [shape: bf16[16,96], index: 3, kind: output, shape index: {}]
  %s4 = sld [smem:[#allocation0]]
  $region22: #{_lambda_.23} parent=0
    _
  %s6 = ssub.s32 1, %s4
  %s7 = scalar_select 0, %s6, %s4
  // Predicated region
  $region2: #{_lambda_.23} parent=0 // pred_check
    _
  $region3: #{_lambda_.23} parent=0 // pred_check_branch
    %9 = sbr.rel (0) target = $region5
  $region4: #{_lambda_.23} parent=0 // pred_region
    _
  $region5: #{_lambda_.23} parent=0 // pred_fallthru
    _
  // Predicated region
  $region6: #{_lambda_.23} parent=0 // pred_check
    _
  $region7: #{_lambda_.23} parent=0 // pred_check_branch
    %11 = sbr.rel (0) target = $region9
  $region8: #{_lambda_.23} parent=0 // pred_region
    _
  $region9: #{_lambda_.23} parent=0 // pred_fallthru
    _
  // Predicated region
  $region10: #{_lambda_.23} parent=0 // pred_check
    _
  $region11: #{_lambda_.23} parent=0 // pred_check_branch
    %13 = sbr.rel (0) target = $region13
  $region12: #{_lambda_.23} parent=0 // pred_region
    _
  $region13: #{_lambda_.23} parent=0 // pred_fallthru
    _
  %v15 = vld [vmem:[%s0] sm:$0xf]
  %v16 = vld [vmem:[%s0 + $0x4] sm:$0xf]
  %v17 = vld [vmem:[%s1] sm:$0xf]
  %v18 = vld [vmem:[%s1 + $0x4] sm:$0xf]
  %v19 = vld [vmem:[%s1 + $0x8] sm:$0xf]
  %v20 = vld [vmem:[%s1 + $0xc] sm:$0xf]
  %v21 = vld [vmem:[%s2] sm:$0x1]
  %v23 = vlaneseq
  %v24 = vshrl.u32 %v23, 7
  %v25 = vsub.s32 0, %v24
  %v26 = vrot.slane %v21, %v25
  %v30 = vunpack.c.l.b16 %v15
  %v31 = vunpack.c.l.b16 %v16
  %v32 = vpack.c.b16 %v31, %v30
  %v37 = vunpack.c.l.b16 %v17
  %v38 = vunpack.c.l.b16 %v18
  %v39 = vunpack.c.l.b16 %v19
  %v40 = vunpack.c.l.b16 %v20
  %v41 = vpack.c.b16 %v38, %v37
  %v42 = vpack.c.b16 %v40, %v39
  %vm45 = vcmask 261120
  %v47 = vsel %vm45, %v32, 0
  %49 = vmatprep.subr.bf16.mxu0 0
  %50 = vmatpush1.bf16.msra.mxu0 %v41
  %51 = vmatprep.subr.bf16.mxu0 0
  %52 = vmatpush1.bf16.msra.mxu0 %v42
  %53 = vmatprep.subr.bf16.mxu0 0
  %54 = vmatpush1.bf16.msra.mxu0 0
  %55 = vmatprep.subr.bf16.mxu0 0
  %56 = vmatpush1.bf16.msra.mxu0 0
  %57 = vmatprep.subr.bf16.mxu0 0
  %58 = vmatpush1.bf16.msra.mxu0 0
  %59 = vmatprep.subr.bf16.mxu0 0
  %60 = vmatpush1.bf16.msra.mxu0 0
  %61 = vmatprep.subr.bf16.mxu0 0
  %62 = vmatpush1.bf16.msra.mxu0 0
  %63 = vmatprep.subr.bf16.mxu0 0
  %64 = vmatpush1.bf16.msra.mxu0 0
  %65 = vmatprep.subr.bf16.mxu0 0
  %66 = vmatpush1.bf16.msra.mxu0 0
  %67 = vmatprep.subr.bf16.mxu0 0
  %68 = vmatpush1.bf16.msra.mxu0 0
  %69 = vmatprep.subr.bf16.mxu0 0
  %70 = vmatpush1.bf16.msra.mxu0 0
  %71 = vmatprep.subr.bf16.mxu0 0
  %72 = vmatpush1.bf16.msra.mxu0 0
  %73 = vmatprep.subr.bf16.mxu0 0
  %74 = vmatpush1.bf16.msra.mxu0 0
  %75 = vmatprep.subr.bf16.mxu0 0
  %76 = vmatpush1.bf16.msra.mxu0 0
  %77 = vmatprep.subr.bf16.mxu0 0
  %78 = vmatpush1.bf16.msra.mxu0 0
  %79 = vmatprep.subr.bf16.mxu0 0
  %80 = vmatpush1.bf16.msra.mxu0 0
  %81 = vmatprep.mubr.bf16.mxu0 0
  %82 = vmatmul.mubr.bf16.gmra.mrb[0].mxu0 %v47
  %v83 = vpop.f32.mrb[0].mxu0
  %v84 = vadd.f32 %v26, %v83
  %v85 = vpop.f32.mrb[0].mxu0
  %v86 = vpop.f32.mrb[0].mxu0
  %v87 = vadd.f32 %v26, %v86
  %v88 = vpop.f32.mrb[0].mxu0
  %89 = vdwg.mxu0
  %v90 = vpack.c.bf16 %v87, %v84
  %v92 = vunpack.c.l.b16 %v90
  %v93 = vunpack.c.h.b16 %v90
  %v94 = vpack.c.b16 %v92, %v92
  %v95 = vpack.c.b16 %v93, %v93
  %vm98 = vcmask 781312
  %99 = vst.msk [vmem:[%s3] sm:$0xf] %vm98, %v94
  %100 = vst.msk [vmem:[%s3 + $0x4] sm:$0xf] %vm98, %v95
  // Predicated region
  $region14: #{_lambda_.23} parent=0 // pred_check
    _
  $region15: #{_lambda_.23} parent=0 // pred_check_branch
    %102 = sbr.rel (0) target = $region17
  $region16: #{_lambda_.23} parent=0 // pred_region
    _
  $region17: #{_lambda_.23} parent=0 // pred_fallthru
    _
  // Predicated region
  $region18: #{_lambda_.23} parent=0 // pred_check
    _
  $region19: #{_lambda_.23} parent=0 // pred_check_branch
    %104 = sbr.rel (0) target = $region21
  $region20: #{_lambda_.23} parent=0 // pred_region
    _
  $region21: #{_lambda_.23} parent=0 // pred_fallthru
    _

// kernel: _lambda_.22
$region0: #{_lambda_.22}
  #allocation0 [shape = 'u32[]', space=smem, size = 0x4, offset = 0x4, fixed_abs, tag = 'smem constant byte address 0x4 - core index']
  #allocation1 [shape = 'u32[144,128]{1,0:T(1,128)}', space=vmem, size = 0x12000, scoped, tag = 'internal scratch']
  %s0 = inlined_call_operand.vmem [shape: bf16[16,32], index: 0, kind: input, shape index: {}]
  %s1 = inlined_call_operand.vmem [shape: bf16[16,32], index: 1, kind: input, shape index: {}]
  %s2 = inlined_call_operand.vmem [shape: f32[1,32], index: 2, kind: input, shape index: {}]
  %s3 = inlined_call_operand.vmem [shape: f32[1,32], index: 3, kind: input, shape index: {}]
  %s4 = inlined_call_operand.vmem [shape: bf16[16,32], index: 4, kind: output, shape index: {}]
  %s5 = sld [smem:[#allocation0]]
  $region26: #{_lambda_.22} parent=0
    _
  %s7 = ssub.s32 1, %s5
  %s8 = scalar_select 0, %s7, %s5
  // Predicated region
  $region2: #{_lambda_.22} parent=0 // pred_check
    _
  $region3: #{_lambda_.22} parent=0 // pred_check_branch
    %10 = sbr.rel (0) target = $region5
  $region4: #{_lambda_.22} parent=0 // pred_region
    _
  $region5: #{_lambda_.22} parent=0 // pred_fallthru
    _
  // Predicated region
  $region6: #{_lambda_.22} parent=0 // pred_check
    _
  $region7: #{_lambda_.22} parent=0 // pred_check_branch
    %12 = sbr.rel (0) target = $region9
  $region8: #{_lambda_.22} parent=0 // pred_region
    _
  $region9: #{_lambda_.22} parent=0 // pred_fallthru
    _
  // Predicated region
  $region10: #{_lambda_.22} parent=0 // pred_check
    _
  $region11: #{_lambda_.22} parent=0 // pred_check_branch
    %14 = sbr.rel (0) target = $region13
  $region12: #{_lambda_.22} parent=0 // pred_region
    _
  $region13: #{_lambda_.22} parent=0 // pred_fallthru
    _
  // Predicated region
  $region14: #{_lambda_.22} parent=0 // pred_check
    _
  $region15: #{_lambda_.22} parent=0 // pred_check_branch
    %16 = sbr.rel (0) target = $region17
  $region16: #{_lambda_.22} parent=0 // pred_region
    _
  $region17: #{_lambda_.22} parent=0 // pred_fallthru
    _
  %v17 = vld [vmem:[%s0] sm:$0xf]
  %v18 = vld [vmem:[%s0 + $0x4] sm:$0xf]
  %v19 = vunpack.c.l.bf16 %v17
  %v20 = vunpack.c.l.bf16 %v18
  %v21 = vld [vmem:[%s1] sm:$0xf]
  %v22 = vld [vmem:[%s1 + $0x4] sm:$0xf]
  %v23 = vunpack.c.l.bf16 %v21
  %v24 = vunpack.c.l.bf16 %v22
  %v25 = vadd.f32 %v19, %v23
  %v26 = vadd.f32 %v20, %v24
  %vm27 = vcmask 261120
  %v28 = vsel %vm27, %v25, 0.0
  %29 = vadd.xlane.f32.xlu0 %v28
  %v30 = vpop.xlane.xlu0 %29
  %v31 = vsel %vm27, %v26, 0.0
  %32 = vadd.xlane.f32.xlu0 %v31
  %v33 = vpop.xlane.xlu0 %32
  %v34 = vrcp.pop 32.0
  %v35 = vmul.f32 %v30, %v34
  %v36 = vmul.f32 %v33, %v34
  %v37 = vsub.f32 %v25, %v35
  %v38 = vsub.f32 %v26, %v36
  %v39 = vmul.f32 %v37, %v37
  %v40 = vmul.f32 %v38, %v38
  %v41 = vsel %vm27, %v39, 0.0
  %42 = vadd.xlane.f32.xlu0 %v41
  %v43 = vpop.xlane.xlu0 %42
  %v44 = vsel %vm27, %v40, 0.0
  %45 = vadd.xlane.f32.xlu0 %v44
  %v46 = vpop.xlane.xlu0 %45
  %v47 = vmul.f32 %v43, %v34
  %v48 = vmul.f32 %v46, %v34
  %v49 = vadd.f32 %v47, 1e-08
  %v50 = vadd.f32 %v48, 1e-08
  %v51 = vrsqrt.pop %v49
  %v52 = vrsqrt.pop %v50
  %v53 = vmul.f32 %v37, %v51
  %v54 = vmul.f32 %v38, %v52
  %v55 = vld [vmem:[%s2] sm:$0x1]
  %v57 = vlaneseq
  %v58 = vshrl.u32 %v57, 7
  %v59 = vsub.s32 0, %v58
  %v60 = vrot.slane %v55, %v59
  %v62 = vmul.f32 %v53, %v60
  %v63 = vmul.f32 %v54, %v60
  %v64 = vld [vmem:[%s3] sm:$0x1]
  %v66 = vlaneseq
  %v67 = vshrl.u32 %v66, 7
  %v68 = vsub.s32 0, %v67
  %v69 = vrot.slane %v64, %v68
  %v71 = vadd.f32 %v62, %v69
  %v72 = vadd.f32 %v63, %v69
  %v73 = vpack.c.bf16 %v72, %v71
  %v75 = vunpack.c.l.b16 %v73
  %v76 = vunpack.c.h.b16 %v73
  %v77 = vpack.c.b16 %v75, %v75
  %v78 = vpack.c.b16 %v76, %v76
  %vm81 = vcmask 257024
  %82 = vst.msk [vmem:[%s4] sm:$0xf] %vm81, %v77
  %83 = vst.msk [vmem:[%s4 + $0x4] sm:$0xf] %vm81, %v78
  // Predicated region
  $region18: #{_lambda_.22} parent=0 // pred_check
    _
  $region19: #{_lambda_.22} parent=0 // pred_check_branch
    %85 = sbr.rel (0) target = $region21
  $region20: #{_lambda_.22} parent=0 // pred_region
    _
  $region21: #{_lambda_.22} parent=0 // pred_fallthru
    _
  // Predicated region
  $region22: #{_lambda_.22} parent=0 // pred_check
    _
  $region23: #{_lambda_.22} parent=0 // pred_check_branch
    %87 = sbr.rel (0) target = $region25
  $region24: #{_lambda_.22} parent=0 // pred_region
    _
  $region25: #{_lambda_.22} parent=0 // pred_fallthru
    _

// kernel: _lambda_.24
$region0: #{_lambda_.24}
  #allocation0 [shape = 'u32[]', space=smem, size = 0x4, offset = 0x4, fixed_abs, tag = 'smem constant byte address 0x4 - core index']
  #allocation1 [shape = 'u32[144,128]{1,0:T(1,128)}', space=vmem, size = 0x12000, scoped, tag = 'internal scratch']
  %s0 = inlined_call_operand.vmem [shape: s32[2,1,1], index: 0, kind: input, shape index: {}]
  %s1 = inlined_call_operand.vmem [shape: bf16[2,8,96], index: 1, kind: input, shape index: {}]
  %s2 = inlined_call_operand.vmem [shape: bf16[2,8,32], index: 2, kind: output, shape index: {}]
  %s3 = sld [smem:[#allocation0]]
  $region41: #{_lambda_.24} parent=0
    _
  %s5 = ssub.s32 1, %s3
  %s6 = scalar_select 0, %s5, %s3
  loop: start=0, step=1, limit=4
  $region2: #{_lambda_.24} parent=0 // loop_pre_header
    _
  $region3: #{_lambda_.24} parent=0 // loop_header
    %s8 = sphi 0, %s12
    %p9 = scmp.ge.s32.totalorder %s8, 4
    %s18 = sphi 0, %s20
    %s21 = sphi 0, %s18
    %s22 = sphi 0, %s21
    %s38 = sphi 0, %s22
    %s44 = sphi 0, %s46
    %s47 = sphi 0, %s44
    %s48 = sphi 0, %s47
    %s64 = sphi 0, %s48
    %s70 = sphi 0, %s72
    %s73 = sphi 0, %s70
    %s74 = sphi 0, %s73
    %s90 = sphi 0, %s74
  $region4: #{_lambda_.24} parent=0 // loop_header_branch
    %11 = sbr.rel (%p9) target = $region8
  $region5: #{_lambda_.24} parent=0 // loop_body
    %s13 = ssub.s32 %s8, 1
    %s14 = ssub.s32 %s8, 2
    %s15 = sadd.s32 %s8, 1
    %s16 = ssub.s32 %s8, %s15
    %p17 = scmp.eq.s32.totalorder %s16, 0
    %s19 = sadd.s32 %s18, 1
    %s20 = scalar_select %p17, %s18, %s19
    %p23 = pneg %p17
    %p24 = scmp.eq.s32.totalorder %s8, 1
    %p25 = por %p23, %p24
    %p26 = scmp.ne.s32.totalorder %s18, %s21
    %p27 = scmp.eq.s32.totalorder %s8, 0
    %p28 = por %p26, %p27
    %p29 = scmp.ne.s32.totalorder %s18, %s21
    %p30 = scmp.eq.s32.totalorder %s13, 1
    %p31 = por %p29, %p30
    %p32 = scmp.ne.s32.totalorder %s21, %s22
    %p33 = scmp.eq.s32.totalorder %s13, 0
    %p34 = por %p32, %p33
    %p35 = scmp.ne.s32.totalorder %s21, %s22
    %p36 = scmp.eq.s32.totalorder %s14, 1
    %p37 = por %p35, %p36
    %p39 = scmp.ne.s32.totalorder %s22, %s38
    %p40 = scmp.eq.s32.totalorder %s14, 0
    %p41 = por %p39, %p40
    %s42 = ssub.s32 %s8, %s15
    %p43 = scmp.eq.s32.totalorder %s42, 0
    %s45 = sadd.s32 %s44, 1
    %s46 = scalar_select %p43, %s44, %s45
    %p49 = pneg %p43
    %p50 = scmp.eq.s32.totalorder %s8, 1
    %p51 = por %p49, %p50
    %p52 = scmp.ne.s32.totalorder %s44, %s47
    %p53 = scmp.eq.s32.totalorder %s8, 0
    %p54 = por %p52, %p53
    %p55 = scmp.ne.s32.totalorder %s44, %s47
    %p56 = scmp.eq.s32.totalorder %s13, 1
    %p57 = por %p55, %p56
    %p58 = scmp.ne.s32.totalorder %s47, %s48
    %p59 = scmp.eq.s32.totalorder %s13, 0
    %p60 = por %p58, %p59
    %p61 = scmp.ne.s32.totalorder %s47, %s48
    %p62 = scmp.eq.s32.totalorder %s14, 1
    %p63 = por %p61, %p62
    %p65 = scmp.ne.s32.totalorder %s48, %s64
    %p66 = scmp.eq.s32.totalorder %s14, 0
    %p67 = por %p65, %p66
    %s68 = ssub.s32 %s8, %s15
    %p69 = scmp.eq.s32.totalorder %s68, 0
    %s71 = sadd.s32 %s70, 1
    %s72 = scalar_select %p69, %s70, %s71
    %p75 = pneg %p69
    %p76 = scmp.eq.s32.totalorder %s8, 1
    %p77 = por %p75, %p76
    %p78 = scmp.ne.s32.totalorder %s70, %s73
    %p79 = scmp.eq.s32.totalorder %s8, 0
    %p80 = por %p78, %p79
    %p81 = scmp.ne.s32.totalorder %s70, %s73
    %p82 = scmp.eq.s32.totalorder %s13, 1
    %p83 = por %p81, %p82
    %p84 = scmp.ne.s32.totalorder %s73, %s74
    %p85 = scmp.eq.s32.totalorder %s13, 0
    %p86 = por %p84, %p85
    %p87 = scmp.ne.s32.totalorder %s73, %s74
    %p88 = scmp.eq.s32.totalorder %s14, 1
    %p89 = por %p87, %p88
    %p91 = scmp.ne.s32.totalorder %s74, %s90
    %p92 = scmp.eq.s32.totalorder %s14, 0
    %p93 = por %p91, %p92
    %p94 = scmp.le.s32.totalorder 1, %s8
    %p95 = scmp.lt.s32.totalorder %s8, 3
    %p96 = pnand %p94, %p95
    %p97 = pneg %p96
    // Predicated region
    $region9: #{_lambda_.24} parent=5 // pred_check
      _
    $region10: #{_lambda_.24} parent=5 // pred_check_branch
      %99 = sbr.rel (%p96) target = $region12
    $region11: #{_lambda_.24} parent=5 // pred_region
      %s100 = ssub.s32 %s8, 1
    $region12: #{_lambda_.24} parent=5 // pred_fallthru
      _
    %p101 = scmp.lt.s32.totalorder %s8, 2
    // Predicated region
    $region13: #{_lambda_.24} parent=5 // pred_check
      %p102 = pneg %p101
    $region14: #{_lambda_.24} parent=5 // pred_check_branch
      %104 = sbr.rel (%p102) target = $region16
    $region15: #{_lambda_.24} parent=5 // pred_region
      // Predicated region
      $region17: #{_lambda_.24} parent=15 // pred_check
        %p105 = pneg %p28
      $region18: #{_lambda_.24} parent=15 // pred_check_branch
        %107 = sbr.rel (%p105) target = $region20
      $region19: #{_lambda_.24} parent=15 // pred_region
        %p108 = scmp.lt.s32.totalorder %s8, 1
        %s109 = scalar_select %p108, %s8, 1
        %s110 = scalar_lea.vmem %s0, %s109
      $region20: #{_lambda_.24} parent=15 // pred_fallthru
        _
      // Predicated region
      $region21: #{_lambda_.24} parent=15 // pred_check
        %p111 = pneg %p54
      $region22: #{_lambda_.24} parent=15 // pred_check_branch
        %113 = sbr.rel (%p111) target = $region24
      $region23: #{_lambda_.24} parent=15 // pred_region
        %p114 = scmp.lt.s32.totalorder %s8, 1
        %s115 = scalar_select %p114, %s8, 1
        %s116 = smul.addr %s115, 4
        %s117 = scalar_lea.vmem %s1, %s116
      $region24: #{_lambda_.24} parent=15 // pred_fallthru
        _
    $region16: #{_lambda_.24} parent=5 // pred_fallthru
      _
    %p118 = scmp.le.s32.totalorder 1, %s8
    %p119 = scmp.lt.s32.totalorder %s8, 3
    %p120 = pnand %p118, %p119
    %p121 = pneg %p120
    // Predicated region
    $region25: #{_lambda_.24} parent=5 // pred_check
      _
    $region26: #{_lambda_.24} parent=5 // pred_check_branch
      %123 = sbr.rel (%p120) target = $region28
    $region27: #{_lambda_.24} parent=5 // pred_region
      %s124 = ssub.s32 %s8, 1
      %p125 = scmp.lt.s32.totalorder %s13, 1
      %s126 = scalar_select %p125, %s13, 1
      %s127 = scalar_lea.vmem %s0, %s126
      %p128 = pneg %p34
      %p129 = pneg %p31
      %p130 = scmp.lt.s32.totalorder %s13, 1
      %s131 = scalar_select %p130, %s13, 1
      %s132 = smul.addr %s131, 4
      %s133 = scalar_lea.vmem %s1, %s132
      %p134 = pneg %p60
      %p135 = pneg %p57
      %p136 = pneg %p86
      %p137 = pneg %p83
      %p138 = scmp.lt.s32.totalorder %s13, 1
      %s139 = scalar_select %p138, %s13, 1
      %s140 = smul.addr %s139, 4
      %s141 = scalar_lea.vmem %s2, %s140
      %p142 = scmp.lt.s32.totalorder %s13, 1
      %s143 = scalar_select %p142, %s13, 1
      %s144 = scalar_lea.vmem %s0, %s143
      %p145 = scmp.lt.s32.totalorder %s13, 1
      %s146 = scalar_select %p145, %s13, 1
      %s147 = smul.addr %s146, 4
      %s148 = scalar_lea.vmem %s1, %s147
      %p149 = scmp.lt.s32.totalorder %s13, 1
      %s150 = scalar_select %p149, %s13, 1
      %s151 = smul.addr %s150, 4
      %s152 = scalar_lea.vmem %s2, %s151
      %v154 = vld [vmem:[%s148] sm:$0xf]
      %v155 = vlaneseq
      %v156 = vshrl.u32 %v155, 7
      %v157 = vlaneseq
      %v158 = vand.u32 %v157, 127
      %v159 = vld [vmem:[%s144] sm:$0x1]
      %vm160 = vcmp.le.s32.totalorder %v158, %v156
      %v161 = vlaneseq
      %v162 = vshrl.u32 %v161, 7
      %v163 = vsub.s32 0, %v162
      %v164 = vrot.slane %v159, %v163
      %165 = vset.pattern.permute.xlu0 0
      %166 = vperm.xlu0 %165, %v164
      %v167 = vpop.permute.xlu0 %166
      %vm168 = vcmp.lt.s32.totalorder %v158, %v167
      %vm169 = vmand %vm160, %vm168
      %v171 = vunpack.c.l.b16 %v154
      %v172 = vpack.c.b16 %v171, %v171
      %173 = vrot.lane.b32.xlu0 %v172, 96
      %v174 = vpop.permute.xlu0 %173
      %vm175 = vcmask 64512
      %v177 = vsel %vm175, %v154, 0
      %v180 = vsel %vm175, %v174, 0
      %182 = vmatprep.subr.bf16.mxu0 0
      %183 = vmatpush1.bf16.xpose.msra.mxu0 %v180
      %184 = vmatprep.subr.bf16.mxu0 0
      %185 = vmatpush1.bf16.xpose.msra.mxu0 0
      %186 = vmatprep.subr.bf16.mxu0 0
      %187 = vmatpush1.bf16.xpose.msra.mxu0 0
      %188 = vmatprep.subr.bf16.mxu0 0
      %189 = vmatpush1.bf16.xpose.msra.mxu0 0
      %190 = vmatprep.subr.bf16.mxu0 0
      %191 = vmatpush1.bf16.xpose.msra.mxu0 0
      %192 = vmatprep.subr.bf16.mxu0 0
      %193 = vmatpush1.bf16.xpose.msra.mxu0 0
      %194 = vmatprep.subr.bf16.mxu0 0
      %195 = vmatpush1.bf16.xpose.msra.mxu0 0
      %196 = vmatprep.subr.bf16.mxu0 0
      %197 = vmatpush1.bf16.xpose.msra.mxu0 0
      %198 = vmatprep.subr.bf16.mxu0 0
      %199 = vmatpush1.bf16.xpose.msra.mxu0 0
      %200 = vmatprep.subr.bf16.mxu0 0
      %201 = vmatpush1.bf16.xpose.msra.mxu0 0
      %202 = vmatprep.subr.bf16.mxu0 0
      %203 = vmatpush1.bf16.xpose.msra.mxu0 0
      %204 = vmatprep.subr.bf16.mxu0 0
      %205 = vmatpush1.bf16.xpose.msra.mxu0 0
      %206 = vmatprep.subr.bf16.mxu0 0
      %207 = vmatpush1.bf16.xpose.msra.mxu0 0
      %208 = vmatprep.subr.bf16.mxu0 0
      %209 = vmatpush1.bf16.xpose.msra.mxu0 0
      %210 = vmatprep.subr.bf16.mxu0 0
      %211 = vmatpush1.bf16.xpose.msra.mxu0 0
      %212 = vmatprep.subr.bf16.mxu0 0
      %213 = vmatpush1.bf16.xpose.msra.mxu0 0
      %214 = vmatprep.mubr.bf16.mxu0 0
      %215 = vmatmul.mubr.bf16.gmra.mrb[0].mxu0 %v177
      %v216 = vpop.f32.mrb[0].mxu0
      %v217 = vadd.f32 0.0, %v216
      %v218 = vpop.f32.mrb[0].mxu0
      %v219 = vpop.f32.mrb[0].mxu0
      %v220 = vpop.f32.mrb[0].mxu0
      %221 = vdwg.mxu0
      %v222 = vsel %vm169, %v217, -1e+30
      %v223 = vsel %vm175, %v222, -inf
      %224 = vmax.xlane.f32.xlu0 %v223
      %v225 = vpop.xlane.xlu0 %224
      %v226 = vsub.f32 %v222, %v225
      %v227 = vmul.f32 %v226, 1.442695
      %v228 = vpow.pop %v227
      %v229 = vsel %vm175, %v228, 0.0
      %230 = vadd.xlane.f32.xlu0 %v229
      %v231 = vpop.xlane.xlu0 %230
      %v232 = vpack.c.bf16 %v228, %v228
      %233 = vrot.lane.b32.xlu0 %v172, 64
      %v234 = vpop.permute.xlu0 %233
      %v236 = vsel %vm175, %v232, 0
      %vm238 = vcmask 1043456
      %v240 = vsel %vm238, %v234, 0
      %242 = vmatprep.subr.bf16.mxu0 0
      %243 = vmatpush1.bf16.msra.mxu0 %v240
      %244 = vmatprep.subr.bf16.mxu0 0
      %245 = vmatpush1.bf16.msra.mxu0 0
      %246 = vmatprep.subr.bf16.mxu0 0
      %247 = vmatpush1.bf16.msra.mxu0 0
      %248 = vmatprep.subr.bf16.mxu0 0
      %249 = vmatpush1.bf16.msra.mxu0 0
      %250 = vmatprep.subr.bf16.mxu0 0
      %251 = vmatpush1.bf16.msra.mxu0 0
      %252 = vmatprep.subr.bf16.mxu0 0
      %253 = vmatpush1.bf16.msra.mxu0 0
      %254 = vmatprep.subr.bf16.mxu0 0
      %255 = vmatpush1.bf16.msra.mxu0 0
      %256 = vmatprep.subr.bf16.mxu0 0
      %257 = vmatpush1.bf16.msra.mxu0 0
      %258 = vmatprep.subr.bf16.mxu0 0
      %259 = vmatpush1.bf16.msra.mxu0 0
      %260 = vmatprep.subr.bf16.mxu0 0
      %261 = vmatpush1.bf16.msra.mxu0 0
      %262 = vmatprep.subr.bf16.mxu0 0
      %263 = vmatpush1.bf16.msra.mxu0 0
      %264 = vmatprep.subr.bf16.mxu0 0
      %265 = vmatpush1.bf16.msra.mxu0 0
      %266 = vmatprep.subr.bf16.mxu0 0
      %267 = vmatpush1.bf16.msra.mxu0 0
      %268 = vmatprep.subr.bf16.mxu0 0
      %269 = vmatpush1.bf16.msra.mxu0 0
      %270 = vmatprep.subr.bf16.mxu0 0
      %271 = vmatpush1.bf16.msra.mxu0 0
      %272 = vmatprep.subr.bf16.mxu0 0
      %273 = vmatpush1.bf16.msra.mxu0 0
      %274 = vmatprep.mubr.bf16.mxu0 0
      %275 = vmatmul.mubr.bf16.gmra.mrb[0].mxu0 %v236
      %v276 = vpop.f32.mrb[0].mxu0
      %v277 = vadd.f32 0.0, %v276
      %v278 = vpop.f32.mrb[0].mxu0
      %v279 = vpop.f32.mrb[0].mxu0
      %v280 = vpop.f32.mrb[0].mxu0
      %281 = vdwg.mxu0
      %v282 = vrcp.pop %v231
      %v283 = vmul.f32 %v277, %v282
      %284 = vrot.lane.b32.xlu0 %v172, 120
      %v285 = vpop.permute.xlu0 %284
      %286 = vrot.lane.b32.xlu0 %v172, 88
      %v287 = vpop.permute.xlu0 %286
      %v289 = vsel %vm175, %v285, 0
      %v292 = vsel %vm175, %v287, 0
      %294 = vmatprep.subr.bf16.mxu0 0
      %295 = vmatpush1.bf16.xpose.msra.mxu0 %v292
      %296 = vmatprep.subr.bf16.mxu0 0
      %297 = vmatpush1.bf16.xpose.msra.mxu0 0
      %298 = vmatprep.subr.bf16.mxu0 0
      %299 = vmatpush1.bf16.xpose.msra.mxu0 0
      %300 = vmatprep.subr.bf16.mxu0 0
      %301 = vmatpush1.bf16.xpose.msra.mxu0 0
      %302 = vmatprep.subr.bf16.mxu0 0
      %303 = vmatpush1.bf16.xpose.msra.mxu0 0
      %304 = vmatprep.subr.bf16.mxu0 0
      %305 = vmatpush1.bf16.xpose.msra.mxu0 0
      %306 = vmatprep.subr.bf16.mxu0 0
      %307 = vmatpush1.bf16.xpose.msra.mxu0 0
      %308 = vmatprep.subr.bf16.mxu0 0
      %309 = vmatpush1.bf16.xpose.msra.mxu0 0
      %310 = vmatprep.subr.bf16.mxu0 0
      %311 = vmatpush1.bf16.xpose.msra.mxu0 0
      %312 = vmatprep.subr.bf16.mxu0 0
      %313 = vmatpush1.bf16.xpose.msra.mxu0 0
      %314 = vmatprep.subr.bf16.mxu0 0
      %315 = vmatpush1.bf16.xpose.msra.mxu0 0
      %316 = vmatprep.subr.bf16.mxu0 0
      %317 = vmatpush1.bf16.xpose.msra.mxu0 0
      %318 = vmatprep.subr.bf16.mxu0 0
      %319 = vmatpush1.bf16.xpose.msra.mxu0 0
      %320 = vmatprep.subr.bf16.mxu0 0
      %321 = vmatpush1.bf16.xpose.msra.mxu0 0
      %322 = vmatprep.subr.bf16.mxu0 0
      %323 = vmatpush1.bf16.xpose.msra.mxu0 0
      %324 = vmatprep.subr.bf16.mxu0 0
      %325 = vmatpush1.bf16.xpose.msra.mxu0 0
      %326 = vmatprep.mubr.bf16.mxu0 0
      %327 = vmatmul.mubr.bf16.gmra.mrb[0].mxu0 %v289
      %v328 = vpop.f32.mrb[0].mxu0
      %v329 = vadd.f32 0.0, %v328
      %v330 = vpop.f32.mrb[0].mxu0
      %v331 = vpop.f32.mrb[0].mxu0
      %v332 = vpop.f32.mrb[0].mxu0
      %333 = vdwg.mxu0
      %v334 = vsel %vm169, %v329, -1e+30
      %v335 = vsel %vm175, %v334, -inf
      %336 = vmax.xlane.f32.xlu0 %v335
      %v337 = vpop.xlane.xlu0 %336
      %v338 = vsub.f32 %v334, %v337
      %v339 = vmul.f32 %v338, 1.442695
      %v340 = vpow.pop %v339
      %v341 = vsel %vm175, %v340, 0.0
      %342 = vadd.xlane.f32.xlu0 %v341
      %v343 = vpop.xlane.xlu0 %342
      %v344 = vpack.c.bf16 %v340, %v340
      %345 = vrot.lane.b32.xlu0 %v172, 56
      %v346 = vpop.permute.xlu0 %345
      %v348 = vsel %vm175, %v344, 0
      %v351 = vsel %vm238, %v346, 0
      %353 = vmatprep.subr.bf16.mxu0 0
      %354 = vmatpush1.bf16.msra.mxu0 %v351
      %355 = vmatprep.subr.bf16.mxu0 0
      %356 = vmatpush1.bf16.msra.mxu0 0
      %357 = vmatprep.subr.bf16.mxu0 0
      %358 = vmatpush1.bf16.msra.mxu0 0
      %359 = vmatprep.subr.bf16.mxu0 0
      %360 = vmatpush1.bf16.msra.mxu0 0
      %361 = vmatprep.subr.bf16.mxu0 0
      %362 = vmatpush1.bf16.msra.mxu0 0
      %363 = vmatprep.subr.bf16.mxu0 0
      %364 = vmatpush1.bf16.msra.mxu0 0
      %365 = vmatprep.subr.bf16.mxu0 0
      %366 = vmatpush1.bf16.msra.mxu0 0
      %367 = vmatprep.subr.bf16.mxu0 0
      %368 = vmatpush1.bf16.msra.mxu0 0
      %369 = vmatprep.subr.bf16.mxu0 0
      %370 = vmatpush1.bf16.msra.mxu0 0
      %371 = vmatprep.subr.bf16.mxu0 0
      %372 = vmatpush1.bf16.msra.mxu0 0
      %373 = vmatprep.subr.bf16.mxu0 0
      %374 = vmatpush1.bf16.msra.mxu0 0
      %375 = vmatprep.subr.bf16.mxu0 0
      %376 = vmatpush1.bf16.msra.mxu0 0
      %377 = vmatprep.subr.bf16.mxu0 0
      %378 = vmatpush1.bf16.msra.mxu0 0
      %379 = vmatprep.subr.bf16.mxu0 0
      %380 = vmatpush1.bf16.msra.mxu0 0
      %381 = vmatprep.subr.bf16.mxu0 0
      %382 = vmatpush1.bf16.msra.mxu0 0
      %383 = vmatprep.subr.bf16.mxu0 0
      %384 = vmatpush1.bf16.msra.mxu0 0
      %385 = vmatprep.mubr.bf16.mxu0 0
      %386 = vmatmul.mubr.bf16.gmra.mrb[0].mxu0 %v348
      %v387 = vpop.f32.mrb[0].mxu0
      %v388 = vadd.f32 0.0, %v387
      %v389 = vpop.f32.mrb[0].mxu0
      %v390 = vpop.f32.mrb[0].mxu0
      %v391 = vpop.f32.mrb[0].mxu0
      %392 = vdwg.mxu0
      %v393 = vrcp.pop %v343
      %v394 = vmul.f32 %v388, %v393
      %395 = vrot.lane.b32.xlu0 %v172, 112
      %v396 = vpop.permute.xlu0 %395
      %397 = vrot.lane.b32.xlu0 %v172, 80
      %v398 = vpop.permute.xlu0 %397
      %v400 = vsel %vm175, %v396, 0
      %v403 = vsel %vm175, %v398, 0
      %405 = vmatprep.subr.bf16.mxu0 0
      %406 = vmatpush1.bf16.xpose.msra.mxu0 %v403
      %407 = vmatprep.subr.bf16.mxu0 0
      %408 = vmatpush1.bf16.xpose.msra.mxu0 0
      %409 = vmatprep.subr.bf16.mxu0 0
      %410 = vmatpush1.bf16.xpose.msra.mxu0 0
      %411 = vmatprep.subr.bf16.mxu0 0
      %412 = vmatpush1.bf16.xpose.msra.mxu0 0
      %413 = vmatprep.subr.bf16.mxu0 0
      %414 = vmatpush1.bf16.xpose.msra.mxu0 0
      %415 = vmatprep.subr.bf16.mxu0 0
      %416 = vmatpush1.bf16.xpose.msra.mxu0 0
      %417 = vmatprep.subr.bf16.mxu0 0
      %418 = vmatpush1.bf16.xpose.msra.mxu0 0
      %419 = vmatprep.subr.bf16.mxu0 0
      %420 = vmatpush1.bf16.xpose.msra.mxu0 0
      %421 = vmatprep.subr.bf16.mxu0 0
      %422 = vmatpush1.bf16.xpose.msra.mxu0 0
      %423 = vmatprep.subr.bf16.mxu0 0
      %424 = vmatpush1.bf16.xpose.msra.mxu0 0
      %425 = vmatprep.subr.bf16.mxu0 0
      %426 = vmatpush1.bf16.xpose.msra.mxu0 0
      %427 = vmatprep.subr.bf16.mxu0 0
      %428 = vmatpush1.bf16.xpose.msra.mxu0 0
      %429 = vmatprep.subr.bf16.mxu0 0
      %430 = vmatpush1.bf16.xpose.msra.mxu0 0
      %431 = vmatprep.subr.bf16.mxu0 0
      %432 = vmatpush1.bf16.xpose.msra.mxu0 0
      %433 = vmatprep.subr.bf16.mxu0 0
      %434 = vmatpush1.bf16.xpose.msra.mxu0 0
      %435 = vmatprep.subr.bf16.mxu0 0
      %436 = vmatpush1.bf16.xpose.msra.mxu0 0
      %437 = vmatprep.mubr.bf16.mxu0 0
      %438 = vmatmul.mubr.bf16.gmra.mrb[0].mxu0 %v400
      %v439 = vpop.f32.mrb[0].mxu0
      %v440 = vadd.f32 0.0, %v439
      %v441 = vpop.f32.mrb[0].mxu0
      %v442 = vpop.f32.mrb[0].mxu0
      %v443 = vpop.f32.mrb[0].mxu0
      %444 = vdwg.mxu0
      %v445 = vsel %vm169, %v440, -1e+30
      %v446 = vsel %vm175, %v445, -inf
      %447 = vmax.xlane.f32.xlu0 %v446
      %v448 = vpop.xlane.xlu0 %447
      %v449 = vsub.f32 %v445, %v448
      %v450 = vmul.f32 %v449, 1.442695
      %v451 = vpow.pop %v450
      %v452 = vsel %vm175, %v451, 0.0
      %453 = vadd.xlane.f32.xlu0 %v452
      %v454 = vpop.xlane.xlu0 %453
      %v455 = vpack.c.bf16 %v451, %v451
      %456 = vrot.lane.b32.xlu0 %v172, 48
      %v457 = vpop.permute.xlu0 %456
      %v459 = vsel %vm175, %v455, 0
      %v462 = vsel %vm238, %v457, 0
      %464 = vmatprep.subr.bf16.mxu0 0
      %465 = vmatpush1.bf16.msra.mxu0 %v462
      %466 = vmatprep.subr.bf16.mxu0 0
      %467 = vmatpush1.bf16.msra.mxu0 0
      %468 = vmatprep.subr.bf16.mxu0 0
      %469 = vmatpush1.bf16.msra.mxu0 0
      %470 = vmatprep.subr.bf16.mxu0 0
      %471 = vmatpush1.bf16.msra.mxu0 0
      %472 = vmatprep.subr.bf16.mxu0 0
      %473 = vmatpush1.bf16.msra.mxu0 0
      %474 = vmatprep.subr.bf16.mxu0 0
      %475 = vmatpush1.bf16.msra.mxu0 0
      %476 = vmatprep.subr.bf16.mxu0 0
      %477 = vmatpush1.bf16.msra.mxu0 0
      %478 = vmatprep.subr.bf16.mxu0 0
      %479 = vmatpush1.bf16.msra.mxu0 0
      %480 = vmatprep.subr.bf16.mxu0 0
      %481 = vmatpush1.bf16.msra.mxu0 0
      %482 = vmatprep.subr.bf16.mxu0 0
      %483 = vmatpush1.bf16.msra.mxu0 0
      %484 = vmatprep.subr.bf16.mxu0 0
      %485 = vmatpush1.bf16.msra.mxu0 0
      %486 = vmatprep.subr.bf16.mxu0 0
      %487 = vmatpush1.bf16.msra.mxu0 0
      %488 = vmatprep.subr.bf16.mxu0 0
      %489 = vmatpush1.bf16.msra.mxu0 0
      %490 = vmatprep.subr.bf16.mxu0 0
      %491 = vmatpush1.bf16.msra.mxu0 0
      %492 = vmatprep.subr.bf16.mxu0 0
      %493 = vmatpush1.bf16.msra.mxu0 0
      %494 = vmatprep.subr.bf16.mxu0 0
      %495 = vmatpush1.bf16.msra.mxu0 0
      %496 = vmatprep.mubr.bf16.mxu0 0
      %497 = vmatmul.mubr.bf16.gmra.mrb[0].mxu0 %v459
      %v498 = vpop.f32.mrb[0].mxu0
      %v499 = vadd.f32 0.0, %v498
      %v500 = vpop.f32.mrb[0].mxu0
      %v501 = vpop.f32.mrb[0].mxu0
      %v502 = vpop.f32.mrb[0].mxu0
      %503 = vdwg.mxu0
      %v504 = vrcp.pop %v454
      %v505 = vmul.f32 %v499, %v504
      %506 = vrot.lane.b32.xlu0 %v172, 104
      %v507 = vpop.permute.xlu0 %506
      %508 = vrot.lane.b32.xlu0 %v172, 72
      %v509 = vpop.permute.xlu0 %508
      %v511 = vsel %vm175, %v507, 0
      %v514 = vsel %vm175, %v509, 0
      %516 = vmatprep.subr.bf16.mxu0 0
      %517 = vmatpush1.bf16.xpose.msra.mxu0 %v514
      %518 = vmatprep.subr.bf16.mxu0 0
      %519 = vmatpush1.bf16.xpose.msra.mxu0 0
      %520 = vmatprep.subr.bf16.mxu0 0
      %521 = vmatpush1.bf16.xpose.msra.mxu0 0
      %522 = vmatprep.subr.bf16.mxu0 0
      %523 = vmatpush1.bf16.xpose.msra.mxu0 0
      %524 = vmatprep.subr.bf16.mxu0 0
      %525 = vmatpush1.bf16.xpose.msra.mxu0 0
      %526 = vmatprep.subr.bf16.mxu0 0
      %527 = vmatpush1.bf16.xpose.msra.mxu0 0
      %528 = vmatprep.subr.bf16.mxu0 0
      %529 = vmatpush1.bf16.xpose.msra.mxu0 0
      %530 = vmatprep.subr.bf16.mxu0 0
      %531 = vmatpush1.bf16.xpose.msra.mxu0 0
      %532 = vmatprep.subr.bf16.mxu0 0
      %533 = vmatpush1.bf16.xpose.msra.mxu0 0
      %534 = vmatprep.subr.bf16.mxu0 0
      %535 = vmatpush1.bf16.xpose.msra.mxu0 0
      %536 = vmatprep.subr.bf16.mxu0 0
      %537 = vmatpush1.bf16.xpose.msra.mxu0 0
      %538 = vmatprep.subr.bf16.mxu0 0
      %539 = vmatpush1.bf16.xpose.msra.mxu0 0
      %540 = vmatprep.subr.bf16.mxu0 0
      %541 = vmatpush1.bf16.xpose.msra.mxu0 0
      %542 = vmatprep.subr.bf16.mxu0 0
      %543 = vmatpush1.bf16.xpose.msra.mxu0 0
      %544 = vmatprep.subr.bf16.mxu0 0
      %545 = vmatpush1.bf16.xpose.msra.mxu0 0
      %546 = vmatprep.subr.bf16.mxu0 0
      %547 = vmatpush1.bf16.xpose.msra.mxu0 0
      %548 = vmatprep.mubr.bf16.mxu0 0
      %549 = vmatmul.mubr.bf16.gmra.mrb[0].mxu0 %v511
      %v550 = vpop.f32.mrb[0].mxu0
      %v551 = vadd.f32 0.0, %v550
      %v552 = vpop.f32.mrb[0].mxu0
      %v553 = vpop.f32.mrb[0].mxu0
      %v554 = vpop.f32.mrb[0].mxu0
      %555 = vdwg.mxu0
      %v556 = vsel %vm169, %v551, -1e+30
      %v557 = vsel %vm175, %v556, -inf
      %558 = vmax.xlane.f32.xlu0 %v557
      %v559 = vpop.xlane.xlu0 %558
      %v560 = vsub.f32 %v556, %v559
      %v561 = vmul.f32 %v560, 1.442695
      %v562 = vpow.pop %v561
      %v563 = vsel %vm175, %v562, 0.0
      %564 = vadd.xlane.f32.xlu0 %v563
      %v565 = vpop.xlane.xlu0 %564
      %v566 = vpack.c.bf16 %v562, %v562
      %567 = vrot.lane.b32.xlu0 %v172, 40
      %v568 = vpop.permute.xlu0 %567
      %v570 = vsel %vm175, %v566, 0
      %v573 = vsel %vm238, %v568, 0
      %575 = vmatprep.subr.bf16.mxu0 0
      %576 = vmatpush1.bf16.msra.mxu0 %v573
      %577 = vmatprep.subr.bf16.mxu0 0
      %578 = vmatpush1.bf16.msra.mxu0 0
      %579 = vmatprep.subr.bf16.mxu0 0
      %580 = vmatpush1.bf16.msra.mxu0 0
      %581 = vmatprep.subr.bf16.mxu0 0
      %582 = vmatpush1.bf16.msra.mxu0 0
      %583 = vmatprep.subr.bf16.mxu0 0
      %584 = vmatpush1.bf16.msra.mxu0 0
      %585 = vmatprep.subr.bf16.mxu0 0
      %586 = vmatpush1.bf16.msra.mxu0 0
      %587 = vmatprep.subr.bf16.mxu0 0
      %588 = vmatpush1.bf16.msra.mxu0 0
      %589 = vmatprep.subr.bf16.mxu0 0
      %590 = vmatpush1.bf16.msra.mxu0 0
      %591 = vmatprep.subr.bf16.mxu0 0
      %592 = vmatpush1.bf16.msra.mxu0 0
      %593 = vmatprep.subr.bf16.mxu0 0
      %594 = vmatpush1.bf16.msra.mxu0 0
      %595 = vmatprep.subr.bf16.mxu0 0
      %596 = vmatpush1.bf16.msra.mxu0 0
      %597 = vmatprep.subr.bf16.mxu0 0
      %598 = vmatpush1.bf16.msra.mxu0 0
      %599 = vmatprep.subr.bf16.mxu0 0
      %600 = vmatpush1.bf16.msra.mxu0 0
      %601 = vmatprep.subr.bf16.mxu0 0
      %602 = vmatpush1.bf16.msra.mxu0 0
      %603 = vmatprep.subr.bf16.mxu0 0
      %604 = vmatpush1.bf16.msra.mxu0 0
      %605 = vmatprep.subr.bf16.mxu0 0
      %606 = vmatpush1.bf16.msra.mxu0 0
      %607 = vmatprep.mubr.bf16.mxu0 0
      %608 = vmatmul.mubr.bf16.gmra.mrb[0].mxu0 %v570
      %v609 = vpop.f32.mrb[0].mxu0
      %v610 = vadd.f32 0.0, %v609
      %v611 = vpop.f32.mrb[0].mxu0
      %v612 = vpop.f32.mrb[0].mxu0
      %v613 = vpop.f32.mrb[0].mxu0
      %614 = vdwg.mxu0
      %v615 = vrcp.pop %v565
      %v616 = vmul.f32 %v610, %v615
      %618 = vrot.lane.b32.xlu0 %v394, 8
      %v619 = vpop.permute.xlu0 %618
      %622 = vrot.lane.b32.xlu0 %v505, 16
      %v623 = vpop.permute.xlu0 %622
      %626 = vrot.lane.b32.xlu0 %v616, 24
      %v627 = vpop.permute.xlu0 %626
      %v629 = vsel %vm175, %v283, %v619
      %vm630 = vcmask 130048
      %v631 = vsel %vm630, %v629, %v623
      %vm632 = vcmask 195584
      %v633 = vsel %vm632, %v631, %v627
      %v634 = vpack.c.bf16 %v633, %v633
      %vm635 = vcmask 257024
      %636 = vst.msk [vmem:[%s152] sm:$0xf] %vm635, %v634
      %p637 = scmp.lt.s32.totalorder %s13, 1
      %s638 = scalar_select %p637, %s13, 1
      %s639 = smul.addr %s638, 4
      %s640 = scalar_lea.vmem %s2, %s639
      // Predicated region
      $region29: #{_lambda_.24} parent=27 // pred_check
        %p641 = pneg %p83
      $region30: #{_lambda_.24} parent=27 // pred_check_branch
        %643 = sbr.rel (%p641) target = $region32
      $region31: #{_lambda_.24} parent=27 // pred_region
        _
      $region32: #{_lambda_.24} parent=27 // pred_fallthru
        _
    $region28: #{_lambda_.24} parent=5 // pred_fallthru
      _
    %p644 = scmp.le.s32.totalorder 2, %s8
    // Predicated region
    $region33: #{_lambda_.24} parent=5 // pred_check
      %p645 = pneg %p644
    $region34: #{_lambda_.24} parent=5 // pred_check_branch
      %647 = sbr.rel (%p645) target = $region36
    $region35: #{_lambda_.24} parent=5 // pred_region
      %s648 = ssub.s32 %s8, 2
      // Predicated region
      $region37: #{_lambda_.24} parent=35 // pred_check
        %p649 = pneg %p89
      $region38: #{_lambda_.24} parent=35 // pred_check_branch
        %651 = sbr.rel (%p649) target = $region40
      $region39: #{_lambda_.24} parent=35 // pred_region
        %p652 = scmp.lt.s32.totalorder %s14, 1
        %s653 = scalar_select %p652, %s14, 1
        %s654 = smul.addr %s653, 4
        %s655 = scalar_lea.vmem %s2, %s654
      $region40: #{_lambda_.24} parent=35 // pred_fallthru
        _
    $region36: #{_lambda_.24} parent=5 // pred_fallthru
      _
  $region6: #{_lambda_.24} parent=0 // loop_footer
    %s12 = sadd.s32 1, %s8
  $region7: #{_lambda_.24} parent=0 // loop_footer_branch
    %7 = sbr.rel target = $region3
  $region8: #{_lambda_.24} parent=0 // loop_exit
    _

// kernel: _lambda_.26
$region0: #{_lambda_.26}
  #allocation0 [shape = 'u32[]', space=smem, size = 0x4, offset = 0x4, fixed_abs, tag = 'smem constant byte address 0x4 - core index']
  #allocation1 [shape = 'u32[144,128]{1,0:T(1,128)}', space=vmem, size = 0x12000, scoped, tag = 'internal scratch']
  %s0 = inlined_call_operand.vmem [shape: bf16[16,32], index: 0, kind: input, shape index: {}]
  %s1 = inlined_call_operand.vmem [shape: bf16[32,32], index: 1, kind: input, shape index: {}]
  %s2 = inlined_call_operand.vmem [shape: f32[1,32], index: 2, kind: input, shape index: {}]
  %s3 = inlined_call_operand.vmem [shape: bf16[16,32], index: 3, kind: output, shape index: {}]
  %s4 = sld [smem:[#allocation0]]
  $region22: #{_lambda_.26} parent=0
    _
  %s6 = ssub.s32 1, %s4
  %s7 = scalar_select 0, %s6, %s4
  // Predicated region
  $region2: #{_lambda_.26} parent=0 // pred_check
    _
  $region3: #{_lambda_.26} parent=0 // pred_check_branch
    %9 = sbr.rel (0) target = $region5
  $region4: #{_lambda_.26} parent=0 // pred_region
    _
  $region5: #{_lambda_.26} parent=0 // pred_fallthru
    _
  // Predicated region
  $region6: #{_lambda_.26} parent=0 // pred_check
    _
  $region7: #{_lambda_.26} parent=0 // pred_check_branch
    %11 = sbr.rel (0) target = $region9
  $region8: #{_lambda_.26} parent=0 // pred_region
    _
  $region9: #{_lambda_.26} parent=0 // pred_fallthru
    _
  // Predicated region
  $region10: #{_lambda_.26} parent=0 // pred_check
    _
  $region11: #{_lambda_.26} parent=0 // pred_check_branch
    %13 = sbr.rel (0) target = $region13
  $region12: #{_lambda_.26} parent=0 // pred_region
    _
  $region13: #{_lambda_.26} parent=0 // pred_fallthru
    _
  %v15 = vld [vmem:[%s0] sm:$0xf]
  %v16 = vld [vmem:[%s0 + $0x4] sm:$0xf]
  %v17 = vld [vmem:[%s1] sm:$0xf]
  %v18 = vld [vmem:[%s1 + $0x4] sm:$0xf]
  %v19 = vld [vmem:[%s1 + $0x8] sm:$0xf]
  %v20 = vld [vmem:[%s1 + $0xc] sm:$0xf]
  %v21 = vld [vmem:[%s2] sm:$0x1]
  %v23 = vlaneseq
  %v24 = vshrl.u32 %v23, 7
  %v25 = vsub.s32 0, %v24
  %v26 = vrot.slane %v21, %v25
  %v30 = vunpack.c.l.b16 %v15
  %v31 = vunpack.c.l.b16 %v16
  %v32 = vpack.c.b16 %v31, %v30
  %v37 = vunpack.c.l.b16 %v17
  %v38 = vunpack.c.l.b16 %v18
  %v39 = vunpack.c.l.b16 %v19
  %v40 = vunpack.c.l.b16 %v20
  %v41 = vpack.c.b16 %v38, %v37
  %v42 = vpack.c.b16 %v40, %v39
  %vm45 = vcmask 261120
  %v47 = vsel %vm45, %v32, 0
  %49 = vmatprep.subr.bf16.mxu0 0
  %50 = vmatpush1.bf16.msra.mxu0 %v41
  %51 = vmatprep.subr.bf16.mxu0 0
  %52 = vmatpush1.bf16.msra.mxu0 %v42
  %53 = vmatprep.subr.bf16.mxu0 0
  %54 = vmatpush1.bf16.msra.mxu0 0
  %55 = vmatprep.subr.bf16.mxu0 0
  %56 = vmatpush1.bf16.msra.mxu0 0
  %57 = vmatprep.subr.bf16.mxu0 0
  %58 = vmatpush1.bf16.msra.mxu0 0
  %59 = vmatprep.subr.bf16.mxu0 0
  %60 = vmatpush1.bf16.msra.mxu0 0
  %61 = vmatprep.subr.bf16.mxu0 0
  %62 = vmatpush1.bf16.msra.mxu0 0
  %63 = vmatprep.subr.bf16.mxu0 0
  %64 = vmatpush1.bf16.msra.mxu0 0
  %65 = vmatprep.subr.bf16.mxu0 0
  %66 = vmatpush1.bf16.msra.mxu0 0
  %67 = vmatprep.subr.bf16.mxu0 0
  %68 = vmatpush1.bf16.msra.mxu0 0
  %69 = vmatprep.subr.bf16.mxu0 0
  %70 = vmatpush1.bf16.msra.mxu0 0
  %71 = vmatprep.subr.bf16.mxu0 0
  %72 = vmatpush1.bf16.msra.mxu0 0
  %73 = vmatprep.subr.bf16.mxu0 0
  %74 = vmatpush1.bf16.msra.mxu0 0
  %75 = vmatprep.subr.bf16.mxu0 0
  %76 = vmatpush1.bf16.msra.mxu0 0
  %77 = vmatprep.subr.bf16.mxu0 0
  %78 = vmatpush1.bf16.msra.mxu0 0
  %79 = vmatprep.subr.bf16.mxu0 0
  %80 = vmatpush1.bf16.msra.mxu0 0
  %81 = vmatprep.mubr.bf16.mxu0 0
  %82 = vmatmul.mubr.bf16.gmra.mrb[0].mxu0 %v47
  %v83 = vpop.f32.mrb[0].mxu0
  %v84 = vadd.f32 %v26, %v83
  %v85 = vpop.f32.mrb[0].mxu0
  %v86 = vpop.f32.mrb[0].mxu0
  %v87 = vadd.f32 %v26, %v86
  %v88 = vpop.f32.mrb[0].mxu0
  %89 = vdwg.mxu0
  %v90 = vpack.c.bf16 %v87, %v84
  %v92 = vunpack.c.l.b16 %v90
  %v93 = vunpack.c.h.b16 %v90
  %v94 = vpack.c.b16 %v92, %v92
  %v95 = vpack.c.b16 %v93, %v93
  %vm98 = vcmask 257024
  %99 = vst.msk [vmem:[%s3] sm:$0xf] %vm98, %v94
  %100 = vst.msk [vmem:[%s3 + $0x4] sm:$0xf] %vm98, %v95
  // Predicated region
  $region14: #{_lambda_.26} parent=0 // pred_check
    _
  $region15: #{_lambda_.26} parent=0 // pred_check_branch
    %102 = sbr.rel (0) target = $region17
  $region16: #{_lambda_.26} parent=0 // pred_region
    _
  $region17: #{_lambda_.26} parent=0 // pred_fallthru
    _
  // Predicated region
  $region18: #{_lambda_.26} parent=0 // pred_check
    _
  $region19: #{_lambda_.26} parent=0 // pred_check_branch
    %104 = sbr.rel (0) target = $region21
  $region20: #{_lambda_.26} parent=0 // pred_region
    _
  $region21: #{_lambda_.26} parent=0 // pred_fallthru
    _

// kernel: _lambda_.21
$region0: #{_lambda_.21}
  #allocation0 [shape = 'u32[]', space=smem, size = 0x4, offset = 0x4, fixed_abs, tag = 'smem constant byte address 0x4 - core index']
  #allocation1 [shape = 'u32[144,128]{1,0:T(1,128)}', space=vmem, size = 0x12000, scoped, tag = 'internal scratch']
  %s0 = inlined_call_operand.vmem [shape: bf16[32,16], index: 0, kind: input, shape index: {}]
  %s1 = inlined_call_operand.vmem [shape: bf16[16,32], index: 1, kind: input, shape index: {}]
  %s2 = inlined_call_operand.vmem [shape: f32[1,32], index: 2, kind: input, shape index: {}]
  %s3 = inlined_call_operand.vmem [shape: bf16[32,32], index: 3, kind: output, shape index: {}]
  %s4 = sld [smem:[#allocation0]]
  $region22: #{_lambda_.21} parent=0
    _
  %s6 = ssub.s32 1, %s4
  %s7 = scalar_select 0, %s6, %s4
  // Predicated region
  $region2: #{_lambda_.21} parent=0 // pred_check
    _
  $region3: #{_lambda_.21} parent=0 // pred_check_branch
    %9 = sbr.rel (0) target = $region5
  $region4: #{_lambda_.21} parent=0 // pred_region
    _
  $region5: #{_lambda_.21} parent=0 // pred_fallthru
    _
  // Predicated region
  $region6: #{_lambda_.21} parent=0 // pred_check
    _
  $region7: #{_lambda_.21} parent=0 // pred_check_branch
    %11 = sbr.rel (0) target = $region9
  $region8: #{_lambda_.21} parent=0 // pred_region
    _
  $region9: #{_lambda_.21} parent=0 // pred_fallthru
    _
  // Predicated region
  $region10: #{_lambda_.21} parent=0 // pred_check
    _
  $region11: #{_lambda_.21} parent=0 // pred_check_branch
    %13 = sbr.rel (0) target = $region13
  $region12: #{_lambda_.21} parent=0 // pred_region
    _
  $region13: #{_lambda_.21} parent=0 // pred_fallthru
    _
  %v15 = vld [vmem:[%s0] sm:$0xf]
  %v16 = vld [vmem:[%s0 + $0x4] sm:$0xf]
  %v17 = vld [vmem:[%s0 + $0x8] sm:$0xf]
  %v18 = vld [vmem:[%s0 + $0xc] sm:$0xf]
  %v19 = vld [vmem:[%s1] sm:$0xf]
  %v20 = vld [vmem:[%s1 + $0x4] sm:$0xf]
  %v21 = vld [vmem:[%s2] sm:$0x1]
  %v23 = vlaneseq
  %v24 = vshrl.u32 %v23, 7
  %v25 = vsub.s32 0, %v24
  %v26 = vrot.slane %v21, %v25
  %v32 = vunpack.c.l.b16 %v15
  %v33 = vunpack.c.l.b16 %v16
  %v34 = vunpack.c.l.b16 %v17
  %v35 = vunpack.c.l.b16 %v18
  %v36 = vpack.c.b16 %v33, %v32
  %v37 = vpack.c.b16 %v35, %v34
  %v40 = vunpack.c.l.b16 %v19
  %v41 = vunpack.c.l.b16 %v20
  %v42 = vpack.c.b16 %v41, %v40
  %vm44 = vcmask 130048
  %v46 = vsel %vm44, %v36, 0
  %v49 = vsel %vm44, %v37, 0
  %51 = vmatprep.subr.bf16.mxu0 0
  %52 = vmatpush1.bf16.msra.mxu0 %v42
  %53 = vmatprep.subr.bf16.mxu0 0
  %54 = vmatpush1.bf16.msra.mxu0 0
  %55 = vmatprep.subr.bf16.mxu0 0
  %56 = vmatpush1.bf16.msra.mxu0 0
  %57 = vmatprep.subr.bf16.mxu0 0
  %58 = vmatpush1.bf16.msra.mxu0 0
  %59 = vmatprep.subr.bf16.mxu0 0
  %60 = vmatpush1.bf16.msra.mxu0 0
  %61 = vmatprep.subr.bf16.mxu0 0
  %62 = vmatpush1.bf16.msra.mxu0 0
  %63 = vmatprep.subr.bf16.mxu0 0
  %64 = vmatpush1.bf16.msra.mxu0 0
  %65 = vmatprep.subr.bf16.mxu0 0
  %66 = vmatpush1.bf16.msra.mxu0 0
  %67 = vmatprep.subr.bf16.mxu0 0
  %68 = vmatpush1.bf16.msra.mxu0 0
  %69 = vmatprep.subr.bf16.mxu0 0
  %70 = vmatpush1.bf16.msra.mxu0 0
  %71 = vmatprep.subr.bf16.mxu0 0
  %72 = vmatpush1.bf16.msra.mxu0 0
  %73 = vmatprep.subr.bf16.mxu0 0
  %74 = vmatpush1.bf16.msra.mxu0 0
  %75 = vmatprep.subr.bf16.mxu0 0
  %76 = vmatpush1.bf16.msra.mxu0 0
  %77 = vmatprep.subr.bf16.mxu0 0
  %78 = vmatpush1.bf16.msra.mxu0 0
  %79 = vmatprep.subr.bf16.mxu0 0
  %80 = vmatpush1.bf16.msra.mxu0 0
  %81 = vmatprep.subr.bf16.mxu0 0
  %82 = vmatpush1.bf16.msra.mxu0 0
  %83 = vmatprep.mubr.bf16.mxu0 0
  %84 = vmatmul.mubr.bf16.gmra.mrb[0].mxu0 %v46
  %v85 = vpop.f32.mrb[0].mxu0
  %v86 = vadd.f32 %v26, %v85
  %v87 = vpop.f32.mrb[0].mxu0
  %v88 = vpop.f32.mrb[0].mxu0
  %v89 = vadd.f32 %v26, %v88
  %v90 = vpop.f32.mrb[0].mxu0
  %91 = vmatprep.mubr.bf16.mxu0 0
  %92 = vmatmul.mubr.bf16.gmra.mrb[0].mxu0 %v49
  %v93 = vpop.f32.mrb[0].mxu0
  %v94 = vadd.f32 %v26, %v93
  %v95 = vpop.f32.mrb[0].mxu0
  %v96 = vpop.f32.mrb[0].mxu0
  %v97 = vadd.f32 %v26, %v96
  %v98 = vpop.f32.mrb[0].mxu0
  %99 = vdwg.mxu0
  %v100 = vpack.c.bf16 %v89, %v86
  %v101 = vpack.c.bf16 %v97, %v94
  %v104 = vunpack.c.l.b16 %v100
  %v105 = vunpack.c.h.b16 %v100
  %v106 = vunpack.c.l.b16 %v101
  %v107 = vunpack.c.h.b16 %v101
  %v108 = vpack.c.b16 %v104, %v104
  %v109 = vpack.c.b16 %v105, %v105
  %v110 = vpack.c.b16 %v106, %v106
  %v111 = vpack.c.b16 %v107, %v107
  %vm116 = vcmask 257024
  %117 = vst.msk [vmem:[%s3] sm:$0xf] %vm116, %v108
  %118 = vst.msk [vmem:[%s3 + $0x4] sm:$0xf] %vm116, %v109
  %119 = vst.msk [vmem:[%s3 + $0x8] sm:$0xf] %vm116, %v110
  %120 = vst.msk [vmem:[%s3 + $0xc] sm:$0xf] %vm116, %v111
  // Predicated region
  $region14: #{_lambda_.21} parent=0 // pred_check
    _
  $region15: #{_lambda_.21} parent=0 // pred_check_branch
    %122 = sbr.rel (0) target = $region17
  $region16: #{_lambda_.21} parent=0 // pred_region
    _
  $region17: #{_lambda_.21} parent=0 // pred_fallthru
    _
  // Predicated region
  $region18: #{_lambda_.21} parent=0 // pred_check
    _
  $region19: #{_lambda_.21} parent=0 // pred_check_branch
    %124 = sbr.rel (0) target = $region21
  $region20: #{_lambda_.21} parent=0 // pred_region
    _
  $region21: #{_lambda_.21} parent=0 // pred_fallthru
    _

// kernel: _lambda_.27
$region0: #{_lambda_.27}
  #allocation0 [shape = 'u32[]', space=smem, size = 0x4, offset = 0x4, fixed_abs, tag = 'smem constant byte address 0x4 - core index']
  #allocation1 [shape = 'u32[144,128]{1,0:T(1,128)}', space=vmem, size = 0x12000, scoped, tag = 'internal scratch']
  %s0 = inlined_call_operand.vmem [shape: bf16[32,32], index: 0, kind: input, shape index: {}]
  %s1 = inlined_call_operand.vmem [shape: bf16[32,64], index: 1, kind: input, shape index: {}]
  %s2 = inlined_call_operand.vmem [shape: f32[1,64], index: 2, kind: input, shape index: {}]
  %s3 = inlined_call_operand.vmem [shape: bf16[32,64], index: 3, kind: output, shape index: {}]
  %s4 = sld [smem:[#allocation0]]
  $region22: #{_lambda_.27} parent=0
    _
  %s6 = ssub.s32 1, %s4
  %s7 = scalar_select 0, %s6, %s4
  // Predicated region
  $region2: #{_lambda_.27} parent=0 // pred_check
    _
  $region3: #{_lambda_.27} parent=0 // pred_check_branch
    %9 = sbr.rel (0) target = $region5
  $region4: #{_lambda_.27} parent=0 // pred_region
    _
  $region5: #{_lambda_.27} parent=0 // pred_fallthru
    _
  // Predicated region
  $region6: #{_lambda_.27} parent=0 // pred_check
    _
  $region7: #{_lambda_.27} parent=0 // pred_check_branch
    %11 = sbr.rel (0) target = $region9
  $region8: #{_lambda_.27} parent=0 // pred_region
    _
  $region9: #{_lambda_.27} parent=0 // pred_fallthru
    _
  // Predicated region
  $region10: #{_lambda_.27} parent=0 // pred_check
    _
  $region11: #{_lambda_.27} parent=0 // pred_check_branch
    %13 = sbr.rel (0) target = $region13
  $region12: #{_lambda_.27} parent=0 // pred_region
    _
  $region13: #{_lambda_.27} parent=0 // pred_fallthru
    _
  %v15 = vld [vmem:[%s0] sm:$0xf]
  %v16 = vld [vmem:[%s0 + $0x4] sm:$0xf]
  %v17 = vld [vmem:[%s0 + $0x8] sm:$0xf]
  %v18 = vld [vmem:[%s0 + $0xc] sm:$0xf]
  %v19 = vld [vmem:[%s1] sm:$0xf]
  %v20 = vld [vmem:[%s1 + $0x4] sm:$0xf]
  %v21 = vld [vmem:[%s1 + $0x8] sm:$0xf]
  %v22 = vld [vmem:[%s1 + $0xc] sm:$0xf]
  %v23 = vld [vmem:[%s2] sm:$0x1]
  %v25 = vlaneseq
  %v26 = vshrl.u32 %v25, 7
  %v27 = vsub.s32 0, %v26
  %v28 = vrot.slane %v23, %v27
  %v34 = vunpack.c.l.b16 %v15
  %v35 = vunpack.c.l.b16 %v16
  %v36 = vunpack.c.l.b16 %v17
  %v37 = vunpack.c.l.b16 %v18
  %v38 = vpack.c.b16 %v35, %v34
  %v39 = vpack.c.b16 %v37, %v36
  %v44 = vunpack.c.l.b16 %v19
  %v45 = vunpack.c.l.b16 %v20
  %v46 = vunpack.c.l.b16 %v21
  %v47 = vunpack.c.l.b16 %v22
  %v48 = vpack.c.b16 %v45, %v44
  %v49 = vpack.c.b16 %v47, %v46
  %vm52 = vcmask 261120
  %v54 = vsel %vm52, %v38, 0
  %v57 = vsel %vm52, %v39, 0
  %59 = vmatprep.subr.bf16.mxu0 0
  %60 = vmatpush1.bf16.msra.mxu0 %v48
  %61 = vmatprep.subr.bf16.mxu0 0
  %62 = vmatpush1.bf16.msra.mxu0 %v49
  %63 = vmatprep.subr.bf16.mxu0 0
  %64 = vmatpush1.bf16.msra.mxu0 0
  %65 = vmatprep.subr.bf16.mxu0 0
  %66 = vmatpush1.bf16.msra.mxu0 0
  %67 = vmatprep.subr.bf16.mxu0 0
  %68 = vmatpush1.bf16.msra.mxu0 0
  %69 = vmatprep.subr.bf16.mxu0 0
  %70 = vmatpush1.bf16.msra.mxu0 0
  %71 = vmatprep.subr.bf16.mxu0 0
  %72 = vmatpush1.bf16.msra.mxu0 0
  %73 = vmatprep.subr.bf16.mxu0 0
  %74 = vmatpush1.bf16.msra.mxu0 0
  %75 = vmatprep.subr.bf16.mxu0 0
  %76 = vmatpush1.bf16.msra.mxu0 0
  %77 = vmatprep.subr.bf16.mxu0 0
  %78 = vmatpush1.bf16.msra.mxu0 0
  %79 = vmatprep.subr.bf16.mxu0 0
  %80 = vmatpush1.bf16.msra.mxu0 0
  %81 = vmatprep.subr.bf16.mxu0 0
  %82 = vmatpush1.bf16.msra.mxu0 0
  %83 = vmatprep.subr.bf16.mxu0 0
  %84 = vmatpush1.bf16.msra.mxu0 0
  %85 = vmatprep.subr.bf16.mxu0 0
  %86 = vmatpush1.bf16.msra.mxu0 0
  %87 = vmatprep.subr.bf16.mxu0 0
  %88 = vmatpush1.bf16.msra.mxu0 0
  %89 = vmatprep.subr.bf16.mxu0 0
  %90 = vmatpush1.bf16.msra.mxu0 0
  %91 = vmatprep.mubr.bf16.mxu0 0
  %92 = vmatmul.mubr.bf16.gmra.mrb[0].mxu0 %v54
  %v93 = vpop.f32.mrb[0].mxu0
  %v94 = vadd.f32 %v28, %v93
  %v95 = vpop.f32.mrb[0].mxu0
  %v96 = vpop.f32.mrb[0].mxu0
  %v97 = vadd.f32 %v28, %v96
  %v98 = vpop.f32.mrb[0].mxu0
  %99 = vmatprep.mubr.bf16.mxu0 0
  %100 = vmatmul.mubr.bf16.gmra.mrb[0].mxu0 %v57
  %v101 = vpop.f32.mrb[0].mxu0
  %v102 = vadd.f32 %v28, %v101
  %v103 = vpop.f32.mrb[0].mxu0
  %v104 = vpop.f32.mrb[0].mxu0
  %v105 = vadd.f32 %v28, %v104
  %v106 = vpop.f32.mrb[0].mxu0
  %107 = vdwg.mxu0
  %v108 = vpack.c.bf16 %v97, %v94
  %v109 = vpack.c.bf16 %v105, %v102
  %v112 = vunpack.c.l.b16 %v108
  %v113 = vunpack.c.h.b16 %v108
  %v114 = vunpack.c.l.b16 %v109
  %v115 = vunpack.c.h.b16 %v109
  %v116 = vpack.c.b16 %v112, %v112
  %v117 = vpack.c.b16 %v113, %v113
  %v118 = vpack.c.b16 %v114, %v114
  %v119 = vpack.c.b16 %v115, %v115
  %vm124 = vcmask 519168
  %125 = vst.msk [vmem:[%s3] sm:$0xf] %vm124, %v116
  %126 = vst.msk [vmem:[%s3 + $0x4] sm:$0xf] %vm124, %v117
  %127 = vst.msk [vmem:[%s3 + $0x8] sm:$0xf] %vm124, %v118
  %128 = vst.msk [vmem:[%s3 + $0xc] sm:$0xf] %vm124, %v119
  // Predicated region
  $region14: #{_lambda_.27} parent=0 // pred_check
    _
  $region15: #{_lambda_.27} parent=0 // pred_check_branch
    %130 = sbr.rel (0) target = $region17
  $region16: #{_lambda_.27} parent=0 // pred_region
    _
  $region17: #{_lambda_.27} parent=0 // pred_fallthru
    _
  // Predicated region
  $region18: #{_lambda_.27} parent=0 // pred_check
    _
  $region19: #{_lambda_.27} parent=0 // pred_check_branch
    %132 = sbr.rel (0) target = $region21
  $region20: #{_lambda_.27} parent=0 // pred_region
    _
  $region21: #{_lambda_.27} parent=0 // pred_fallthru
    _

// kernel: _lambda_.28
$region0: #{_lambda_.28}
  #allocation0 [shape = 'u32[]', space=smem, size = 0x4, offset = 0x4, fixed_abs, tag = 'smem constant byte address 0x4 - core index']
  #allocation1 [shape = 'u32[144,128]{1,0:T(1,128)}', space=vmem, size = 0x12000, scoped, tag = 'internal scratch']
  %s0 = inlined_call_operand.vmem [shape: s32[2,1,1], index: 0, kind: input, shape index: {}]
  %s1 = inlined_call_operand.vmem [shape: bf16[2,8,32], index: 1, kind: input, shape index: {}]
  %s2 = inlined_call_operand.vmem [shape: bf16[2,16,64], index: 2, kind: input, shape index: {}]
  %s3 = inlined_call_operand.vmem [shape: bf16[2,8,32], index: 3, kind: output, shape index: {}]
  %s4 = sld [smem:[#allocation0]]
  $region45: #{_lambda_.28} parent=0
    _
  %s6 = ssub.s32 1, %s4
  %s7 = scalar_select 0, %s6, %s4
  loop: start=0, step=1, limit=4
  $region2: #{_lambda_.28} parent=0 // loop_pre_header
    _
  $region3: #{_lambda_.28} parent=0 // loop_header
    %s9 = sphi 0, %s13
    %p10 = scmp.ge.s32.totalorder %s9, 4
    %s19 = sphi 0, %s21
    %s22 = sphi 0, %s19
    %s23 = sphi 0, %s22
    %s39 = sphi 0, %s23
    %s45 = sphi 0, %s47
    %s48 = sphi 0, %s45
    %s49 = sphi 0, %s48
    %s65 = sphi 0, %s49
    %s71 = sphi 0, %s73
    %s74 = sphi 0, %s71
    %s75 = sphi 0, %s74
    %s91 = sphi 0, %s75
    %s97 = sphi 0, %s99
    %s100 = sphi 0, %s97
    %s101 = sphi 0, %s100
    %s117 = sphi 0, %s101
  $region4: #{_lambda_.28} parent=0 // loop_header_branch
    %12 = sbr.rel (%p10) target = $region8
  $region5: #{_lambda_.28} parent=0 // loop_body
    %s14 = ssub.s32 %s9, 1
    %s15 = ssub.s32 %s9, 2
    %s16 = sadd.s32 %s9, 1
    %s17 = ssub.s32 %s9, %s16
    %p18 = scmp.eq.s32.totalorder %s17, 0
    %s20 = sadd.s32 %s19, 1
    %s21 = scalar_select %p18, %s19, %s20
    %p24 = pneg %p18
    %p25 = scmp.eq.s32.totalorder %s9, 1
    %p26 = por %p24, %p25
    %p27 = scmp.ne.s32.totalorder %s19, %s22
    %p28 = scmp.eq.s32.totalorder %s9, 0
    %p29 = por %p27, %p28
    %p30 = scmp.ne.s32.totalorder %s19, %s22
    %p31 = scmp.eq.s32.totalorder %s14, 1
    %p32 = por %p30, %p31
    %p33 = scmp.ne.s32.totalorder %s22, %s23
    %p34 = scmp.eq.s32.totalorder %s14, 0
    %p35 = por %p33, %p34
    %p36 = scmp.ne.s32.totalorder %s22, %s23
    %p37 = scmp.eq.s32.totalorder %s15, 1
    %p38 = por %p36, %p37
    %p40 = scmp.ne.s32.totalorder %s23, %s39
    %p41 = scmp.eq.s32.totalorder %s15, 0
    %p42 = por %p40, %p41
    %s43 = ssub.s32 %s9, %s16
    %p44 = scmp.eq.s32.totalorder %s43, 0
    %s46 = sadd.s32 %s45, 1
    %s47 = scalar_select %p44, %s45, %s46
    %p50 = pneg %p44
    %p51 = scmp.eq.s32.totalorder %s9, 1
    %p52 = por %p50, %p51
    %p53 = scmp.ne.s32.totalorder %s45, %s48
    %p54 = scmp.eq.s32.totalorder %s9, 0
    %p55 = por %p53, %p54
    %p56 = scmp.ne.s32.totalorder %s45, %s48
    %p57 = scmp.eq.s32.totalorder %s14, 1
    %p58 = por %p56, %p57
    %p59 = scmp.ne.s32.totalorder %s48, %s49
    %p60 = scmp.eq.s32.totalorder %s14, 0
    %p61 = por %p59, %p60
    %p62 = scmp.ne.s32.totalorder %s48, %s49
    %p63 = scmp.eq.s32.totalorder %s15, 1
    %p64 = por %p62, %p63
    %p66 = scmp.ne.s32.totalorder %s49, %s65
    %p67 = scmp.eq.s32.totalorder %s15, 0
    %p68 = por %p66, %p67
    %s69 = ssub.s32 %s9, %s16
    %p70 = scmp.eq.s32.totalorder %s69, 0
    %s72 = sadd.s32 %s71, 1
    %s73 = scalar_select %p70, %s71, %s72
    %p76 = pneg %p70
    %p77 = scmp.eq.s32.totalorder %s9, 1
    %p78 = por %p76, %p77
    %p79 = scmp.ne.s32.totalorder %s71, %s74
    %p80 = scmp.eq.s32.totalorder %s9, 0
    %p81 = por %p79, %p80
    %p82 = scmp.ne.s32.totalorder %s71, %s74
    %p83 = scmp.eq.s32.totalorder %s14, 1
    %p84 = por %p82, %p83
    %p85 = scmp.ne.s32.totalorder %s74, %s75
    %p86 = scmp.eq.s32.totalorder %s14, 0
    %p87 = por %p85, %p86
    %p88 = scmp.ne.s32.totalorder %s74, %s75
    %p89 = scmp.eq.s32.totalorder %s15, 1
    %p90 = por %p88, %p89
    %p92 = scmp.ne.s32.totalorder %s75, %s91
    %p93 = scmp.eq.s32.totalorder %s15, 0
    %p94 = por %p92, %p93
    %s95 = ssub.s32 %s9, %s16
    %p96 = scmp.eq.s32.totalorder %s95, 0
    %s98 = sadd.s32 %s97, 1
    %s99 = scalar_select %p96, %s97, %s98
    %p102 = pneg %p96
    %p103 = scmp.eq.s32.totalorder %s9, 1
    %p104 = por %p102, %p103
    %p105 = scmp.ne.s32.totalorder %s97, %s100
    %p106 = scmp.eq.s32.totalorder %s9, 0
    %p107 = por %p105, %p106
    %p108 = scmp.ne.s32.totalorder %s97, %s100
    %p109 = scmp.eq.s32.totalorder %s14, 1
    %p110 = por %p108, %p109
    %p111 = scmp.ne.s32.totalorder %s100, %s101
    %p112 = scmp.eq.s32.totalorder %s14, 0
    %p113 = por %p111, %p112
    %p114 = scmp.ne.s32.totalorder %s100, %s101
    %p115 = scmp.eq.s32.totalorder %s15, 1
    %p116 = por %p114, %p115
    %p118 = scmp.ne.s32.totalorder %s101, %s117
    %p119 = scmp.eq.s32.totalorder %s15, 0
    %p120 = por %p118, %p119
    %p121 = scmp.le.s32.totalorder 1, %s9
    %p122 = scmp.lt.s32.totalorder %s9, 3
    %p123 = pnand %p121, %p122
    %p124 = pneg %p123
    // Predicated region
    $region9: #{_lambda_.28} parent=5 // pred_check
      _
    $region10: #{_lambda_.28} parent=5 // pred_check_branch
      %126 = sbr.rel (%p123) target = $region12
    $region11: #{_lambda_.28} parent=5 // pred_region
      %s127 = ssub.s32 %s9, 1
    $region12: #{_lambda_.28} parent=5 // pred_fallthru
      _
    %p128 = scmp.lt.s32.totalorder %s9, 2
    // Predicated region
    $region13: #{_lambda_.28} parent=5 // pred_check
      %p129 = pneg %p128
    $region14: #{_lambda_.28} parent=5 // pred_check_branch
      %131 = sbr.rel (%p129) target = $region16
    $region15: #{_lambda_.28} parent=5 // pred_region
      // Predicated region
      $region17: #{_lambda_.28} parent=15 // pred_check
        %p132 = pneg %p29
      $region18: #{_lambda_.28} parent=15 // pred_check_branch
        %134 = sbr.rel (%p132) target = $region20
      $region19: #{_lambda_.28} parent=15 // pred_region
        %p135 = scmp.lt.s32.totalorder %s9, 1
        %s136 = scalar_select %p135, %s9, 1
        %s137 = scalar_lea.vmem %s0, %s136
      $region20: #{_lambda_.28} parent=15 // pred_fallthru
        _
      // Predicated region
      $region21: #{_lambda_.28} parent=15 // pred_check
        %p138 = pneg %p55
      $region22: #{_lambda_.28} parent=15 // pred_check_branch
        %140 = sbr.rel (%p138) target = $region24
      $region23: #{_lambda_.28} parent=15 // pred_region
        %p141 = scmp.lt.s32.totalorder %s9, 1
        %s142 = scalar_select %p141, %s9, 1
        %s143 = smul.addr %s142, 4
        %s144 = scalar_lea.vmem %s1, %s143
      $region24: #{_lambda_.28} parent=15 // pred_fallthru
        _
      // Predicated region
      $region25: #{_lambda_.28} parent=15 // pred_check
        %p145 = pneg %p81
      $region26: #{_lambda_.28} parent=15 // pred_check_branch
        %147 = sbr.rel (%p145) target = $region28
      $region27: #{_lambda_.28} parent=15 // pred_region
        %p148 = scmp.lt.s32.totalorder %s9, 1
        %s149 = scalar_select %p148, %s9, 1
        %s150 = smul.addr %s149, 2
        %s151 = smul.addr %s150, 4
        %s152 = scalar_lea.vmem %s2, %s151
      $region28: #{_lambda_.28} parent=15 // pred_fallthru
        _
    $region16: #{_lambda_.28} parent=5 // pred_fallthru
      _
    %p153 = scmp.le.s32.totalorder 1, %s9
    %p154 = scmp.lt.s32.totalorder %s9, 3
    %p155 = pnand %p153, %p154
    %p156 = pneg %p155
    // Predicated region
    $region29: #{_lambda_.28} parent=5 // pred_check
      _
    $region30: #{_lambda_.28} parent=5 // pred_check_branch
      %158 = sbr.rel (%p155) target = $region32
    $region31: #{_lambda_.28} parent=5 // pred_region
      %s159 = ssub.s32 %s9, 1
      %p160 = scmp.lt.s32.totalorder %s14, 1
      %s161 = scalar_select %p160, %s14, 1
      %s162 = scalar_lea.vmem %s0, %s161
      %p163 = pneg %p35
      %p164 = pneg %p32
      %p165 = scmp.lt.s32.totalorder %s14, 1
      %s166 = scalar_select %p165, %s14, 1
      %s167 = smul.addr %s166, 4
      %s168 = scalar_lea.vmem %s1, %s167
      %p169 = pneg %p61
      %p170 = pneg %p58
      %p171 = scmp.lt.s32.totalorder %s14, 1
      %s172 = scalar_select %p171, %s14, 1
      %s173 = smul.addr %s172, 2
      %s174 = smul.addr %s173, 4
      %s175 = scalar_lea.vmem %s2, %s174
      %p176 = pneg %p87
      %p177 = pneg %p84
      %p178 = pneg %p113
      %p179 = pneg %p110
      %p180 = scmp.lt.s32.totalorder %s14, 1
      %s181 = scalar_select %p180, %s14, 1
      %s182 = smul.addr %s181, 4
      %s183 = scalar_lea.vmem %s3, %s182
      %p184 = scmp.lt.s32.totalorder %s14, 1
      %s185 = scalar_select %p184, %s14, 1
      %s186 = scalar_lea.vmem %s0, %s185
      %p187 = scmp.lt.s32.totalorder %s14, 1
      %s188 = scalar_select %p187, %s14, 1
      %s189 = smul.addr %s188, 4
      %s190 = scalar_lea.vmem %s1, %s189
      %p191 = scmp.lt.s32.totalorder %s14, 1
      %s192 = scalar_select %p191, %s14, 1
      %s193 = smul.addr %s192, 2
      %s194 = smul.addr %s193, 4
      %s195 = scalar_lea.vmem %s2, %s194
      %p196 = scmp.lt.s32.totalorder %s14, 1
      %s197 = scalar_select %p196, %s14, 1
      %s198 = smul.addr %s197, 4
      %s199 = scalar_lea.vmem %s3, %s198
      %v201 = vld [vmem:[%s190] sm:$0xf]
      %v202 = vld [vmem:[%s195] sm:$0xf]
      %v203 = vld [vmem:[%s195 + $0x4] sm:$0xf]
      %v206 = vunpack.c.l.b16 %v202
      %v207 = vunpack.c.l.b16 %v203
      %v208 = vpack.c.b16 %v207, %v206
      %vm209 = vcmask 64512
      %v211 = vsel %vm209, %v201, 0
      %v214 = vsel %vm209, %v208, 0
      %216 = vmatprep.subr.bf16.mxu0 0
      %217 = vmatpush1.bf16.xpose.msra.mxu0 %v214
      %218 = vmatprep.subr.bf16.mxu0 0
      %219 = vmatpush1.bf16.xpose.msra.mxu0 0
      %220 = vmatprep.subr.bf16.mxu0 0
      %221 = vmatpush1.bf16.xpose.msra.mxu0 0
      %222 = vmatprep.subr.bf16.mxu0 0
      %223 = vmatpush1.bf16.xpose.msra.mxu0 0
      %224 = vmatprep.subr.bf16.mxu0 0
      %225 = vmatpush1.bf16.xpose.msra.mxu0 0
      %226 = vmatprep.subr.bf16.mxu0 0
      %227 = vmatpush1.bf16.xpose.msra.mxu0 0
      %228 = vmatprep.subr.bf16.mxu0 0
      %229 = vmatpush1.bf16.xpose.msra.mxu0 0
      %230 = vmatprep.subr.bf16.mxu0 0
      %231 = vmatpush1.bf16.xpose.msra.mxu0 0
      %232 = vmatprep.subr.bf16.mxu0 0
      %233 = vmatpush1.bf16.xpose.msra.mxu0 0
      %234 = vmatprep.subr.bf16.mxu0 0
      %235 = vmatpush1.bf16.xpose.msra.mxu0 0
      %236 = vmatprep.subr.bf16.mxu0 0
      %237 = vmatpush1.bf16.xpose.msra.mxu0 0
      %238 = vmatprep.subr.bf16.mxu0 0
      %239 = vmatpush1.bf16.xpose.msra.mxu0 0
      %240 = vmatprep.subr.bf16.mxu0 0
      %241 = vmatpush1.bf16.xpose.msra.mxu0 0
      %242 = vmatprep.subr.bf16.mxu0 0
      %243 = vmatpush1.bf16.xpose.msra.mxu0 0
      %244 = vmatprep.subr.bf16.mxu0 0
      %245 = vmatpush1.bf16.xpose.msra.mxu0 0
      %246 = vmatprep.subr.bf16.mxu0 0
      %247 = vmatpush1.bf16.xpose.msra.mxu0 0
      %248 = vmatprep.mubr.bf16.mxu0 0
      %249 = vmatmul.mubr.bf16.gmra.mrb[0].mxu0 %v211
      %v250 = vpop.f32.mrb[0].mxu0
      %v251 = vadd.f32 0.0, %v250
      %v252 = vpop.f32.mrb[0].mxu0
      %v253 = vpop.f32.mrb[0].mxu0
      %v254 = vpop.f32.mrb[0].mxu0
      %255 = vdwg.mxu0
      %vm256 = vcmask 130048
      %v257 = vsel %vm256, %v251, -inf
      %258 = vmax.xlane.f32.xlu0 %v257
      %v259 = vpop.xlane.xlu0 %258
      %v260 = vsub.f32 %v251, %v259
      %v261 = vmul.f32 %v260, 1.442695
      %v262 = vpow.pop %v261
      %v263 = vsel %vm256, %v262, 0.0
      %264 = vadd.xlane.f32.xlu0 %v263
      %v265 = vpop.xlane.xlu0 %264
      %v266 = vpack.c.bf16 %v262, %v262
      %267 = vrot.lane.b32.xlu0 %v208, 96
      %v268 = vpop.permute.xlu0 %267
      %v271 = vsel %vm256, %v266, 0
      %273 = vmatprep.subr.bf16.mxu0 0
      %274 = vmatpush1.bf16.msra.mxu0 %v268
      %275 = vmatprep.subr.bf16.mxu0 0
      %276 = vmatpush1.bf16.msra.mxu0 0
      %277 = vmatprep.subr.bf16.mxu0 0
      %278 = vmatpush1.bf16.msra.mxu0 0
      %279 = vmatprep.subr.bf16.mxu0 0
      %280 = vmatpush1.bf16.msra.mxu0 0
      %281 = vmatprep.subr.bf16.mxu0 0
      %282 = vmatpush1.bf16.msra.mxu0 0
      %283 = vmatprep.subr.bf16.mxu0 0
      %284 = vmatpush1.bf16.msra.mxu0 0
      %285 = vmatprep.subr.bf16.mxu0 0
      %286 = vmatpush1.bf16.msra.mxu0 0
      %287 = vmatprep.subr.bf16.mxu0 0
      %288 = vmatpush1.bf16.msra.mxu0 0
      %289 = vmatprep.subr.bf16.mxu0 0
      %290 = vmatpush1.bf16.msra.mxu0 0
      %291 = vmatprep.subr.bf16.mxu0 0
      %292 = vmatpush1.bf16.msra.mxu0 0
      %293 = vmatprep.subr.bf16.mxu0 0
      %294 = vmatpush1.bf16.msra.mxu0 0
      %295 = vmatprep.subr.bf16.mxu0 0
      %296 = vmatpush1.bf16.msra.mxu0 0
      %297 = vmatprep.subr.bf16.mxu0 0
      %298 = vmatpush1.bf16.msra.mxu0 0
      %299 = vmatprep.subr.bf16.mxu0 0
      %300 = vmatpush1.bf16.msra.mxu0 0
      %301 = vmatprep.subr.bf16.mxu0 0
      %302 = vmatpush1.bf16.msra.mxu0 0
      %303 = vmatprep.subr.bf16.mxu0 0
      %304 = vmatpush1.bf16.msra.mxu0 0
      %305 = vmatprep.mubr.bf16.mxu0 0
      %306 = vmatmul.mubr.bf16.gmra.mrb[0].mxu0 %v271
      %v307 = vpop.f32.mrb[0].mxu0
      %v308 = vadd.f32 0.0, %v307
      %v309 = vpop.f32.mrb[0].mxu0
      %v310 = vpop.f32.mrb[0].mxu0
      %v311 = vpop.f32.mrb[0].mxu0
      %312 = vdwg.mxu0
      %v313 = vrcp.pop %v265
      %v314 = vmul.f32 %v308, %v313
      %v316 = vunpack.c.l.b16 %v201
      %v317 = vpack.c.b16 %v316, %v316
      %318 = vrot.lane.b32.xlu0 %v317, 120
      %v319 = vpop.permute.xlu0 %318
      %320 = vrot.lane.b32.xlu0 %v208, 120
      %v321 = vpop.permute.xlu0 %320
      %v323 = vsel %vm209, %v319, 0
      %v326 = vsel %vm209, %v321, 0
      %328 = vmatprep.subr.bf16.mxu0 0
      %329 = vmatpush1.bf16.xpose.msra.mxu0 %v326
      %330 = vmatprep.subr.bf16.mxu0 0
      %331 = vmatpush1.bf16.xpose.msra.mxu0 0
      %332 = vmatprep.subr.bf16.mxu0 0
      %333 = vmatpush1.bf16.xpose.msra.mxu0 0
      %334 = vmatprep.subr.bf16.mxu0 0
      %335 = vmatpush1.bf16.xpose.msra.mxu0 0
      %336 = vmatprep.subr.bf16.mxu0 0
      %337 = vmatpush1.bf16.xpose.msra.mxu0 0
      %338 = vmatprep.subr.bf16.mxu0 0
      %339 = vmatpush1.bf16.xpose.msra.mxu0 0
      %340 = vmatprep.subr.bf16.mxu0 0
      %341 = vmatpush1.bf16.xpose.msra.mxu0 0
      %342 = vmatprep.subr.bf16.mxu0 0
      %343 = vmatpush1.bf16.xpose.msra.mxu0 0
      %344 = vmatprep.subr.bf16.mxu0 0
      %345 = vmatpush1.bf16.xpose.msra.mxu0 0
      %346 = vmatprep.subr.bf16.mxu0 0
      %347 = vmatpush1.bf16.xpose.msra.mxu0 0
      %348 = vmatprep.subr.bf16.mxu0 0
      %349 = vmatpush1.bf16.xpose.msra.mxu0 0
      %350 = vmatprep.subr.bf16.mxu0 0
      %351 = vmatpush1.bf16.xpose.msra.mxu0 0
      %352 = vmatprep.subr.bf16.mxu0 0
      %353 = vmatpush1.bf16.xpose.msra.mxu0 0
      %354 = vmatprep.subr.bf16.mxu0 0
      %355 = vmatpush1.bf16.xpose.msra.mxu0 0
      %356 = vmatprep.subr.bf16.mxu0 0
      %357 = vmatpush1.bf16.xpose.msra.mxu0 0
      %358 = vmatprep.subr.bf16.mxu0 0
      %359 = vmatpush1.bf16.xpose.msra.mxu0 0
      %360 = vmatprep.mubr.bf16.mxu0 0
      %361 = vmatmul.mubr.bf16.gmra.mrb[0].mxu0 %v323
      %v362 = vpop.f32.mrb[0].mxu0
      %v363 = vadd.f32 0.0, %v362
      %v364 = vpop.f32.mrb[0].mxu0
      %v365 = vpop.f32.mrb[0].mxu0
      %v366 = vpop.f32.mrb[0].mxu0
      %367 = vdwg.mxu0
      %v368 = vsel %vm256, %v363, -inf
      %369 = vmax.xlane.f32.xlu0 %v368
      %v370 = vpop.xlane.xlu0 %369
      %v371 = vsub.f32 %v363, %v370
      %v372 = vmul.f32 %v371, 1.442695
      %v373 = vpow.pop %v372
      %v374 = vsel %vm256, %v373, 0.0
      %375 = vadd.xlane.f32.xlu0 %v374
      %v376 = vpop.xlane.xlu0 %375
      %v377 = vpack.c.bf16 %v373, %v373
      %378 = vrot.lane.b32.xlu0 %v208, 88
      %v379 = vpop.permute.xlu0 %378
      %v382 = vsel %vm256, %v377, 0
      %384 = vmatprep.subr.bf16.mxu0 0
      %385 = vmatpush1.bf16.msra.mxu0 %v379
      %386 = vmatprep.subr.bf16.mxu0 0
      %387 = vmatpush1.bf16.msra.mxu0 0
      %388 = vmatprep.subr.bf16.mxu0 0
      %389 = vmatpush1.bf16.msra.mxu0 0
      %390 = vmatprep.subr.bf16.mxu0 0
      %391 = vmatpush1.bf16.msra.mxu0 0
      %392 = vmatprep.subr.bf16.mxu0 0
      %393 = vmatpush1.bf16.msra.mxu0 0
      %394 = vmatprep.subr.bf16.mxu0 0
      %395 = vmatpush1.bf16.msra.mxu0 0
      %396 = vmatprep.subr.bf16.mxu0 0
      %397 = vmatpush1.bf16.msra.mxu0 0
      %398 = vmatprep.subr.bf16.mxu0 0
      %399 = vmatpush1.bf16.msra.mxu0 0
      %400 = vmatprep.subr.bf16.mxu0 0
      %401 = vmatpush1.bf16.msra.mxu0 0
      %402 = vmatprep.subr.bf16.mxu0 0
      %403 = vmatpush1.bf16.msra.mxu0 0
      %404 = vmatprep.subr.bf16.mxu0 0
      %405 = vmatpush1.bf16.msra.mxu0 0
      %406 = vmatprep.subr.bf16.mxu0 0
      %407 = vmatpush1.bf16.msra.mxu0 0
      %408 = vmatprep.subr.bf16.mxu0 0
      %409 = vmatpush1.bf16.msra.mxu0 0
      %410 = vmatprep.subr.bf16.mxu0 0
      %411 = vmatpush1.bf16.msra.mxu0 0
      %412 = vmatprep.subr.bf16.mxu0 0
      %413 = vmatpush1.bf16.msra.mxu0 0
      %414 = vmatprep.subr.bf16.mxu0 0
      %415 = vmatpush1.bf16.msra.mxu0 0
      %416 = vmatprep.mubr.bf16.mxu0 0
      %417 = vmatmul.mubr.bf16.gmra.mrb[0].mxu0 %v382
      %v418 = vpop.f32.mrb[0].mxu0
      %v419 = vadd.f32 0.0, %v418
      %v420 = vpop.f32.mrb[0].mxu0
      %v421 = vpop.f32.mrb[0].mxu0
      %v422 = vpop.f32.mrb[0].mxu0
      %423 = vdwg.mxu0
      %v424 = vrcp.pop %v376
      %v425 = vmul.f32 %v419, %v424
      %426 = vrot.lane.b32.xlu0 %v317, 112
      %v427 = vpop.permute.xlu0 %426
      %428 = vrot.lane.b32.xlu0 %v208, 112
      %v429 = vpop.permute.xlu0 %428
      %v431 = vsel %vm209, %v427, 0
      %v434 = vsel %vm209, %v429, 0
      %436 = vmatprep.subr.bf16.mxu0 0
      %437 = vmatpush1.bf16.xpose.msra.mxu0 %v434
      %438 = vmatprep.subr.bf16.mxu0 0
      %439 = vmatpush1.bf16.xpose.msra.mxu0 0
      %440 = vmatprep.subr.bf16.mxu0 0
      %441 = vmatpush1.bf16.xpose.msra.mxu0 0
      %442 = vmatprep.subr.bf16.mxu0 0
      %443 = vmatpush1.bf16.xpose.msra.mxu0 0
      %444 = vmatprep.subr.bf16.mxu0 0
      %445 = vmatpush1.bf16.xpose.msra.mxu0 0
      %446 = vmatprep.subr.bf16.mxu0 0
      %447 = vmatpush1.bf16.xpose.msra.mxu0 0
      %448 = vmatprep.subr.bf16.mxu0 0
      %449 = vmatpush1.bf16.xpose.msra.mxu0 0
      %450 = vmatprep.subr.bf16.mxu0 0
      %451 = vmatpush1.bf16.xpose.msra.mxu0 0
      %452 = vmatprep.subr.bf16.mxu0 0
      %453 = vmatpush1.bf16.xpose.msra.mxu0 0
      %454 = vmatprep.subr.bf16.mxu0 0
      %455 = vmatpush1.bf16.xpose.msra.mxu0 0
      %456 = vmatprep.subr.bf16.mxu0 0
      %457 = vmatpush1.bf16.xpose.msra.mxu0 0
      %458 = vmatprep.subr.bf16.mxu0 0
      %459 = vmatpush1.bf16.xpose.msra.mxu0 0
      %460 = vmatprep.subr.bf16.mxu0 0
      %461 = vmatpush1.bf16.xpose.msra.mxu0 0
      %462 = vmatprep.subr.bf16.mxu0 0
      %463 = vmatpush1.bf16.xpose.msra.mxu0 0
      %464 = vmatprep.subr.bf16.mxu0 0
      %465 = vmatpush1.bf16.xpose.msra.mxu0 0
      %466 = vmatprep.subr.bf16.mxu0 0
      %467 = vmatpush1.bf16.xpose.msra.mxu0 0
      %468 = vmatprep.mubr.bf16.mxu0 0
      %469 = vmatmul.mubr.bf16.gmra.mrb[0].mxu0 %v431
      %v470 = vpop.f32.mrb[0].mxu0
      %v471 = vadd.f32 0.0, %v470
      %v472 = vpop.f32.mrb[0].mxu0
      %v473 = vpop.f32.mrb[0].mxu0
      %v474 = vpop.f32.mrb[0].mxu0
      %475 = vdwg.mxu0
      %v476 = vsel %vm256, %v471, -inf
      %477 = vmax.xlane.f32.xlu0 %v476
      %v478 = vpop.xlane.xlu0 %477
      %v479 = vsub.f32 %v471, %v478
      %v480 = vmul.f32 %v479, 1.442695
      %v481 = vpow.pop %v480
      %v482 = vsel %vm256, %v481, 0.0
      %483 = vadd.xlane.f32.xlu0 %v482
      %v484 = vpop.xlane.xlu0 %483
      %v485 = vpack.c.bf16 %v481, %v481
      %486 = vrot.lane.b32.xlu0 %v208, 80
      %v487 = vpop.permute.xlu0 %486
      %v490 = vsel %vm256, %v485, 0
      %492 = vmatprep.subr.bf16.mxu0 0
      %493 = vmatpush1.bf16.msra.mxu0 %v487
      %494 = vmatprep.subr.bf16.mxu0 0
      %495 = vmatpush1.bf16.msra.mxu0 0
      %496 = vmatprep.subr.bf16.mxu0 0
      %497 = vmatpush1.bf16.msra.mxu0 0
      %498 = vmatprep.subr.bf16.mxu0 0
      %499 = vmatpush1.bf16.msra.mxu0 0
      %500 = vmatprep.subr.bf16.mxu0 0
      %501 = vmatpush1.bf16.msra.mxu0 0
      %502 = vmatprep.subr.bf16.mxu0 0
      %503 = vmatpush1.bf16.msra.mxu0 0
      %504 = vmatprep.subr.bf16.mxu0 0
      %505 = vmatpush1.bf16.msra.mxu0 0
      %506 = vmatprep.subr.bf16.mxu0 0
      %507 = vmatpush1.bf16.msra.mxu0 0
      %508 = vmatprep.subr.bf16.mxu0 0
      %509 = vmatpush1.bf16.msra.mxu0 0
      %510 = vmatprep.subr.bf16.mxu0 0
      %511 = vmatpush1.bf16.msra.mxu0 0
      %512 = vmatprep.subr.bf16.mxu0 0
      %513 = vmatpush1.bf16.msra.mxu0 0
      %514 = vmatprep.subr.bf16.mxu0 0
      %515 = vmatpush1.bf16.msra.mxu0 0
      %516 = vmatprep.subr.bf16.mxu0 0
      %517 = vmatpush1.bf16.msra.mxu0 0
      %518 = vmatprep.subr.bf16.mxu0 0
      %519 = vmatpush1.bf16.msra.mxu0 0
      %520 = vmatprep.subr.bf16.mxu0 0
      %521 = vmatpush1.bf16.msra.mxu0 0
      %522 = vmatprep.subr.bf16.mxu0 0
      %523 = vmatpush1.bf16.msra.mxu0 0
      %524 = vmatprep.mubr.bf16.mxu0 0
      %525 = vmatmul.mubr.bf16.gmra.mrb[0].mxu0 %v490
      %v526 = vpop.f32.mrb[0].mxu0
      %v527 = vadd.f32 0.0, %v526
      %v528 = vpop.f32.mrb[0].mxu0
      %v529 = vpop.f32.mrb[0].mxu0
      %v530 = vpop.f32.mrb[0].mxu0
      %531 = vdwg.mxu0
      %v532 = vrcp.pop %v484
      %v533 = vmul.f32 %v527, %v532
      %534 = vrot.lane.b32.xlu0 %v317, 104
      %v535 = vpop.permute.xlu0 %534
      %536 = vrot.lane.b32.xlu0 %v208, 104
      %v537 = vpop.permute.xlu0 %536
      %v539 = vsel %vm209, %v535, 0
      %v542 = vsel %vm209, %v537, 0
      %544 = vmatprep.subr.bf16.mxu0 0
      %545 = vmatpush1.bf16.xpose.msra.mxu0 %v542
      %546 = vmatprep.subr.bf16.mxu0 0
      %547 = vmatpush1.bf16.xpose.msra.mxu0 0
      %548 = vmatprep.subr.bf16.mxu0 0
      %549 = vmatpush1.bf16.xpose.msra.mxu0 0
      %550 = vmatprep.subr.bf16.mxu0 0
      %551 = vmatpush1.bf16.xpose.msra.mxu0 0
      %552 = vmatprep.subr.bf16.mxu0 0
      %553 = vmatpush1.bf16.xpose.msra.mxu0 0
      %554 = vmatprep.subr.bf16.mxu0 0
      %555 = vmatpush1.bf16.xpose.msra.mxu0 0
      %556 = vmatprep.subr.bf16.mxu0 0
      %557 = vmatpush1.bf16.xpose.msra.mxu0 0
      %558 = vmatprep.subr.bf16.mxu0 0
      %559 = vmatpush1.bf16.xpose.msra.mxu0 0
      %560 = vmatprep.subr.bf16.mxu0 0
      %561 = vmatpush1.bf16.xpose.msra.mxu0 0
      %562 = vmatprep.subr.bf16.mxu0 0
      %563 = vmatpush1.bf16.xpose.msra.mxu0 0
      %564 = vmatprep.subr.bf16.mxu0 0
      %565 = vmatpush1.bf16.xpose.msra.mxu0 0
      %566 = vmatprep.subr.bf16.mxu0 0
      %567 = vmatpush1.bf16.xpose.msra.mxu0 0
      %568 = vmatprep.subr.bf16.mxu0 0
      %569 = vmatpush1.bf16.xpose.msra.mxu0 0
      %570 = vmatprep.subr.bf16.mxu0 0
      %571 = vmatpush1.bf16.xpose.msra.mxu0 0
      %572 = vmatprep.subr.bf16.mxu0 0
      %573 = vmatpush1.bf16.xpose.msra.mxu0 0
      %574 = vmatprep.subr.bf16.mxu0 0
      %575 = vmatpush1.bf16.xpose.msra.mxu0 0
      %576 = vmatprep.mubr.bf16.mxu0 0
      %577 = vmatmul.mubr.bf16.gmra.mrb[0].mxu0 %v539
      %v578 = vpop.f32.mrb[0].mxu0
      %v579 = vadd.f32 0.0, %v578
      %v580 = vpop.f32.mrb[0].mxu0
      %v581 = vpop.f32.mrb[0].mxu0
      %v582 = vpop.f32.mrb[0].mxu0
      %583 = vdwg.mxu0
      %v584 = vsel %vm256, %v579, -inf
      %585 = vmax.xlane.f32.xlu0 %v584
      %v586 = vpop.xlane.xlu0 %585
      %v587 = vsub.f32 %v579, %v586
      %v588 = vmul.f32 %v587, 1.442695
      %v589 = vpow.pop %v588
      %v590 = vsel %vm256, %v589, 0.0
      %591 = vadd.xlane.f32.xlu0 %v590
      %v592 = vpop.xlane.xlu0 %591
      %v593 = vpack.c.bf16 %v589, %v589
      %594 = vrot.lane.b32.xlu0 %v208, 72
      %v595 = vpop.permute.xlu0 %594
      %v598 = vsel %vm256, %v593, 0
      %600 = vmatprep.subr.bf16.mxu0 0
      %601 = vmatpush1.bf16.msra.mxu0 %v595
      %602 = vmatprep.subr.bf16.mxu0 0
      %603 = vmatpush1.bf16.msra.mxu0 0
      %604 = vmatprep.subr.bf16.mxu0 0
      %605 = vmatpush1.bf16.msra.mxu0 0
      %606 = vmatprep.subr.bf16.mxu0 0
      %607 = vmatpush1.bf16.msra.mxu0 0
      %608 = vmatprep.subr.bf16.mxu0 0
      %609 = vmatpush1.bf16.msra.mxu0 0
      %610 = vmatprep.subr.bf16.mxu0 0
      %611 = vmatpush1.bf16.msra.mxu0 0
      %612 = vmatprep.subr.bf16.mxu0 0
      %613 = vmatpush1.bf16.msra.mxu0 0
      %614 = vmatprep.subr.bf16.mxu0 0
      %615 = vmatpush1.bf16.msra.mxu0 0
      %616 = vmatprep.subr.bf16.mxu0 0
      %617 = vmatpush1.bf16.msra.mxu0 0
      %618 = vmatprep.subr.bf16.mxu0 0
      %619 = vmatpush1.bf16.msra.mxu0 0
      %620 = vmatprep.subr.bf16.mxu0 0
      %621 = vmatpush1.bf16.msra.mxu0 0
      %622 = vmatprep.subr.bf16.mxu0 0
      %623 = vmatpush1.bf16.msra.mxu0 0
      %624 = vmatprep.subr.bf16.mxu0 0
      %625 = vmatpush1.bf16.msra.mxu0 0
      %626 = vmatprep.subr.bf16.mxu0 0
      %627 = vmatpush1.bf16.msra.mxu0 0
      %628 = vmatprep.subr.bf16.mxu0 0
      %629 = vmatpush1.bf16.msra.mxu0 0
      %630 = vmatprep.subr.bf16.mxu0 0
      %631 = vmatpush1.bf16.msra.mxu0 0
      %632 = vmatprep.mubr.bf16.mxu0 0
      %633 = vmatmul.mubr.bf16.gmra.mrb[0].mxu0 %v598
      %v634 = vpop.f32.mrb[0].mxu0
      %v635 = vadd.f32 0.0, %v634
      %v636 = vpop.f32.mrb[0].mxu0
      %v637 = vpop.f32.mrb[0].mxu0
      %v638 = vpop.f32.mrb[0].mxu0
      %639 = vdwg.mxu0
      %v640 = vrcp.pop %v592
      %v641 = vmul.f32 %v635, %v640
      %643 = vrot.lane.b32.xlu0 %v425, 8
      %v644 = vpop.permute.xlu0 %643
      %647 = vrot.lane.b32.xlu0 %v533, 16
      %v648 = vpop.permute.xlu0 %647
      %651 = vrot.lane.b32.xlu0 %v641, 24
      %v652 = vpop.permute.xlu0 %651
      %v654 = vsel %vm209, %v314, %v644
      %v655 = vsel %vm256, %v654, %v648
      %vm656 = vcmask 195584
      %v657 = vsel %vm656, %v655, %v652
      %v658 = vpack.c.bf16 %v657, %v657
      %vm659 = vcmask 257024
      %660 = vst.msk [vmem:[%s199] sm:$0xf] %vm659, %v658
      %p661 = scmp.lt.s32.totalorder %s14, 1
      %s662 = scalar_select %p661, %s14, 1
      %s663 = smul.addr %s662, 4
      %s664 = scalar_lea.vmem %s3, %s663
      // Predicated region
      $region33: #{_lambda_.28} parent=31 // pred_check
        %p665 = pneg %p110
      $region34: #{_lambda_.28} parent=31 // pred_check_branch
        %667 = sbr.rel (%p665) target = $region36
      $region35: #{_lambda_.28} parent=31 // pred_region
        _
      $region36: #{_lambda_.28} parent=31 // pred_fallthru
        _
    $region32: #{_lambda_.28} parent=5 // pred_fallthru
      _
    %p668 = scmp.le.s32.totalorder 2, %s9
    // Predicated region
    $region37: #{_lambda_.28} parent=5 // pred_check
      %p669 = pneg %p668
    $region38: #{_lambda_.28} parent=5 // pred_check_branch
      %671 = sbr.rel (%p669) target = $region40
    $region39: #{_lambda_.28} parent=5 // pred_region
      %s672 = ssub.s32 %s9, 2
      // Predicated region
      $region41: #{_lambda_.28} parent=39 // pred_check
        %p673 = pneg %p116
      $region42: #{_lambda_.28} parent=39 // pred_check_branch
        %675 = sbr.rel (%p673) target = $region44
      $region43: #{_lambda_.28} parent=39 // pred_region
        %p676 = scmp.lt.s32.totalorder %s15, 1
        %s677 = scalar_select %p676, %s15, 1
        %s678 = smul.addr %s677, 4
        %s679 = scalar_lea.vmem %s3, %s678
      $region44: #{_lambda_.28} parent=39 // pred_fallthru
        _
    $region40: #{_lambda_.28} parent=5 // pred_fallthru
      _
  $region6: #{_lambda_.28} parent=0 // loop_footer
    %s13 = sadd.s32 1, %s9
  $region7: #{_lambda_.28} parent=0 // loop_footer_branch
    %8 = sbr.rel target = $region3
  $region8: #{_lambda_.28} parent=0 // loop_exit
    _

// kernel: _lambda_.31
$region0: #{_lambda_.31}
  #allocation0 [shape = 'u32[]', space=smem, size = 0x4, offset = 0x4, fixed_abs, tag = 'smem constant byte address 0x4 - core index']
  #allocation1 [shape = 'u32[144,128]{1,0:T(1,128)}', space=vmem, size = 0x12000, scoped, tag = 'internal scratch']
  %s0 = inlined_call_operand.vmem [shape: bf16[16,64], index: 0, kind: input, shape index: {}]
  %s1 = inlined_call_operand.vmem [shape: bf16[64,32], index: 1, kind: input, shape index: {}]
  %s2 = inlined_call_operand.vmem [shape: f32[1,32], index: 2, kind: input, shape index: {}]
  %s3 = inlined_call_operand.vmem [shape: bf16[16,32], index: 3, kind: input, shape index: {}]
  %s4 = inlined_call_operand.vmem [shape: f32[1,32], index: 4, kind: input, shape index: {}]
  %s5 = inlined_call_operand.vmem [shape: f32[1,32], index: 5, kind: input, shape index: {}]
  %s6 = inlined_call_operand.vmem [shape: bf16[16,32], index: 6, kind: output, shape index: {}]
  %s7 = sld [smem:[#allocation0]]
  $region34: #{_lambda_.31} parent=0
    _
  %s9 = ssub.s32 1, %s7
  %s10 = scalar_select 0, %s9, %s7
  // Predicated region
  $region2: #{_lambda_.31} parent=0 // pred_check
    _
  $region3: #{_lambda_.31} parent=0 // pred_check_branch
    %12 = sbr.rel (0) target = $region5
  $region4: #{_lambda_.31} parent=0 // pred_region
    _
  $region5: #{_lambda_.31} parent=0 // pred_fallthru
    _
  // Predicated region
  $region6: #{_lambda_.31} parent=0 // pred_check
    _
  $region7: #{_lambda_.31} parent=0 // pred_check_branch
    %14 = sbr.rel (0) target = $region9
  $region8: #{_lambda_.31} parent=0 // pred_region
    _
  $region9: #{_lambda_.31} parent=0 // pred_fallthru
    _
  // Predicated region
  $region10: #{_lambda_.31} parent=0 // pred_check
    _
  $region11: #{_lambda_.31} parent=0 // pred_check_branch
    %16 = sbr.rel (0) target = $region13
  $region12: #{_lambda_.31} parent=0 // pred_region
    _
  $region13: #{_lambda_.31} parent=0 // pred_fallthru
    _
  // Predicated region
  $region14: #{_lambda_.31} parent=0 // pred_check
    _
  $region15: #{_lambda_.31} parent=0 // pred_check_branch
    %18 = sbr.rel (0) target = $region17
  $region16: #{_lambda_.31} parent=0 // pred_region
    _
  $region17: #{_lambda_.31} parent=0 // pred_fallthru
    _
  // Predicated region
  $region18: #{_lambda_.31} parent=0 // pred_check
    _
  $region19: #{_lambda_.31} parent=0 // pred_check_branch
    %20 = sbr.rel (0) target = $region21
  $region20: #{_lambda_.31} parent=0 // pred_region
    _
  $region21: #{_lambda_.31} parent=0 // pred_fallthru
    _
  // Predicated region
  $region22: #{_lambda_.31} parent=0 // pred_check
    _
  $region23: #{_lambda_.31} parent=0 // pred_check_branch
    %22 = sbr.rel (0) target = $region25
  $region24: #{_lambda_.31} parent=0 // pred_region
    _
  $region25: #{_lambda_.31} parent=0 // pred_fallthru
    _
  %v24 = vld [vmem:[%s0] sm:$0xf]
  %v25 = vld [vmem:[%s0 + $0x4] sm:$0xf]
  %v26 = vld [vmem:[%s1] sm:$0xf]
  %v27 = vld [vmem:[%s1 + $0x4] sm:$0xf]
  %v28 = vld [vmem:[%s1 + $0x8] sm:$0xf]
  %v29 = vld [vmem:[%s1 + $0xc] sm:$0xf]
  %v30 = vld [vmem:[%s1 + $0x10] sm:$0xf]
  %v31 = vld [vmem:[%s1 + $0x14] sm:$0xf]
  %v32 = vld [vmem:[%s1 + $0x18] sm:$0xf]
  %v33 = vld [vmem:[%s1 + $0x1c] sm:$0xf]
  %v34 = vld [vmem:[%s2] sm:$0x1]
  %v36 = vlaneseq
  %v37 = vshrl.u32 %v36, 7
  %v38 = vsub.s32 0, %v37
  %v39 = vrot.slane %v34, %v38
  %v43 = vunpack.c.l.b16 %v24
  %v44 = vunpack.c.l.b16 %v25
  %v45 = vpack.c.b16 %v44, %v43
  %v54 = vunpack.c.l.b16 %v26
  %v55 = vunpack.c.l.b16 %v27
  %v56 = vunpack.c.l.b16 %v28
  %v57 = vunpack.c.l.b16 %v29
  %v58 = vunpack.c.l.b16 %v30
  %v59 = vunpack.c.l.b16 %v31
  %v60 = vunpack.c.l.b16 %v32
  %v61 = vunpack.c.l.b16 %v33
  %v62 = vpack.c.b16 %v55, %v54
  %v63 = vpack.c.b16 %v57, %v56
  %v64 = vpack.c.b16 %v59, %v58
  %v65 = vpack.c.b16 %v61, %v60
  %vm70 = vcmask 523264
  %v72 = vsel %vm70, %v45, 0
  %74 = vmatprep.subr.bf16.mxu0 0
  %75 = vmatpush1.bf16.msra.mxu0 %v62
  %76 = vmatprep.subr.bf16.mxu0 0
  %77 = vmatpush1.bf16.msra.mxu0 %v63
  %78 = vmatprep.subr.bf16.mxu0 0
  %79 = vmatpush1.bf16.msra.mxu0 %v64
  %80 = vmatprep.subr.bf16.mxu0 0
  %81 = vmatpush1.bf16.msra.mxu0 %v65
  %82 = vmatprep.subr.bf16.mxu0 0
  %83 = vmatpush1.bf16.msra.mxu0 0
  %84 = vmatprep.subr.bf16.mxu0 0
  %85 = vmatpush1.bf16.msra.mxu0 0
  %86 = vmatprep.subr.bf16.mxu0 0
  %87 = vmatpush1.bf16.msra.mxu0 0
  %88 = vmatprep.subr.bf16.mxu0 0
  %89 = vmatpush1.bf16.msra.mxu0 0
  %90 = vmatprep.subr.bf16.mxu0 0
  %91 = vmatpush1.bf16.msra.mxu0 0
  %92 = vmatprep.subr.bf16.mxu0 0
  %93 = vmatpush1.bf16.msra.mxu0 0
  %94 = vmatprep.subr.bf16.mxu0 0
  %95 = vmatpush1.bf16.msra.mxu0 0
  %96 = vmatprep.subr.bf16.mxu0 0
  %97 = vmatpush1.bf16.msra.mxu0 0
  %98 = vmatprep.subr.bf16.mxu0 0
  %99 = vmatpush1.bf16.msra.mxu0 0
  %100 = vmatprep.subr.bf16.mxu0 0
  %101 = vmatpush1.bf16.msra.mxu0 0
  %102 = vmatprep.subr.bf16.mxu0 0
  %103 = vmatpush1.bf16.msra.mxu0 0
  %104 = vmatprep.subr.bf16.mxu0 0
  %105 = vmatpush1.bf16.msra.mxu0 0
  %106 = vmatprep.mubr.bf16.mxu0 0
  %107 = vmatmul.mubr.bf16.gmra.mrb[0].mxu0 %v72
  %v108 = vpop.f32.mrb[0].mxu0
  %v109 = vadd.f32 %v39, %v108
  %v110 = vpop.f32.mrb[0].mxu0
  %v111 = vpop.f32.mrb[0].mxu0
  %v112 = vadd.f32 %v39, %v111
  %v113 = vpop.f32.mrb[0].mxu0
  %114 = vdwg.mxu0
  %v115 = vld [vmem:[%s3] sm:$0xf]
  %v116 = vld [vmem:[%s3 + $0x4] sm:$0xf]
  %v117 = vunpack.c.l.bf16 %v115
  %v118 = vunpack.c.l.bf16 %v116
  %v119 = vadd.f32 %v109, %v117
  %v120 = vadd.f32 %v112, %v118
  %vm121 = vcmask 261120
  %v122 = vsel %vm121, %v119, 0.0
  %123 = vadd.xlane.f32.xlu0 %v122
  %v124 = vpop.xlane.xlu0 %123
  %v125 = vsel %vm121, %v120, 0.0
  %126 = vadd.xlane.f32.xlu0 %v125
  %v127 = vpop.xlane.xlu0 %126
  %v128 = vrcp.pop 32.0
  %v129 = vmul.f32 %v124, %v128
  %v130 = vmul.f32 %v127, %v128
  %v131 = vsub.f32 %v119, %v129
  %v132 = vsub.f32 %v120, %v130
  %v133 = vmul.f32 %v131, %v131
  %v134 = vmul.f32 %v132, %v132
  %v135 = vsel %vm121, %v133, 0.0
  %136 = vadd.xlane.f32.xlu0 %v135
  %v137 = vpop.xlane.xlu0 %136
  %v138 = vsel %vm121, %v134, 0.0
  %139 = vadd.xlane.f32.xlu0 %v138
  %v140 = vpop.xlane.xlu0 %139
  %v141 = vmul.f32 %v137, %v128
  %v142 = vmul.f32 %v140, %v128
  %v143 = vadd.f32 %v141, 1e-05
  %v144 = vadd.f32 %v142, 1e-05
  %v145 = vrsqrt.pop %v143
  %v146 = vrsqrt.pop %v144
  %v147 = vmul.f32 %v131, %v145
  %v148 = vmul.f32 %v132, %v146
  %v149 = vld [vmem:[%s4] sm:$0x1]
  %v151 = vlaneseq
  %v152 = vshrl.u32 %v151, 7
  %v153 = vsub.s32 0, %v152
  %v154 = vrot.slane %v149, %v153
  %v156 = vmul.f32 %v147, %v154
  %v157 = vmul.f32 %v148, %v154
  %v158 = vld [vmem:[%s5] sm:$0x1]
  %v160 = vlaneseq
  %v161 = vshrl.u32 %v160, 7
  %v162 = vsub.s32 0, %v161
  %v163 = vrot.slane %v158, %v162
  %v165 = vadd.f32 %v156, %v163
  %v166 = vadd.f32 %v157, %v163
  %v167 = vpack.c.bf16 %v166, %v165
  %v169 = vunpack.c.l.b16 %v167
  %v170 = vunpack.c.h.b16 %v167
  %v171 = vpack.c.b16 %v169, %v169
  %v172 = vpack.c.b16 %v170, %v170
  %vm175 = vcmask 257024
  %176 = vst.msk [vmem:[%s6] sm:$0xf] %vm175, %v171
  %177 = vst.msk [vmem:[%s6 + $0x4] sm:$0xf] %vm175, %v172
  // Predicated region
  $region26: #{_lambda_.31} parent=0 // pred_check
    _
  $region27: #{_lambda_.31} parent=0 // pred_check_branch
    %179 = sbr.rel (0) target = $region29
  $region28: #{_lambda_.31} parent=0 // pred_region
    _
  $region29: #{_lambda_.31} parent=0 // pred_fallthru
    _
  // Predicated region
  $region30: #{_lambda_.31} parent=0 // pred_check
    _
  $region31: #{_lambda_.31} parent=0 // pred_check_branch
    %181 = sbr.rel (0) target = $region33
  $region32: #{_lambda_.31} parent=0 // pred_region
    _
  $region33: #{_lambda_.31} parent=0 // pred_fallthru
    _

// kernel: _lambda_.41
$region0: #{_lambda_.41}
  #allocation0 [shape = 'u32[]', space=smem, size = 0x4, offset = 0x4, fixed_abs, tag = 'smem constant byte address 0x4 - core index']
  #allocation1 [shape = 'u32[144,128]{1,0:T(1,128)}', space=vmem, size = 0x12000, scoped, tag = 'internal scratch']
  %s0 = inlined_call_operand.vmem [shape: bf16[16,32], index: 0, kind: input, shape index: {}]
  %s1 = inlined_call_operand.vmem [shape: bf16[32,48], index: 1, kind: input, shape index: {}]
  %s2 = inlined_call_operand.vmem [shape: f32[1,48], index: 2, kind: input, shape index: {}]
  %s3 = inlined_call_operand.hbm [shape: f32[16,48], index: 3, kind: output, shape index: {}]
  %s4 = sld [smem:[#allocation0]]
  $region22: #{_lambda_.41} parent=0
    _
  %s6 = ssub.s32 1, %s4
  %s7 = scalar_select 0, %s6, %s4
  $region1: #{_lambda_.41} parent=0
    #allocation2 [shape = 'u8[8192]{0}', space=vmem, size = 0x2000, scoped, tag = 'output window, operand 0, single buffered']
    #allocation3 [shape = 's32[1]{0}', space=sflag, size = 0x4, scoped, tag = 'scoped memory for _lambda_.41']
    %8 = vsyncpa [#allocation3], 0
    // Predicated region
    $region2: #{_lambda_.41} parent=1 // pred_check
      _
    $region3: #{_lambda_.41} parent=1 // pred_check_branch
      %10 = sbr.rel (0) target = $region5
    $region4: #{_lambda_.41} parent=1 // pred_region
      _
    $region5: #{_lambda_.41} parent=1 // pred_fallthru
      _
    // Predicated region
    $region6: #{_lambda_.41} parent=1 // pred_check
      _
    $region7: #{_lambda_.41} parent=1 // pred_check_branch
      %12 = sbr.rel (0) target = $region9
    $region8: #{_lambda_.41} parent=1 // pred_region
      _
    $region9: #{_lambda_.41} parent=1 // pred_fallthru
      _
    // Predicated region
    $region10: #{_lambda_.41} parent=1 // pred_check
      _
    $region11: #{_lambda_.41} parent=1 // pred_check_branch
      %14 = sbr.rel (0) target = $region13
    $region12: #{_lambda_.41} parent=1 // pred_region
      _
    $region13: #{_lambda_.41} parent=1 // pred_fallthru
      _
    %v16 = vld [vmem:[%s0] sm:$0xf]
    %v17 = vld [vmem:[%s0 + $0x4] sm:$0xf]
    %v18 = vld [vmem:[%s1] sm:$0xf]
    %v19 = vld [vmem:[%s1 + $0x4] sm:$0xf]
    %v20 = vld [vmem:[%s1 + $0x8] sm:$0xf]
    %v21 = vld [vmem:[%s1 + $0xc] sm:$0xf]
    %v22 = vld [vmem:[%s2] sm:$0x1]
    %v24 = vlaneseq
    %v25 = vshrl.u32 %v24, 7
    %v26 = vsub.s32 0, %v25
    %v27 = vrot.slane %v22, %v26
    %v31 = vunpack.c.l.b16 %v16
    %v32 = vunpack.c.l.b16 %v17
    %v33 = vpack.c.b16 %v32, %v31
    %v38 = vunpack.c.l.b16 %v18
    %v39 = vunpack.c.l.b16 %v19
    %v40 = vunpack.c.l.b16 %v20
    %v41 = vunpack.c.l.b16 %v21
    %v42 = vpack.c.b16 %v39, %v38
    %v43 = vpack.c.b16 %v41, %v40
    %vm46 = vcmask 261120
    %v48 = vsel %vm46, %v33, 0
    %50 = vmatprep.subr.bf16.mxu0 0
    %51 = vmatpush1.bf16.msra.mxu0 %v42
    %52 = vmatprep.subr.bf16.mxu0 0
    %53 = vmatpush1.bf16.msra.mxu0 %v43
    %54 = vmatprep.subr.bf16.mxu0 0
    %55 = vmatpush1.bf16.msra.mxu0 0
    %56 = vmatprep.subr.bf16.mxu0 0
    %57 = vmatpush1.bf16.msra.mxu0 0
    %58 = vmatprep.subr.bf16.mxu0 0
    %59 = vmatpush1.bf16.msra.mxu0 0
    %60 = vmatprep.subr.bf16.mxu0 0
    %61 = vmatpush1.bf16.msra.mxu0 0
    %62 = vmatprep.subr.bf16.mxu0 0
    %63 = vmatpush1.bf16.msra.mxu0 0
    %64 = vmatprep.subr.bf16.mxu0 0
    %65 = vmatpush1.bf16.msra.mxu0 0
    %66 = vmatprep.subr.bf16.mxu0 0
    %67 = vmatpush1.bf16.msra.mxu0 0
    %68 = vmatprep.subr.bf16.mxu0 0
    %69 = vmatpush1.bf16.msra.mxu0 0
    %70 = vmatprep.subr.bf16.mxu0 0
    %71 = vmatpush1.bf16.msra.mxu0 0
    %72 = vmatprep.subr.bf16.mxu0 0
    %73 = vmatpush1.bf16.msra.mxu0 0
    %74 = vmatprep.subr.bf16.mxu0 0
    %75 = vmatpush1.bf16.msra.mxu0 0
    %76 = vmatprep.subr.bf16.mxu0 0
    %77 = vmatpush1.bf16.msra.mxu0 0
    %78 = vmatprep.subr.bf16.mxu0 0
    %79 = vmatpush1.bf16.msra.mxu0 0
    %80 = vmatprep.subr.bf16.mxu0 0
    %81 = vmatpush1.bf16.msra.mxu0 0
    %82 = vmatprep.mubr.bf16.mxu0 0
    %83 = vmatmul.mubr.bf16.gmra.mrb[0].mxu0 %v48
    %v84 = vpop.f32.mrb[0].mxu0
    %v85 = vadd.f32 %v27, %v84
    %v86 = vpop.f32.mrb[0].mxu0
    %v87 = vpop.f32.mrb[0].mxu0
    %v88 = vadd.f32 %v27, %v87
    %v89 = vpop.f32.mrb[0].mxu0
    %90 = vdwg.mxu0
    %vm91 = vcmask 392192
    %92 = vst.msk [vmem:[#allocation2] sm:$0xff] %vm91, %v85
    %93 = vst.msk [vmem:[#allocation2 + $0x8] sm:$0xff] %vm91, %v88
    // Predicated region
    $region14: #{_lambda_.41} parent=1 // pred_check
      _
    $region15: #{_lambda_.41} parent=1 // pred_check_branch
      %95 = sbr.rel (0) target = $region17
    $region16: #{_lambda_.41} parent=1 // pred_region
      %s97 = ssub.s32 256, 256
      %98 = vsyncadd [#allocation3], %s97
      %s99 = sshll.u32 [#allocation2], 4
      %s100 = int_to_ptr.vmem [resolvable:$true] %s99
      %105 = dma.vmem_to_hbm [thread:$0]  %s100, 256, %s3, [#allocation3], 128, 128, 8
    $region17: #{_lambda_.41} parent=1 // pred_fallthru
      _
    // Predicated region
    $region18: #{_lambda_.41} parent=1 // pred_check
      _
    $region19: #{_lambda_.41} parent=1 // pred_check_branch
      %107 = sbr.rel (0) target = $region21
    $region20: #{_lambda_.41} parent=1 // pred_region
      %108 = dma.done [#allocation3], 256
    $region21: #{_lambda_.41} parent=1 // pred_fallthru
      _
    %109 = vsyncpa [#allocation3], 1

// kernel: _lambda_.30
$region0: #{_lambda_.30}
  #allocation0 [shape = 'u32[]', space=smem, size = 0x4, offset = 0x4, fixed_abs, tag = 'smem constant byte address 0x4 - core index']
  #allocation1 [shape = 'u32[144,128]{1,0:T(1,128)}', space=vmem, size = 0x12000, scoped, tag = 'internal scratch']
  %s0 = inlined_call_operand.vmem [shape: bf16[16,32], index: 0, kind: input, shape index: {}]
  %s1 = inlined_call_operand.vmem [shape: bf16[32,64], index: 1, kind: input, shape index: {}]
  %s2 = inlined_call_operand.vmem [shape: f32[1,64], index: 2, kind: input, shape index: {}]
  %s3 = inlined_call_operand.vmem [shape: bf16[16,64], index: 3, kind: output, shape index: {}]
  %s4 = sld [smem:[#allocation0]]
  $region22: #{_lambda_.30} parent=0
    _
  %s6 = ssub.s32 1, %s4
  %s7 = scalar_select 0, %s6, %s4
  // Predicated region
  $region2: #{_lambda_.30} parent=0 // pred_check
    _
  $region3: #{_lambda_.30} parent=0 // pred_check_branch
    %9 = sbr.rel (0) target = $region5
  $region4: #{_lambda_.30} parent=0 // pred_region
    _
  $region5: #{_lambda_.30} parent=0 // pred_fallthru
    _
  // Predicated region
  $region6: #{_lambda_.30} parent=0 // pred_check
    _
  $region7: #{_lambda_.30} parent=0 // pred_check_branch
    %11 = sbr.rel (0) target = $region9
  $region8: #{_lambda_.30} parent=0 // pred_region
    _
  $region9: #{_lambda_.30} parent=0 // pred_fallthru
    _
  // Predicated region
  $region10: #{_lambda_.30} parent=0 // pred_check
    _
  $region11: #{_lambda_.30} parent=0 // pred_check_branch
    %13 = sbr.rel (0) target = $region13
  $region12: #{_lambda_.30} parent=0 // pred_region
    _
  $region13: #{_lambda_.30} parent=0 // pred_fallthru
    _
  %v15 = vld [vmem:[%s0] sm:$0xf]
  %v16 = vld [vmem:[%s0 + $0x4] sm:$0xf]
  %v17 = vld [vmem:[%s1] sm:$0xf]
  %v18 = vld [vmem:[%s1 + $0x4] sm:$0xf]
  %v19 = vld [vmem:[%s1 + $0x8] sm:$0xf]
  %v20 = vld [vmem:[%s1 + $0xc] sm:$0xf]
  %v21 = vld [vmem:[%s2] sm:$0x1]
  %v23 = vlaneseq
  %v24 = vshrl.u32 %v23, 7
  %v25 = vsub.s32 0, %v24
  %v26 = vrot.slane %v21, %v25
  %v30 = vunpack.c.l.b16 %v15
  %v31 = vunpack.c.l.b16 %v16
  %v32 = vpack.c.b16 %v31, %v30
  %v37 = vunpack.c.l.b16 %v17
  %v38 = vunpack.c.l.b16 %v18
  %v39 = vunpack.c.l.b16 %v19
  %v40 = vunpack.c.l.b16 %v20
  %v41 = vpack.c.b16 %v38, %v37
  %v42 = vpack.c.b16 %v40, %v39
  %vm45 = vcmask 261120
  %v47 = vsel %vm45, %v32, 0
  %49 = vmatprep.subr.bf16.mxu0 0
  %50 = vmatpush1.bf16.msra.mxu0 %v41
  %51 = vmatprep.subr.bf16.mxu0 0
  %52 = vmatpush1.bf16.msra.mxu0 %v42
  %53 = vmatprep.subr.bf16.mxu0 0
  %54 = vmatpush1.bf16.msra.mxu0 0
  %55 = vmatprep.subr.bf16.mxu0 0
  %56 = vmatpush1.bf16.msra.mxu0 0
  %57 = vmatprep.subr.bf16.mxu0 0
  %58 = vmatpush1.bf16.msra.mxu0 0
  %59 = vmatprep.subr.bf16.mxu0 0
  %60 = vmatpush1.bf16.msra.mxu0 0
  %61 = vmatprep.subr.bf16.mxu0 0
  %62 = vmatpush1.bf16.msra.mxu0 0
  %63 = vmatprep.subr.bf16.mxu0 0
  %64 = vmatpush1.bf16.msra.mxu0 0
  %65 = vmatprep.subr.bf16.mxu0 0
  %66 = vmatpush1.bf16.msra.mxu0 0
  %67 = vmatprep.subr.bf16.mxu0 0
  %68 = vmatpush1.bf16.msra.mxu0 0
  %69 = vmatprep.subr.bf16.mxu0 0
  %70 = vmatpush1.bf16.msra.mxu0 0
  %71 = vmatprep.subr.bf16.mxu0 0
  %72 = vmatpush1.bf16.msra.mxu0 0
  %73 = vmatprep.subr.bf16.mxu0 0
  %74 = vmatpush1.bf16.msra.mxu0 0
  %75 = vmatprep.subr.bf16.mxu0 0
  %76 = vmatpush1.bf16.msra.mxu0 0
  %77 = vmatprep.subr.bf16.mxu0 0
  %78 = vmatpush1.bf16.msra.mxu0 0
  %79 = vmatprep.subr.bf16.mxu0 0
  %80 = vmatpush1.bf16.msra.mxu0 0
  %81 = vmatprep.mubr.bf16.mxu0 0
  %82 = vmatmul.mubr.bf16.gmra.mrb[0].mxu0 %v47
  %v83 = vpop.f32.mrb[0].mxu0
  %v84 = vadd.f32 %v26, %v83
  %v85 = vpop.f32.mrb[0].mxu0
  %v86 = vpop.f32.mrb[0].mxu0
  %v87 = vadd.f32 %v26, %v86
  %v88 = vpop.f32.mrb[0].mxu0
  %89 = vdwg.mxu0
  %v90 = vmul.f32 %v84, 0.70710677
  %v91 = vmul.f32 %v87, 0.70710677
  %v92 = vand.u32 2147483647, %v90
  %v93 = vand.u32 2147483647, %v91
  %v94 = vmul.f32 %v92, 0.3275911
  %v95 = vmul.f32 %v93, 0.3275911
  %v96 = vadd.f32 %v94, 1.0
  %v97 = vadd.f32 %v95, 1.0
  %v98 = vrcp.pop %v96
  %v99 = vrcp.pop %v97
  %v100 = vmul.f32 %v98, 1.0614054
  %v101 = vmul.f32 %v99, 1.0614054
  %v102 = vadd.f32 %v100, -1.4531521
  %v103 = vadd.f32 %v101, -1.4531521
  %v104 = vmul.f32 %v102, %v98
  %v105 = vmul.f32 %v103, %v99
  %v106 = vadd.f32 %v104, 1.4214138
  %v107 = vadd.f32 %v105, 1.4214138
  %v108 = vmul.f32 %v106, %v98
  %v109 = vmul.f32 %v107, %v99
  %v110 = vadd.f32 %v108, -0.28449672
  %v111 = vadd.f32 %v109, -0.28449672
  %v112 = vmul.f32 %v110, %v98
  %v113 = vmul.f32 %v111, %v99
  %v114 = vadd.f32 %v112, 0.2548296
  %v115 = vadd.f32 %v113, 0.2548296
  %v116 = vmul.f32 %v114, %v98
  %v117 = vmul.f32 %v115, %v99
  %v118 = vsub.f32 0.0, %v92
  %v119 = vsub.f32 0.0, %v93
  %v120 = vmul.f32 %v118, %v92
  %v121 = vmul.f32 %v119, %v93
  %v122 = vmul.f32 %v120, 1.442695
  %v123 = vpow.pop %v122
  %v124 = vmul.f32 %v121, 1.442695
  %v125 = vpow.pop %v124
  %v126 = vmul.f32 %v116, %v123
  %v127 = vmul.f32 %v117, %v125
  %v128 = vsub.f32 1.0, %v126
  %v129 = vsub.f32 1.0, %v127
  %vm130 = vcmp.ge.f32.partialorder %v90, 0.0
  %vm131 = vcmp.ge.f32.partialorder %v91, 0.0
  %v132 = vsub.f32 0.0, %v128
  %v133 = vsub.f32 0.0, %v129
  %v134 = vsel %vm130, %v128, %v132
  %v135 = vsel %vm131, %v129, %v133
  %v136 = vmul.f32 %v84, 0.5
  %v137 = vmul.f32 %v87, 0.5
  %v138 = vadd.f32 %v134, 1.0
  %v139 = vadd.f32 %v135, 1.0
  %v140 = vmul.f32 %v136, %v138
  %v141 = vmul.f32 %v137, %v139
  %v142 = vpack.c.bf16 %v141, %v140
  %v144 = vunpack.c.l.b16 %v142
  %v145 = vunpack.c.h.b16 %v142
  %v146 = vpack.c.b16 %v144, %v144
  %v147 = vpack.c.b16 %v145, %v145
  %vm150 = vcmask 519168
  %151 = vst.msk [vmem:[%s3] sm:$0xf] %vm150, %v146
  %152 = vst.msk [vmem:[%s3 + $0x4] sm:$0xf] %vm150, %v147
  // Predicated region
  $region14: #{_lambda_.30} parent=0 // pred_check
    _
  $region15: #{_lambda_.30} parent=0 // pred_check_branch
    %154 = sbr.rel (0) target = $region17
  $region16: #{_lambda_.30} parent=0 // pred_region
    _
  $region17: #{_lambda_.30} parent=0 // pred_fallthru
    _
  // Predicated region
  $region18: #{_lambda_.30} parent=0 // pred_check
    _
  $region19: #{_lambda_.30} parent=0 // pred_check_branch
    %156 = sbr.rel (0) target = $region21
  $region20: #{_lambda_.30} parent=0 // pred_region
    _
  $region21: #{_lambda_.30} parent=0 // pred_fallthru
    _

</llo_original>
